<compile_context>
chip_gen: v7x
topology: tpu7x:2x2x1
jax: 0.10.0
libtpu: 0.0.40
codegen_flags: <defaults>
</compile_context>

<pallas_src>
import functools

import jax
import jax.numpy as jnp
from jax.experimental import pallas as pl
from jax.experimental.pallas import tpu as pltpu


# ---------------------------------------------------------------------------
# One-time host-side parameter preparation
# ---------------------------------------------------------------------------
def prepare_params(params, num_heads):
    """Fold the 1/sqrt(head_dim) query scaling into Wq/bq (one-time, host)."""
    E = params["wq"].shape[0]
    scaling = (E // num_heads) ** (-0.5)
    out = dict(params)
    out["wq"] = params["wq"] * scaling
    out["bq"] = params["bq"] * scaling
    return out


# ---------------------------------------------------------------------------
# Attention cores (operate on already-projected [rows, E] values)
# ---------------------------------------------------------------------------
def _attn_core_batched(qp, kp, vp, attn_ref, *, bt, lq, lk, num_heads,
                       head_dim, mxu_dtype, approx_recip):
    """All heads at once: two batched einsums, one bulk attn store."""
    e = num_heads * head_dim
    q4 = qp.astype(mxu_dtype).reshape(bt, lq, num_heads, head_dim)
    k4 = kp.astype(mxu_dtype).reshape(bt, lk, num_heads, head_dim)
    v4 = vp.astype(mxu_dtype).reshape(bt, lk, num_heads, head_dim)

    scores = jnp.einsum("bqhd,bkhd->bhqk", q4, k4,
                        preferred_element_type=jnp.float32)
    m = jnp.max(scores, axis=-1, keepdims=True)
    p = jnp.exp(scores - m)
    denom = jnp.sum(p, axis=-1, keepdims=True)
    w = p * pl.reciprocal(denom, approx=approx_recip)

    attn_ref[...] = w.astype(attn_ref.dtype)           # single bulk store

    ctx = jnp.einsum("bhqk,bkhd->bqhd", w.astype(mxu_dtype), v4,
                     preferred_element_type=jnp.float32)
    return ctx.reshape(bt * lq, e)


def _attn_core_looped(qp, kp, vp, attn_ref, *, bt, lq, lk, num_heads,
                      head_dim, mxu_dtype, approx_recip):
    """Fallback: static per-head loop (constructs proven to lower)."""
    e = num_heads * head_dim
    q3 = qp.astype(mxu_dtype).reshape(bt, lq, e)        # cast once, not per head
    k3 = kp.astype(mxu_dtype).reshape(bt, lk, e)
    v3 = vp.astype(mxu_dtype).reshape(bt, lk, e)

    ctx_heads = []
    for h in range(num_heads):
        lo = h * head_dim
        hi = lo + head_dim
        qh = q3[:, :, lo:hi]
        kh = k3[:, :, lo:hi]
        vh = v3[:, :, lo:hi]
        scores = jnp.einsum("bqd,bkd->bqk", qh, kh,
                            preferred_element_type=jnp.float32)
        m = jnp.max(scores, axis=-1, keepdims=True)
        p = jnp.exp(scores - m)
        denom = jnp.sum(p, axis=-1, keepdims=True)
        w = p * pl.reciprocal(denom, approx=approx_recip)
        attn_ref[:, h, :, :] = w.astype(attn_ref.dtype)
        ctx_heads.append(
            jnp.einsum("bqk,bkd->bqd", w.astype(mxu_dtype), vh,
                       preferred_element_type=jnp.float32))
    return jnp.concatenate(ctx_heads, axis=-1).reshape(bt * lq, e)


# ---------------------------------------------------------------------------
# Main kernel
# ---------------------------------------------------------------------------
def _mha_kernel(q_ref, k_ref, v_ref,
                wq_ref, bq_ref, wk_ref, bk_ref, wv_ref, bv_ref,
                wo_ref, bo_ref,
                attn_ref, out_ref,
                *, block_b, lq, lk, num_heads, head_dim,
                mxu_dtype, approx_recip, batched_heads):
    def proj(x_ref, w_ref, b_ref):
        return (jnp.dot(x_ref[...].astype(mxu_dtype),
                        w_ref[...].astype(mxu_dtype),
                        preferred_element_type=jnp.float32) + b_ref[...])

    # One wide [block_b*L, E] x [E, E] MXU matmul per projection; inputs are
    # pre-flattened so there are no in-kernel Ref-relayout round trips.
    qp = proj(q_ref, wq_ref, bq_ref)     # query scaling pre-folded into Wq/bq
    kp = proj(k_ref, wk_ref, bk_ref)
    vp = proj(v_ref, wv_ref, bv_ref)

    core = _attn_core_batched if batched_heads else _attn_core_looped
    ctx2 = core(qp, kp, vp, attn_ref, bt=block_b, lq=lq, lk=lk,
                num_heads=num_heads, head_dim=head_dim,
                mxu_dtype=mxu_dtype, approx_recip=approx_recip)

    # One output projection with K = E instead of H tiny matmuls.
    out = (jnp.dot(ctx2.astype(mxu_dtype), wo_ref[...].astype(mxu_dtype),
                   preferred_element_type=jnp.float32) + bo_ref[...])
    out_ref[...] = out.astype(out_ref.dtype)


# ---------------------------------------------------------------------------
# Probe: does the heads-batched einsum path lower (and compute) on this jax?
# ---------------------------------------------------------------------------
def _probe_kernel(qp_ref, kp_ref, vp_ref, attn_ref, ctx_ref, *, bt, lq, lk,
                  num_heads, head_dim, mxu_dtype, approx_recip):
    ctx_ref[...] = _attn_core_batched(
        qp_ref[...], kp_ref[...], vp_ref[...], attn_ref,
        bt=bt, lq=lq, lk=lk, num_heads=num_heads, head_dim=head_dim,
        mxu_dtype=mxu_dtype, approx_recip=approx_recip)


@functools.lru_cache(maxsize=None)
def _batched_heads_supported(bt, lq, lk, num_heads, head_dim, mxu_dtype,
                             approx_recip):
    e = num_heads * head_dim
    try:
        kq, kk, kv = jax.random.split(jax.random.PRNGKey(17), 3)
        qp = jax.random.normal(kq, (bt * lq, e), jnp.float32)
        kp = jax.random.normal(kk, (bt * lk, e), jnp.float32)
        vp = jax.random.normal(kv, (bt * lk, e), jnp.float32)

        kern = functools.partial(
            _probe_kernel, bt=bt, lq=lq, lk=lk, num_heads=num_heads,
            head_dim=head_dim, mxu_dtype=mxu_dtype, approx_recip=approx_recip)
        attn, ctx = pl.pallas_call(
            kern,
            out_shape=(
                jax.ShapeDtypeStruct((bt, num_heads, lq, lk), jnp.float32),
                jax.ShapeDtypeStruct((bt * lq, e), jnp.float32)),
        )(qp, kp, vp)
        jax.block_until_ready((attn, ctx))

        q4 = qp.reshape(bt, lq, num_heads, head_dim)
        k4 = kp.reshape(bt, lk, num_heads, head_dim)
        v4 = vp.reshape(bt, lk, num_heads, head_dim)
        s = jnp.einsum("bqhd,bkhd->bhqk", q4, k4)
        w = jax.nn.softmax(s, axis=-1)
        ctx_ref = jnp.einsum("bhqk,bkhd->bqhd", w, v4).reshape(bt * lq, e)
        tol = 5e-2 if (mxu_dtype == jnp.bfloat16 or approx_recip) else 1e-4
        return (bool(jnp.allclose(attn, w, atol=tol, rtol=tol)) and
                bool(jnp.allclose(ctx, ctx_ref, atol=tol, rtol=tol)))
    except Exception:
        return False


# ---------------------------------------------------------------------------
# Tiling heuristics
# ---------------------------------------------------------------------------
def _vmem_limit_bytes():
    # Generation-aware scoped-VMEM limit: ~75% of physical capacity, capped at
    # 100 MiB (v5e/v6e: 128 MiB, v7x: 64 MiB per TensorCore).  Conservative
    # 64 MiB assumption when the query is unavailable.
    cap = 64 * 1024 * 1024
    try:
        cap = int(pltpu.get_tpu_info().vmem_capacity_bytes)
    except Exception:
        pass
    return max(min(cap * 3 // 4, 100 * 1024 * 1024), 32 * 1024 * 1024)


def _choose_block_b(B, Lq, Lk, E, H, vmem_budget):
    itemsize = 4
    # Double-buffered q/k/v input blocks + attn/out output blocks per unit of
    # block_b, times 2 for in-kernel f32 intermediates.
    per_b = 2 * itemsize * (Lq * E + 2 * Lk * E + H * Lq * Lk + Lq * E)
    per_b *= 2
    weights = itemsize * (4 * E * E + 4 * E)
    budget = max(vmem_budget - 2 * weights, per_b)
    max_b = max(1, budget // per_b)
    want_b = max(1, -(-256 // Lq))            # >=256 projection rows preferred
    blk = int(min(B, max_b, want_b))
    while B % blk:
        blk -= 1
    # Keep the grid >= 2 (both v7x TensorCores busy) when the projection
    # matmuls still get >=128 rows per step after splitting.
    if B // blk < 2:
        half = blk // 2
        while half > 1 and B % half:
            half -= 1
        if half >= 1 and B % half == 0 and half * Lq >= 128:
            blk = half
    return blk


# ---------------------------------------------------------------------------
# Public wrapper
# ---------------------------------------------------------------------------
def multi_head_history_target_attention(query, key, value, params, *,
                                         num_heads, fast_math=True,
                                         attn_dtype=jnp.float32,
                                         block_b=None):
    """Pallas forward of MultiHeadHistory_TargetAttention (eval, no mask).

    query: [B, Lq, E]; key/value: [B, Lk, E]  (float32).
    params: output of `prepare_params` (Wq/bq already carry 1/sqrt(head_dim));
            weights [E, E] stored [in, out], biases [1, E].
    fast_math: bf16 MXU operands (f32 accumulate) + approx reciprocal; with it
               attention rows sum to 1 only within ~1e-2.
    attn_dtype: dtype of returned attention weights (use bf16 at production
                B*H*Lq*Lk to halve the dominant HBM write stream).
    Returns (attn_weights [B, H, Lq, Lk], output [B, Lq, E]).
    """
    B, Lq, E = query.shape
    _, Lk, _ = key.shape
    assert E % num_heads == 0
    head_dim = E // num_heads
    mxu_dtype = jnp.bfloat16 if fast_math else jnp.float32

    vmem_limit = _vmem_limit_bytes()
    if block_b is None:
        block_b = _choose_block_b(B, Lq, Lk, E, num_heads, vmem_limit)
    assert B % block_b == 0
    nb = B // block_b

    batched_heads = _batched_heads_supported(
        block_b, Lq, Lk, num_heads, head_dim, mxu_dtype, fast_math)

    kernel = functools.partial(
        _mha_kernel, block_b=block_b, lq=Lq, lk=Lk, num_heads=num_heads,
        head_dim=head_dim, mxu_dtype=mxu_dtype, approx_recip=fast_math,
        batched_heads=batched_heads)

    # Row-flattened 2-D slabs: no in-kernel Ref reshapes, lane-dense `out`.
    q2 = query.reshape(B * Lq, E)
    k2 = key.reshape(B * Lk, E)
    v2 = value.reshape(B * Lk, E)

    def act_spec(rows):
        return pl.BlockSpec((rows, E), lambda b: (b, 0))

    def run(single_buffer_weights):
        w_kw = {}
        if single_buffer_weights and hasattr(pl, "Buffered"):
            w_kw = dict(pipeline_mode=pl.Buffered(1))
        try:
            full_w = pl.BlockSpec((E, E), lambda b: (0, 0), **w_kw)
            full_b = pl.BlockSpec((1, E), lambda b: (0, 0), **w_kw)
        except TypeError:
            full_w = pl.BlockSpec((E, E), lambda b: (0, 0))
            full_b = pl.BlockSpec((1, E), lambda b: (0, 0))

        grid_spec = pltpu.PrefetchScalarGridSpec(
            num_scalar_prefetch=0,
            grid=(nb,),
            in_specs=[
                act_spec(block_b * Lq),        # query rows
                act_spec(block_b * Lk),        # key rows
                act_spec(block_b * Lk),        # value rows
                full_w, full_b,                # Wq, bq (pre-scaled)
                full_w, full_b,                # Wk, bk
                full_w, full_b,                # Wv, bv
                full_w, full_b,                # Wo, bo
            ],
            out_specs=[
                pl.BlockSpec((block_b, num_heads, Lq, Lk),
                             lambda b: (b, 0, 0, 0)),
                act_spec(block_b * Lq),        # output rows (lane-dense in E)
            ],
        )
        return pl.pallas_call(
            kernel,
            out_shape=(
                jax.ShapeDtypeStruct((B, num_heads, Lq, Lk), attn_dtype),
                jax.ShapeDtypeStruct((B * Lq, E), jnp.float32),
            ),
            grid_spec=grid_spec,
            compiler_params=pltpu.CompilerParams(
                dimension_semantics=("parallel",),
                vmem_limit_bytes=vmem_limit),
        )(q2, k2, v2,
          params["wq"], params["bq"],
          params["wk"], params["bk"],
          params["wv"], params["bv"],
          params["wo"], params["bo"])

    try:
        attn, out2 = run(single_buffer_weights=True)
        jax.block_until_ready((attn, out2))
    except Exception:
        # Single-buffered weight blocks not supported here; use defaults.
        attn, out2 = run(single_buffer_weights=False)

    return attn, out2.reshape(B, Lq, E)


# ---------------------------------------------------------------------------
# Pure-JAX reference (matches the PyTorch forward, eval / mask=None)
# ---------------------------------------------------------------------------
def _reference(query, key, value, params, num_heads):
    B, Lq, E = query.shape
    hd = E // num_heads

    def lin(x, w, b):
        return x @ w + b

    q = lin(query, params["wq"], params["bq"]).reshape(
        B, Lq, num_heads, hd).transpose(0, 2, 1, 3)
    k = lin(key, params["wk"], params["bk"]).reshape(
        B, -1, num_heads, hd).transpose(0, 2, 1, 3)
    v = lin(value, params["wv"], params["bv"]).reshape(
        B, -1, num_heads, hd).transpose(0, 2, 1, 3)
    scores = jnp.einsum("bhqd,bhkd->bhqk", q, k) * hd ** (-0.5)
    attn = jax.nn.softmax(scores, axis=-1)
    ctx = jnp.einsum("bhqk,bhkd->bhqd", attn, v).transpose(
        0, 2, 1, 3).reshape(B, Lq, E)
    out = ctx @ params["wo"] + params["bo"]
    return attn, out


if __name__ == "__main__":
    # Small shapes consistent with the module: embed_dim=32, num_heads=4.
    B, Lq, Lk, E, H = 2, 8, 16, 32, 4

    key0 = jax.random.PRNGKey(0)
    ks = jax.random.split(key0, 12)

    def init_w(k):
        return jax.random.normal(k, (E, E), jnp.float32) * 0.1

    def init_b(k):
        return jax.random.normal(k, (1, E), jnp.float32) * 0.01

    params = {
        "wq": init_w(ks[0]), "bq": init_b(ks[1]),
        "wk": init_w(ks[2]), "bk": init_b(ks[3]),
        "wv": init_w(ks[4]), "bv": init_b(ks[5]),
        "wo": init_w(ks[6]), "bo": init_b(ks[7]),
    }
    prepared = prepare_params(params, H)      # one-time host-side scaling fold

    query = jax.random.normal(ks[8], (B, Lq, E), jnp.float32)
    key_in = jax.random.normal(ks[9], (B, Lk, E), jnp.float32)
    value = jax.random.normal(ks[10], (B, Lk, E), jnp.float32)

    attn_gold, out_gold = _reference(query, key_in, value, params, H)

    # Exact path (f32 MXU operands, exact reciprocal): tight tolerance.
    attn_x, out_x = multi_head_history_target_attention(
        query, key_in, value, prepared, num_heads=H, fast_math=False)
    jax.block_until_ready((attn_x, out_x))
    assert jnp.allclose(attn_x, attn_gold, atol=1e-5, rtol=1e-5)
    assert jnp.allclose(out_x, out_gold, atol=1e-5, rtol=1e-5)

    # Fast path (bf16 MXU operands, approx reciprocal): loose tolerance.
    attn_f, out_f = multi_head_history_target_attention(
        query, key_in, value, prepared, num_heads=H, fast_math=True)
    jax.block_until_ready((attn_f, out_f))
    assert jnp.allclose(attn_f, attn_gold, atol=5e-2, rtol=5e-2)
    assert jnp.allclose(out_f, out_gold, atol=5e-2, rtol=5e-2)

    print("KERNEL_OK")
</pallas_src>

<mosaic_0001>
module attributes {stable_mosaic.version = 11 : i64} {
  func.func @_mha_kernel(%arg0: i32, %arg1: memref<16x32xf32, #tpu.memory_space<vmem>>, %arg2: memref<32x32xf32, #tpu.memory_space<vmem>>, %arg3: memref<32x32xf32, #tpu.memory_space<vmem>>, %arg4: memref<32x32xf32, #tpu.memory_space<vmem>>, %arg5: memref<1x32xf32, #tpu.memory_space<vmem>>, %arg6: memref<32x32xf32, #tpu.memory_space<vmem>>, %arg7: memref<1x32xf32, #tpu.memory_space<vmem>>, %arg8: memref<32x32xf32, #tpu.memory_space<vmem>>, %arg9: memref<1x32xf32, #tpu.memory_space<vmem>>, %arg10: memref<32x32xf32, #tpu.memory_space<vmem>>, %arg11: memref<1x32xf32, #tpu.memory_space<vmem>>, %arg12: memref<2x4x8x16xf32, #tpu.memory_space<vmem>>, %arg13: memref<16x32xf32, #tpu.memory_space<vmem>>) attributes {dimension_semantics = [#tpu.dimension_semantics<parallel>], iteration_bounds = array<i64: 1>, scalar_prefetch = 0 : i64, scratch_operands = 0 : i64, tpu.core_type = #tpu.core_type<tc>, window_params = [{transform_indices = @transform_0, window_bounds = array<i64: 16, 32>}, {transform_indices = @transform_1, window_bounds = array<i64: 32, 32>}, {transform_indices = @transform_2, window_bounds = array<i64: 32, 32>}, {pipeline_mode = #tpu.pipeline_mode<synchronous>, transform_indices = @transform_3, window_bounds = array<i64: 32, 32>}, {pipeline_mode = #tpu.pipeline_mode<synchronous>, transform_indices = @transform_4, window_bounds = array<i64: 1, 32>}, {pipeline_mode = #tpu.pipeline_mode<synchronous>, transform_indices = @transform_5, window_bounds = array<i64: 32, 32>}, {pipeline_mode = #tpu.pipeline_mode<synchronous>, transform_indices = @transform_6, window_bounds = array<i64: 1, 32>}, {pipeline_mode = #tpu.pipeline_mode<synchronous>, transform_indices = @transform_7, window_bounds = array<i64: 32, 32>}, {pipeline_mode = #tpu.pipeline_mode<synchronous>, transform_indices = @transform_8, window_bounds = array<i64: 1, 32>}, {pipeline_mode = #tpu.pipeline_mode<synchronous>, transform_indices = @transform_9, window_bounds = array<i64: 32, 32>}, {pipeline_mode = #tpu.pipeline_mode<synchronous>, transform_indices = @transform_10, window_bounds = array<i64: 1, 32>}, {transform_indices = @transform_11, window_bounds = array<i64: 2, 4, 8, 16>}, {transform_indices = @transform_12, window_bounds = array<i64: 16, 32>}]} {
    %c0 = arith.constant 0 : index
    %c0_0 = arith.constant 0 : index
    %0 = vector.load %arg1[%c0, %c0_0] : memref<16x32xf32, #tpu.memory_space<vmem>>, vector<16x32xf32>
    %c0_1 = arith.constant 0 : index
    %c0_2 = arith.constant 0 : index
    %1 = vector.load %arg4[%c0_1, %c0_2] : memref<32x32xf32, #tpu.memory_space<vmem>>, vector<32x32xf32>
    %cst = arith.constant dense<0.000000e+00> : vector<16x32xf32>
    %2 = tpu.matmul %0, %1, %cst {dimension_numbers = #tpu.dot_dimension_numbers<[1], [0], [0], [1], [0, 0, 1, 1], [], []>} : vector<16x32xf32>, vector<32x32xf32>, vector<16x32xf32> -> vector<16x32xf32>
    %c0_3 = arith.constant 0 : index
    %c0_4 = arith.constant 0 : index
    %3 = vector.load %arg5[%c0_3, %c0_4] : memref<1x32xf32, #tpu.memory_space<vmem>>, vector<1x32xf32>
    %4 = vector.broadcast %3 : vector<1x32xf32> to vector<16x32xf32>
    %5 = arith.addf %2, %4 : vector<16x32xf32>
    %c0_5 = arith.constant 0 : index
    %c0_6 = arith.constant 0 : index
    %6 = vector.load %arg2[%c0_5, %c0_6] : memref<32x32xf32, #tpu.memory_space<vmem>>, vector<32x32xf32>
    %c0_7 = arith.constant 0 : index
    %c0_8 = arith.constant 0 : index
    %7 = vector.load %arg6[%c0_7, %c0_8] : memref<32x32xf32, #tpu.memory_space<vmem>>, vector<32x32xf32>
    %cst_9 = arith.constant dense<0.000000e+00> : vector<32x32xf32>
    %8 = tpu.matmul %6, %7, %cst_9 {dimension_numbers = #tpu.dot_dimension_numbers<[1], [0], [0], [1], [0, 0, 1, 1], [], []>} : vector<32x32xf32>, vector<32x32xf32>, vector<32x32xf32> -> vector<32x32xf32>
    %c0_10 = arith.constant 0 : index
    %c0_11 = arith.constant 0 : index
    %9 = vector.load %arg7[%c0_10, %c0_11] : memref<1x32xf32, #tpu.memory_space<vmem>>, vector<1x32xf32>
    %10 = vector.broadcast %9 : vector<1x32xf32> to vector<32x32xf32>
    %11 = arith.addf %8, %10 : vector<32x32xf32>
    %c0_12 = arith.constant 0 : index
    %c0_13 = arith.constant 0 : index
    %12 = vector.load %arg3[%c0_12, %c0_13] : memref<32x32xf32, #tpu.memory_space<vmem>>, vector<32x32xf32>
    %c0_14 = arith.constant 0 : index
    %c0_15 = arith.constant 0 : index
    %13 = vector.load %arg8[%c0_14, %c0_15] : memref<32x32xf32, #tpu.memory_space<vmem>>, vector<32x32xf32>
    %cst_16 = arith.constant dense<0.000000e+00> : vector<32x32xf32>
    %14 = tpu.matmul %12, %13, %cst_16 {dimension_numbers = #tpu.dot_dimension_numbers<[1], [0], [0], [1], [0, 0, 1, 1], [], []>} : vector<32x32xf32>, vector<32x32xf32>, vector<32x32xf32> -> vector<32x32xf32>
    %c0_17 = arith.constant 0 : index
    %c0_18 = arith.constant 0 : index
    %15 = vector.load %arg9[%c0_17, %c0_18] : memref<1x32xf32, #tpu.memory_space<vmem>>, vector<1x32xf32>
    %16 = vector.broadcast %15 : vector<1x32xf32> to vector<32x32xf32>
    %17 = arith.addf %14, %16 : vector<32x32xf32>
    %18 = vector.shape_cast %5 : vector<16x32xf32> to vector<2x8x32xf32>
    %19 = vector.shape_cast %11 : vector<32x32xf32> to vector<2x16x32xf32>
    %20 = vector.shape_cast %17 : vector<32x32xf32> to vector<2x16x32xf32>
    %21 = vector.extract_strided_slice %18 {offsets = [0, 0, 0], sizes = [2, 8, 8], strides = [1, 1, 1]} : vector<2x8x32xf32> to vector<2x8x8xf32>
    %22 = vector.extract_strided_slice %19 {offsets = [0, 0, 0], sizes = [2, 16, 8], strides = [1, 1, 1]} : vector<2x16x32xf32> to vector<2x16x8xf32>
    %23 = vector.extract_strided_slice %20 {offsets = [0, 0, 0], sizes = [2, 16, 8], strides = [1, 1, 1]} : vector<2x16x32xf32> to vector<2x16x8xf32>
    "tpu.trace_start"() <{level = 10 : i32, message = "bqd,bkd->bqk"}> : () -> ()
    %cst_19 = arith.constant dense<0.000000e+00> : vector<2x8x16xf32>
    %24 = tpu.matmul %21, %22, %cst_19 {dimension_numbers = #tpu.dot_dimension_numbers<[2], [2], [1], [1], [0, 0, 0, 1, 1, 1], [0], [0]>} : vector<2x8x8xf32>, vector<2x16x8xf32>, vector<2x8x16xf32> -> vector<2x8x16xf32>
    "tpu.trace_stop"() : () -> ()
    %cst_20 = arith.constant dense<0xFF800000> : vector<2x8xf32>
    %25 = vector.multi_reduction <maximumf>, %24, %cst_20 [2] : vector<2x8x16xf32> to vector<2x8xf32>
    %26 = vector.shape_cast %25 : vector<2x8xf32> to vector<2x8x1xf32>
    %27 = vector.broadcast %26 : vector<2x8x1xf32> to vector<2x8x16xf32>
    %28 = arith.subf %24, %27 : vector<2x8x16xf32>
    %29 = math.exp %28 : vector<2x8x16xf32>
    %cst_21 = arith.constant dense<0.000000e+00> : vector<2x8xf32>
    %30 = vector.multi_reduction <add>, %29, %cst_21 [2] : vector<2x8x16xf32> to vector<2x8xf32>
    %31 = vector.shape_cast %30 : vector<2x8xf32> to vector<2x8x1xf32>
    %32 = tpu.reciprocal %31 : vector<2x8x1xf32> -> vector<2x8x1xf32>
    %33 = vector.broadcast %32 : vector<2x8x1xf32> to vector<2x8x16xf32>
    %34 = arith.mulf %29, %33 : vector<2x8x16xf32>
    %c0_22 = arith.constant 0 : index
    %c0_23 = arith.constant 0 : index
    %c0_24 = arith.constant 0 : index
    %c0_25 = arith.constant 0 : index
    %35 = vector.load %arg12[%c0_22, %c0_23, %c0_24, %c0_25] : memref<2x4x8x16xf32, #tpu.memory_space<vmem>>, vector<2x1x8x16xf32>
    %36 = vector.shape_cast %35 : vector<2x1x8x16xf32> to vector<2x8x16xf32>
    %37 = vector.shape_cast %34 : vector<2x8x16xf32> to vector<2x1x8x16xf32>
    tpu.vector_store %arg12[%c0_22, %c0_23, %c0_24, %c0_25], %37 {strides = array<i32>} : memref<2x4x8x16xf32, #tpu.memory_space<vmem>>, vector<2x1x8x16xf32>,
    "tpu.trace_start"() <{level = 10 : i32, message = "bqk,bkd->bqd"}> : () -> ()
    %cst_26 = arith.constant dense<0.000000e+00> : vector<2x8x8xf32>
    %38 = tpu.matmul %34, %23, %cst_26 {dimension_numbers = #tpu.dot_dimension_numbers<[2], [1], [1], [2], [0, 0, 0, 1, 1, 2], [0], [0]>} : vector<2x8x16xf32>, vector<2x16x8xf32>, vector<2x8x8xf32> -> vector<2x8x8xf32>
    "tpu.trace_stop"() : () -> ()
    %39 = vector.extract_strided_slice %18 {offsets = [0, 0, 8], sizes = [2, 8, 8], strides = [1, 1, 1]} : vector<2x8x32xf32> to vector<2x8x8xf32>
    %40 = vector.extract_strided_slice %19 {offsets = [0, 0, 8], sizes = [2, 16, 8], strides = [1, 1, 1]} : vector<2x16x32xf32> to vector<2x16x8xf32>
    %41 = vector.extract_strided_slice %20 {offsets = [0, 0, 8], sizes = [2, 16, 8], strides = [1, 1, 1]} : vector<2x16x32xf32> to vector<2x16x8xf32>
    "tpu.trace_start"() <{level = 10 : i32, message = "bqd,bkd->bqk"}> : () -> ()
    %cst_27 = arith.constant dense<0.000000e+00> : vector<2x8x16xf32>
    %42 = tpu.matmul %39, %40, %cst_27 {dimension_numbers = #tpu.dot_dimension_numbers<[2], [2], [1], [1], [0, 0, 0, 1, 1, 1], [0], [0]>} : vector<2x8x8xf32>, vector<2x16x8xf32>, vector<2x8x16xf32> -> vector<2x8x16xf32>
    "tpu.trace_stop"() : () -> ()
    %cst_28 = arith.constant dense<0xFF800000> : vector<2x8xf32>
    %43 = vector.multi_reduction <maximumf>, %42, %cst_28 [2] : vector<2x8x16xf32> to vector<2x8xf32>
    %44 = vector.shape_cast %43 : vector<2x8xf32> to vector<2x8x1xf32>
    %45 = vector.broadcast %44 : vector<2x8x1xf32> to vector<2x8x16xf32>
    %46 = arith.subf %42, %45 : vector<2x8x16xf32>
    %47 = math.exp %46 : vector<2x8x16xf32>
    %cst_29 = arith.constant dense<0.000000e+00> : vector<2x8xf32>
    %48 = vector.multi_reduction <add>, %47, %cst_29 [2] : vector<2x8x16xf32> to vector<2x8xf32>
    %49 = vector.shape_cast %48 : vector<2x8xf32> to vector<2x8x1xf32>
    %50 = tpu.reciprocal %49 : vector<2x8x1xf32> -> vector<2x8x1xf32>
    %51 = vector.broadcast %50 : vector<2x8x1xf32> to vector<2x8x16xf32>
    %52 = arith.mulf %47, %51 : vector<2x8x16xf32>
    %c0_30 = arith.constant 0 : index
    %c1 = arith.constant 1 : index
    %c0_31 = arith.constant 0 : index
    %c0_32 = arith.constant 0 : index
    %53 = vector.load %arg12[%c0_30, %c1, %c0_31, %c0_32] : memref<2x4x8x16xf32, #tpu.memory_space<vmem>>, vector<2x1x8x16xf32>
    %54 = vector.shape_cast %53 : vector<2x1x8x16xf32> to vector<2x8x16xf32>
    %55 = vector.shape_cast %52 : vector<2x8x16xf32> to vector<2x1x8x16xf32>
    tpu.vector_store %arg12[%c0_30, %c1, %c0_31, %c0_32], %55 {strides = array<i32>} : memref<2x4x8x16xf32, #tpu.memory_space<vmem>>, vector<2x1x8x16xf32>,
    "tpu.trace_start"() <{level = 10 : i32, message = "bqk,bkd->bqd"}> : () -> ()
    %cst_33 = arith.constant dense<0.000000e+00> : vector<2x8x8xf32>
    %56 = tpu.matmul %52, %41, %cst_33 {dimension_numbers = #tpu.dot_dimension_numbers<[2], [1], [1], [2], [0, 0, 0, 1, 1, 2], [0], [0]>} : vector<2x8x16xf32>, vector<2x16x8xf32>, vector<2x8x8xf32> -> vector<2x8x8xf32>
    "tpu.trace_stop"() : () -> ()
    %57 = vector.extract_strided_slice %18 {offsets = [0, 0, 16], sizes = [2, 8, 8], strides = [1, 1, 1]} : vector<2x8x32xf32> to vector<2x8x8xf32>
    %58 = vector.extract_strided_slice %19 {offsets = [0, 0, 16], sizes = [2, 16, 8], strides = [1, 1, 1]} : vector<2x16x32xf32> to vector<2x16x8xf32>
    %59 = vector.extract_strided_slice %20 {offsets = [0, 0, 16], sizes = [2, 16, 8], strides = [1, 1, 1]} : vector<2x16x32xf32> to vector<2x16x8xf32>
    "tpu.trace_start"() <{level = 10 : i32, message = "bqd,bkd->bqk"}> : () -> ()
    %cst_34 = arith.constant dense<0.000000e+00> : vector<2x8x16xf32>
    %60 = tpu.matmul %57, %58, %cst_34 {dimension_numbers = #tpu.dot_dimension_numbers<[2], [2], [1], [1], [0, 0, 0, 1, 1, 1], [0], [0]>} : vector<2x8x8xf32>, vector<2x16x8xf32>, vector<2x8x16xf32> -> vector<2x8x16xf32>
    "tpu.trace_stop"() : () -> ()
    %cst_35 = arith.constant dense<0xFF800000> : vector<2x8xf32>
    %61 = vector.multi_reduction <maximumf>, %60, %cst_35 [2] : vector<2x8x16xf32> to vector<2x8xf32>
    %62 = vector.shape_cast %61 : vector<2x8xf32> to vector<2x8x1xf32>
    %63 = vector.broadcast %62 : vector<2x8x1xf32> to vector<2x8x16xf32>
    %64 = arith.subf %60, %63 : vector<2x8x16xf32>
    %65 = math.exp %64 : vector<2x8x16xf32>
    %cst_36 = arith.constant dense<0.000000e+00> : vector<2x8xf32>
    %66 = vector.multi_reduction <add>, %65, %cst_36 [2] : vector<2x8x16xf32> to vector<2x8xf32>
    %67 = vector.shape_cast %66 : vector<2x8xf32> to vector<2x8x1xf32>
    %68 = tpu.reciprocal %67 : vector<2x8x1xf32> -> vector<2x8x1xf32>
    %69 = vector.broadcast %68 : vector<2x8x1xf32> to vector<2x8x16xf32>
    %70 = arith.mulf %65, %69 : vector<2x8x16xf32>
    %c0_37 = arith.constant 0 : index
    %c2 = arith.constant 2 : index
    %c0_38 = arith.constant 0 : index
    %c0_39 = arith.constant 0 : index
    %71 = vector.load %arg12[%c0_37, %c2, %c0_38, %c0_39] : memref<2x4x8x16xf32, #tpu.memory_space<vmem>>, vector<2x1x8x16xf32>
    %72 = vector.shape_cast %71 : vector<2x1x8x16xf32> to vector<2x8x16xf32>
    %73 = vector.shape_cast %70 : vector<2x8x16xf32> to vector<2x1x8x16xf32>
    tpu.vector_store %arg12[%c0_37, %c2, %c0_38, %c0_39], %73 {strides = array<i32>} : memref<2x4x8x16xf32, #tpu.memory_space<vmem>>, vector<2x1x8x16xf32>,
    "tpu.trace_start"() <{level = 10 : i32, message = "bqk,bkd->bqd"}> : () -> ()
    %cst_40 = arith.constant dense<0.000000e+00> : vector<2x8x8xf32>
    %74 = tpu.matmul %70, %59, %cst_40 {dimension_numbers = #tpu.dot_dimension_numbers<[2], [1], [1], [2], [0, 0, 0, 1, 1, 2], [0], [0]>} : vector<2x8x16xf32>, vector<2x16x8xf32>, vector<2x8x8xf32> -> vector<2x8x8xf32>
    "tpu.trace_stop"() : () -> ()
    %75 = vector.extract_strided_slice %18 {offsets = [0, 0, 24], sizes = [2, 8, 8], strides = [1, 1, 1]} : vector<2x8x32xf32> to vector<2x8x8xf32>
    %76 = vector.extract_strided_slice %19 {offsets = [0, 0, 24], sizes = [2, 16, 8], strides = [1, 1, 1]} : vector<2x16x32xf32> to vector<2x16x8xf32>
    %77 = vector.extract_strided_slice %20 {offsets = [0, 0, 24], sizes = [2, 16, 8], strides = [1, 1, 1]} : vector<2x16x32xf32> to vector<2x16x8xf32>
    "tpu.trace_start"() <{level = 10 : i32, message = "bqd,bkd->bqk"}> : () -> ()
    %cst_41 = arith.constant dense<0.000000e+00> : vector<2x8x16xf32>
    %78 = tpu.matmul %75, %76, %cst_41 {dimension_numbers = #tpu.dot_dimension_numbers<[2], [2], [1], [1], [0, 0, 0, 1, 1, 1], [0], [0]>} : vector<2x8x8xf32>, vector<2x16x8xf32>, vector<2x8x16xf32> -> vector<2x8x16xf32>
    "tpu.trace_stop"() : () -> ()
    %cst_42 = arith.constant dense<0xFF800000> : vector<2x8xf32>
    %79 = vector.multi_reduction <maximumf>, %78, %cst_42 [2] : vector<2x8x16xf32> to vector<2x8xf32>
    %80 = vector.shape_cast %79 : vector<2x8xf32> to vector<2x8x1xf32>
    %81 = vector.broadcast %80 : vector<2x8x1xf32> to vector<2x8x16xf32>
    %82 = arith.subf %78, %81 : vector<2x8x16xf32>
    %83 = math.exp %82 : vector<2x8x16xf32>
    %cst_43 = arith.constant dense<0.000000e+00> : vector<2x8xf32>
    %84 = vector.multi_reduction <add>, %83, %cst_43 [2] : vector<2x8x16xf32> to vector<2x8xf32>
    %85 = vector.shape_cast %84 : vector<2x8xf32> to vector<2x8x1xf32>
    %86 = tpu.reciprocal %85 : vector<2x8x1xf32> -> vector<2x8x1xf32>
    %87 = vector.broadcast %86 : vector<2x8x1xf32> to vector<2x8x16xf32>
    %88 = arith.mulf %83, %87 : vector<2x8x16xf32>
    %c0_44 = arith.constant 0 : index
    %c3 = arith.constant 3 : index
    %c0_45 = arith.constant 0 : index
    %c0_46 = arith.constant 0 : index
    %89 = vector.load %arg12[%c0_44, %c3, %c0_45, %c0_46] : memref<2x4x8x16xf32, #tpu.memory_space<vmem>>, vector<2x1x8x16xf32>
    %90 = vector.shape_cast %89 : vector<2x1x8x16xf32> to vector<2x8x16xf32>
    %91 = vector.shape_cast %88 : vector<2x8x16xf32> to vector<2x1x8x16xf32>
    tpu.vector_store %arg12[%c0_44, %c3, %c0_45, %c0_46], %91 {strides = array<i32>} : memref<2x4x8x16xf32, #tpu.memory_space<vmem>>, vector<2x1x8x16xf32>,
    "tpu.trace_start"() <{level = 10 : i32, message = "bqk,bkd->bqd"}> : () -> ()
    %cst_47 = arith.constant dense<0.000000e+00> : vector<2x8x8xf32>
    %92 = tpu.matmul %88, %77, %cst_47 {dimension_numbers = #tpu.dot_dimension_numbers<[2], [1], [1], [2], [0, 0, 0, 1, 1, 2], [0], [0]>} : vector<2x8x16xf32>, vector<2x16x8xf32>, vector<2x8x8xf32> -> vector<2x8x8xf32>
    "tpu.trace_stop"() : () -> ()
    %93 = tpu.concatenate %38, %56, %74, %92 in 2 : vector<2x8x8xf32>, vector<2x8x8xf32>, vector<2x8x8xf32>, vector<2x8x8xf32> -> vector<2x8x32xf32>
    %94 = vector.shape_cast %93 : vector<2x8x32xf32> to vector<16x32xf32>
    %c0_48 = arith.constant 0 : index
    %c0_49 = arith.constant 0 : index
    %95 = vector.load %arg10[%c0_48, %c0_49] : memref<32x32xf32, #tpu.memory_space<vmem>>, vector<32x32xf32>
    %cst_50 = arith.constant dense<0.000000e+00> : vector<16x32xf32>
    %96 = tpu.matmul %94, %95, %cst_50 {dimension_numbers = #tpu.dot_dimension_numbers<[1], [0], [0], [1], [0, 0, 1, 1], [], []>} : vector<16x32xf32>, vector<32x32xf32>, vector<16x32xf32> -> vector<16x32xf32>
    %c0_51 = arith.constant 0 : index
    %c0_52 = arith.constant 0 : index
    %97 = vector.load %arg11[%c0_51, %c0_52] : memref<1x32xf32, #tpu.memory_space<vmem>>, vector<1x32xf32>
    %98 = vector.broadcast %97 : vector<1x32xf32> to vector<16x32xf32>
    %99 = arith.addf %96, %98 : vector<16x32xf32>
    %c0_53 = arith.constant 0 : index
    %c0_54 = arith.constant 0 : index
    %100 = vector.load %arg13[%c0_53, %c0_54] : memref<16x32xf32, #tpu.memory_space<vmem>>, vector<16x32xf32>
    tpu.vector_store %arg13[%c0_53, %c0_54], %99 {strides = array<i32>} : memref<16x32xf32, #tpu.memory_space<vmem>>, vector<16x32xf32>,
    return
  }
  func.func @transform_0(%arg0: i32) -> (i32, i32) {
    %c0_i32 = arith.constant 0 : i32
    %c0_i32_0 = arith.constant 0 : i32
    return %arg0, %c0_i32 : i32, i32
  }
  func.func @transform_1(%arg0: i32) -> (i32, i32) {
    %c0_i32 = arith.constant 0 : i32
    %c0_i32_0 = arith.constant 0 : i32
    return %arg0, %c0_i32 : i32, i32
  }
  func.func @transform_2(%arg0: i32) -> (i32, i32) {
    %c0_i32 = arith.constant 0 : i32
    %c0_i32_0 = arith.constant 0 : i32
    return %arg0, %c0_i32 : i32, i32
  }
  func.func @transform_3(%arg0: i32) -> (i32, i32) {
    %c0_i32 = arith.constant 0 : i32
    %c0_i32_0 = arith.constant 0 : i32
    %c0_i32_1 = arith.constant 0 : i32
    return %c0_i32, %c0_i32_0 : i32, i32
  }
  func.func @transform_4(%arg0: i32) -> (i32, i32) {
    %c0_i32 = arith.constant 0 : i32
    %c0_i32_0 = arith.constant 0 : i32
    %c0_i32_1 = arith.constant 0 : i32
    return %c0_i32, %c0_i32_0 : i32, i32
  }
  func.func @transform_5(%arg0: i32) -> (i32, i32) {
    %c0_i32 = arith.constant 0 : i32
    %c0_i32_0 = arith.constant 0 : i32
    %c0_i32_1 = arith.constant 0 : i32
    return %c0_i32, %c0_i32_0 : i32, i32
  }
  func.func @transform_6(%arg0: i32) -> (i32, i32) {
    %c0_i32 = arith.constant 0 : i32
    %c0_i32_0 = arith.constant 0 : i32
    %c0_i32_1 = arith.constant 0 : i32
    return %c0_i32, %c0_i32_0 : i32, i32
  }
  func.func @transform_7(%arg0: i32) -> (i32, i32) {
    %c0_i32 = arith.constant 0 : i32
    %c0_i32_0 = arith.constant 0 : i32
    %c0_i32_1 = arith.constant 0 : i32
    return %c0_i32, %c0_i32_0 : i32, i32
  }
  func.func @transform_8(%arg0: i32) -> (i32, i32) {
    %c0_i32 = arith.constant 0 : i32
    %c0_i32_0 = arith.constant 0 : i32
    %c0_i32_1 = arith.constant 0 : i32
    return %c0_i32, %c0_i32_0 : i32, i32
  }
  func.func @transform_9(%arg0: i32) -> (i32, i32) {
    %c0_i32 = arith.constant 0 : i32
    %c0_i32_0 = arith.constant 0 : i32
    %c0_i32_1 = arith.constant 0 : i32
    return %c0_i32, %c0_i32_0 : i32, i32
  }
  func.func @transform_10(%arg0: i32) -> (i32, i32) {
    %c0_i32 = arith.constant 0 : i32
    %c0_i32_0 = arith.constant 0 : i32
    %c0_i32_1 = arith.constant 0 : i32
    return %c0_i32, %c0_i32_0 : i32, i32
  }
  func.func @transform_11(%arg0: i32) -> (i32, i32, i32, i32) {
    %c0_i32 = arith.constant 0 : i32
    %c0_i32_0 = arith.constant 0 : i32
    %c0_i32_1 = arith.constant 0 : i32
    %c0_i32_2 = arith.constant 0 : i32
    return %arg0, %c0_i32, %c0_i32_0, %c0_i32_1 : i32, i32, i32, i32
  }
  func.func @transform_12(%arg0: i32) -> (i32, i32) {
    %c0_i32 = arith.constant 0 : i32
    %c0_i32_0 = arith.constant 0 : i32
    return %arg0, %c0_i32 : i32, i32
  }
}

module attributes {stable_mosaic.version = 11 : i64} {
  func.func @_mha_kernel(%arg0: i32, %arg1: memref<16x32xf32, #tpu.memory_space<vmem>>, %arg2: memref<32x32xf32, #tpu.memory_space<vmem>>, %arg3: memref<32x32xf32, #tpu.memory_space<vmem>>, %arg4: memref<32x32xf32, #tpu.memory_space<vmem>>, %arg5: memref<1x32xf32, #tpu.memory_space<vmem>>, %arg6: memref<32x32xf32, #tpu.memory_space<vmem>>, %arg7: memref<1x32xf32, #tpu.memory_space<vmem>>, %arg8: memref<32x32xf32, #tpu.memory_space<vmem>>, %arg9: memref<1x32xf32, #tpu.memory_space<vmem>>, %arg10: memref<32x32xf32, #tpu.memory_space<vmem>>, %arg11: memref<1x32xf32, #tpu.memory_space<vmem>>, %arg12: memref<2x4x8x16xf32, #tpu.memory_space<vmem>>, %arg13: memref<16x32xf32, #tpu.memory_space<vmem>>) attributes {dimension_semantics = [#tpu.dimension_semantics<parallel>], iteration_bounds = array<i64: 1>, scalar_prefetch = 0 : i64, scratch_operands = 0 : i64, tpu.core_type = #tpu.core_type<tc>, window_params = [{transform_indices = @transform_0, window_bounds = array<i64: 16, 32>}, {transform_indices = @transform_1, window_bounds = array<i64: 32, 32>}, {transform_indices = @transform_2, window_bounds = array<i64: 32, 32>}, {pipeline_mode = #tpu.pipeline_mode<synchronous>, transform_indices = @transform_3, window_bounds = array<i64: 32, 32>}, {pipeline_mode = #tpu.pipeline_mode<synchronous>, transform_indices = @transform_4, window_bounds = array<i64: 1, 32>}, {pipeline_mode = #tpu.pipeline_mode<synchronous>, transform_indices = @transform_5, window_bounds = array<i64: 32, 32>}, {pipeline_mode = #tpu.pipeline_mode<synchronous>, transform_indices = @transform_6, window_bounds = array<i64: 1, 32>}, {pipeline_mode = #tpu.pipeline_mode<synchronous>, transform_indices = @transform_7, window_bounds = array<i64: 32, 32>}, {pipeline_mode = #tpu.pipeline_mode<synchronous>, transform_indices = @transform_8, window_bounds = array<i64: 1, 32>}, {pipeline_mode = #tpu.pipeline_mode<synchronous>, transform_indices = @transform_9, window_bounds = array<i64: 32, 32>}, {pipeline_mode = #tpu.pipeline_mode<synchronous>, transform_indices = @transform_10, window_bounds = array<i64: 1, 32>}, {transform_indices = @transform_11, window_bounds = array<i64: 2, 4, 8, 16>}, {transform_indices = @transform_12, window_bounds = array<i64: 16, 32>}]} {
    %c0 = arith.constant 0 : index
    %c0_0 = arith.constant 0 : index
    %0 = vector.load %arg1[%c0, %c0_0] : memref<16x32xf32, #tpu.memory_space<vmem>>, vector<16x32xf32>
    %c0_1 = arith.constant 0 : index
    %c0_2 = arith.constant 0 : index
    %1 = vector.load %arg4[%c0_1, %c0_2] : memref<32x32xf32, #tpu.memory_space<vmem>>, vector<32x32xf32>
    %cst = arith.constant dense<0.000000e+00> : vector<16x32xf32>
    %2 = tpu.matmul %0, %1, %cst {dimension_numbers = #tpu.dot_dimension_numbers<[1], [0], [0], [1], [0, 0, 1, 1], [], []>} : vector<16x32xf32>, vector<32x32xf32>, vector<16x32xf32> -> vector<16x32xf32>
    %c0_3 = arith.constant 0 : index
    %c0_4 = arith.constant 0 : index
    %3 = vector.load %arg5[%c0_3, %c0_4] : memref<1x32xf32, #tpu.memory_space<vmem>>, vector<1x32xf32>
    %4 = vector.broadcast %3 : vector<1x32xf32> to vector<16x32xf32>
    %5 = arith.addf %2, %4 : vector<16x32xf32>
    %c0_5 = arith.constant 0 : index
    %c0_6 = arith.constant 0 : index
    %6 = vector.load %arg2[%c0_5, %c0_6] : memref<32x32xf32, #tpu.memory_space<vmem>>, vector<32x32xf32>
    %c0_7 = arith.constant 0 : index
    %c0_8 = arith.constant 0 : index
    %7 = vector.load %arg6[%c0_7, %c0_8] : memref<32x32xf32, #tpu.memory_space<vmem>>, vector<32x32xf32>
    %cst_9 = arith.constant dense<0.000000e+00> : vector<32x32xf32>
    %8 = tpu.matmul %6, %7, %cst_9 {dimension_numbers = #tpu.dot_dimension_numbers<[1], [0], [0], [1], [0, 0, 1, 1], [], []>} : vector<32x32xf32>, vector<32x32xf32>, vector<32x32xf32> -> vector<32x32xf32>
    %c0_10 = arith.constant 0 : index
    %c0_11 = arith.constant 0 : index
    %9 = vector.load %arg7[%c0_10, %c0_11] : memref<1x32xf32, #tpu.memory_space<vmem>>, vector<1x32xf32>
    %10 = vector.broadcast %9 : vector<1x32xf32> to vector<32x32xf32>
    %11 = arith.addf %8, %10 : vector<32x32xf32>
    %c0_12 = arith.constant 0 : index
    %c0_13 = arith.constant 0 : index
    %12 = vector.load %arg3[%c0_12, %c0_13] : memref<32x32xf32, #tpu.memory_space<vmem>>, vector<32x32xf32>
    %c0_14 = arith.constant 0 : index
    %c0_15 = arith.constant 0 : index
    %13 = vector.load %arg8[%c0_14, %c0_15] : memref<32x32xf32, #tpu.memory_space<vmem>>, vector<32x32xf32>
    %cst_16 = arith.constant dense<0.000000e+00> : vector<32x32xf32>
    %14 = tpu.matmul %12, %13, %cst_16 {dimension_numbers = #tpu.dot_dimension_numbers<[1], [0], [0], [1], [0, 0, 1, 1], [], []>} : vector<32x32xf32>, vector<32x32xf32>, vector<32x32xf32> -> vector<32x32xf32>
    %c0_17 = arith.constant 0 : index
    %c0_18 = arith.constant 0 : index
    %15 = vector.load %arg9[%c0_17, %c0_18] : memref<1x32xf32, #tpu.memory_space<vmem>>, vector<1x32xf32>
    %16 = vector.broadcast %15 : vector<1x32xf32> to vector<32x32xf32>
    %17 = arith.addf %14, %16 : vector<32x32xf32>
    %18 = vector.shape_cast %5 : vector<16x32xf32> to vector<2x8x32xf32>
    %19 = vector.shape_cast %11 : vector<32x32xf32> to vector<2x16x32xf32>
    %20 = vector.shape_cast %17 : vector<32x32xf32> to vector<2x16x32xf32>
    %21 = vector.extract_strided_slice %18 {offsets = [0, 0, 0], sizes = [2, 8, 8], strides = [1, 1, 1]} : vector<2x8x32xf32> to vector<2x8x8xf32>
    %22 = vector.extract_strided_slice %19 {offsets = [0, 0, 0], sizes = [2, 16, 8], strides = [1, 1, 1]} : vector<2x16x32xf32> to vector<2x16x8xf32>
    %23 = vector.extract_strided_slice %20 {offsets = [0, 0, 0], sizes = [2, 16, 8], strides = [1, 1, 1]} : vector<2x16x32xf32> to vector<2x16x8xf32>
    "tpu.trace_start"() <{level = 10 : i32, message = "bqd,bkd->bqk"}> : () -> ()
    %cst_19 = arith.constant dense<0.000000e+00> : vector<2x8x16xf32>
    %24 = tpu.matmul %21, %22, %cst_19 {dimension_numbers = #tpu.dot_dimension_numbers<[2], [2], [1], [1], [0, 0, 0, 1, 1, 1], [0], [0]>} : vector<2x8x8xf32>, vector<2x16x8xf32>, vector<2x8x16xf32> -> vector<2x8x16xf32>
    "tpu.trace_stop"() : () -> ()
    %cst_20 = arith.constant dense<0xFF800000> : vector<2x8xf32>
    %25 = vector.multi_reduction <maximumf>, %24, %cst_20 [2] : vector<2x8x16xf32> to vector<2x8xf32>
    %26 = vector.shape_cast %25 : vector<2x8xf32> to vector<2x8x1xf32>
    %27 = vector.broadcast %26 : vector<2x8x1xf32> to vector<2x8x16xf32>
    %28 = arith.subf %24, %27 : vector<2x8x16xf32>
    %29 = math.exp %28 : vector<2x8x16xf32>
    %cst_21 = arith.constant dense<0.000000e+00> : vector<2x8xf32>
    %30 = vector.multi_reduction <add>, %29, %cst_21 [2] : vector<2x8x16xf32> to vector<2x8xf32>
    %31 = vector.shape_cast %30 : vector<2x8xf32> to vector<2x8x1xf32>
    %32 = tpu.reciprocal %31 : vector<2x8x1xf32> -> vector<2x8x1xf32>
    %33 = vector.broadcast %32 : vector<2x8x1xf32> to vector<2x8x16xf32>
    %34 = arith.mulf %29, %33 : vector<2x8x16xf32>
    %c0_22 = arith.constant 0 : index
    %c0_23 = arith.constant 0 : index
    %c0_24 = arith.constant 0 : index
    %c0_25 = arith.constant 0 : index
    %35 = vector.load %arg12[%c0_22, %c0_23, %c0_24, %c0_25] : memref<2x4x8x16xf32, #tpu.memory_space<vmem>>, vector<2x1x8x16xf32>
    %36 = vector.shape_cast %35 : vector<2x1x8x16xf32> to vector<2x8x16xf32>
    %37 = vector.shape_cast %34 : vector<2x8x16xf32> to vector<2x1x8x16xf32>
    tpu.vector_store %arg12[%c0_22, %c0_23, %c0_24, %c0_25], %37 {strides = array<i32>} : memref<2x4x8x16xf32, #tpu.memory_space<vmem>>, vector<2x1x8x16xf32>,
    "tpu.trace_start"() <{level = 10 : i32, message = "bqk,bkd->bqd"}> : () -> ()
    %cst_26 = arith.constant dense<0.000000e+00> : vector<2x8x8xf32>
    %38 = tpu.matmul %34, %23, %cst_26 {dimension_numbers = #tpu.dot_dimension_numbers<[2], [1], [1], [2], [0, 0, 0, 1, 1, 2], [0], [0]>} : vector<2x8x16xf32>, vector<2x16x8xf32>, vector<2x8x8xf32> -> vector<2x8x8xf32>
    "tpu.trace_stop"() : () -> ()
    %39 = vector.extract_strided_slice %18 {offsets = [0, 0, 8], sizes = [2, 8, 8], strides = [1, 1, 1]} : vector<2x8x32xf32> to vector<2x8x8xf32>
    %40 = vector.extract_strided_slice %19 {offsets = [0, 0, 8], sizes = [2, 16, 8], strides = [1, 1, 1]} : vector<2x16x32xf32> to vector<2x16x8xf32>
    %41 = vector.extract_strided_slice %20 {offsets = [0, 0, 8], sizes = [2, 16, 8], strides = [1, 1, 1]} : vector<2x16x32xf32> to vector<2x16x8xf32>
    "tpu.trace_start"() <{level = 10 : i32, message = "bqd,bkd->bqk"}> : () -> ()
    %cst_27 = arith.constant dense<0.000000e+00> : vector<2x8x16xf32>
    %42 = tpu.matmul %39, %40, %cst_27 {dimension_numbers = #tpu.dot_dimension_numbers<[2], [2], [1], [1], [0, 0, 0, 1, 1, 1], [0], [0]>} : vector<2x8x8xf32>, vector<2x16x8xf32>, vector<2x8x16xf32> -> vector<2x8x16xf32>
    "tpu.trace_stop"() : () -> ()
    %cst_28 = arith.constant dense<0xFF800000> : vector<2x8xf32>
    %43 = vector.multi_reduction <maximumf>, %42, %cst_28 [2] : vector<2x8x16xf32> to vector<2x8xf32>
    %44 = vector.shape_cast %43 : vector<2x8xf32> to vector<2x8x1xf32>
    %45 = vector.broadcast %44 : vector<2x8x1xf32> to vector<2x8x16xf32>
    %46 = arith.subf %42, %45 : vector<2x8x16xf32>
    %47 = math.exp %46 : vector<2x8x16xf32>
    %cst_29 = arith.constant dense<0.000000e+00> : vector<2x8xf32>
    %48 = vector.multi_reduction <add>, %47, %cst_29 [2] : vector<2x8x16xf32> to vector<2x8xf32>
    %49 = vector.shape_cast %48 : vector<2x8xf32> to vector<2x8x1xf32>
    %50 = tpu.reciprocal %49 : vector<2x8x1xf32> -> vector<2x8x1xf32>
    %51 = vector.broadcast %50 : vector<2x8x1xf32> to vector<2x8x16xf32>
    %52 = arith.mulf %47, %51 : vector<2x8x16xf32>
    %c0_30 = arith.constant 0 : index
    %c1 = arith.constant 1 : index
    %c0_31 = arith.constant 0 : index
    %c0_32 = arith.constant 0 : index
    %53 = vector.load %arg12[%c0_30, %c1, %c0_31, %c0_32] : memref<2x4x8x16xf32, #tpu.memory_space<vmem>>, vector<2x1x8x16xf32>
    %54 = vector.shape_cast %53 : vector<2x1x8x16xf32> to vector<2x8x16xf32>
    %55 = vector.shape_cast %52 : vector<2x8x16xf32> to vector<2x1x8x16xf32>
    tpu.vector_store %arg12[%c0_30, %c1, %c0_31, %c0_32], %55 {strides = array<i32>} : memref<2x4x8x16xf32, #tpu.memory_space<vmem>>, vector<2x1x8x16xf32>,
    "tpu.trace_start"() <{level = 10 : i32, message = "bqk,bkd->bqd"}> : () -> ()
    %cst_33 = arith.constant dense<0.000000e+00> : vector<2x8x8xf32>
    %56 = tpu.matmul %52, %41, %cst_33 {dimension_numbers = #tpu.dot_dimension_numbers<[2], [1], [1], [2], [0, 0, 0, 1, 1, 2], [0], [0]>} : vector<2x8x16xf32>, vector<2x16x8xf32>, vector<2x8x8xf32> -> vector<2x8x8xf32>
    "tpu.trace_stop"() : () -> ()
    %57 = vector.extract_strided_slice %18 {offsets = [0, 0, 16], sizes = [2, 8, 8], strides = [1, 1, 1]} : vector<2x8x32xf32> to vector<2x8x8xf32>
    %58 = vector.extract_strided_slice %19 {offsets = [0, 0, 16], sizes = [2, 16, 8], strides = [1, 1, 1]} : vector<2x16x32xf32> to vector<2x16x8xf32>
    %59 = vector.extract_strided_slice %20 {offsets = [0, 0, 16], sizes = [2, 16, 8], strides = [1, 1, 1]} : vector<2x16x32xf32> to vector<2x16x8xf32>
    "tpu.trace_start"() <{level = 10 : i32, message = "bqd,bkd->bqk"}> : () -> ()
    %cst_34 = arith.constant dense<0.000000e+00> : vector<2x8x16xf32>
    %60 = tpu.matmul %57, %58, %cst_34 {dimension_numbers = #tpu.dot_dimension_numbers<[2], [2], [1], [1], [0, 0, 0, 1, 1, 1], [0], [0]>} : vector<2x8x8xf32>, vector<2x16x8xf32>, vector<2x8x16xf32> -> vector<2x8x16xf32>
    "tpu.trace_stop"() : () -> ()
    %cst_35 = arith.constant dense<0xFF800000> : vector<2x8xf32>
    %61 = vector.multi_reduction <maximumf>, %60, %cst_35 [2] : vector<2x8x16xf32> to vector<2x8xf32>
    %62 = vector.shape_cast %61 : vector<2x8xf32> to vector<2x8x1xf32>
    %63 = vector.broadcast %62 : vector<2x8x1xf32> to vector<2x8x16xf32>
    %64 = arith.subf %60, %63 : vector<2x8x16xf32>
    %65 = math.exp %64 : vector<2x8x16xf32>
    %cst_36 = arith.constant dense<0.000000e+00> : vector<2x8xf32>
    %66 = vector.multi_reduction <add>, %65, %cst_36 [2] : vector<2x8x16xf32> to vector<2x8xf32>
    %67 = vector.shape_cast %66 : vector<2x8xf32> to vector<2x8x1xf32>
    %68 = tpu.reciprocal %67 : vector<2x8x1xf32> -> vector<2x8x1xf32>
    %69 = vector.broadcast %68 : vector<2x8x1xf32> to vector<2x8x16xf32>
    %70 = arith.mulf %65, %69 : vector<2x8x16xf32>
    %c0_37 = arith.constant 0 : index
    %c2 = arith.constant 2 : index
    %c0_38 = arith.constant 0 : index
    %c0_39 = arith.constant 0 : index
    %71 = vector.load %arg12[%c0_37, %c2, %c0_38, %c0_39] : memref<2x4x8x16xf32, #tpu.memory_space<vmem>>, vector<2x1x8x16xf32>
    %72 = vector.shape_cast %71 : vector<2x1x8x16xf32> to vector<2x8x16xf32>
    %73 = vector.shape_cast %70 : vector<2x8x16xf32> to vector<2x1x8x16xf32>
    tpu.vector_store %arg12[%c0_37, %c2, %c0_38, %c0_39], %73 {strides = array<i32>} : memref<2x4x8x16xf32, #tpu.memory_space<vmem>>, vector<2x1x8x16xf32>,
    "tpu.trace_start"() <{level = 10 : i32, message = "bqk,bkd->bqd"}> : () -> ()
    %cst_40 = arith.constant dense<0.000000e+00> : vector<2x8x8xf32>
    %74 = tpu.matmul %70, %59, %cst_40 {dimension_numbers = #tpu.dot_dimension_numbers<[2], [1], [1], [2], [0, 0, 0, 1, 1, 2], [0], [0]>} : vector<2x8x16xf32>, vector<2x16x8xf32>, vector<2x8x8xf32> -> vector<2x8x8xf32>
    "tpu.trace_stop"() : () -> ()
    %75 = vector.extract_strided_slice %18 {offsets = [0, 0, 24], sizes = [2, 8, 8], strides = [1, 1, 1]} : vector<2x8x32xf32> to vector<2x8x8xf32>
    %76 = vector.extract_strided_slice %19 {offsets = [0, 0, 24], sizes = [2, 16, 8], strides = [1, 1, 1]} : vector<2x16x32xf32> to vector<2x16x8xf32>
    %77 = vector.extract_strided_slice %20 {offsets = [0, 0, 24], sizes = [2, 16, 8], strides = [1, 1, 1]} : vector<2x16x32xf32> to vector<2x16x8xf32>
    "tpu.trace_start"() <{level = 10 : i32, message = "bqd,bkd->bqk"}> : () -> ()
    %cst_41 = arith.constant dense<0.000000e+00> : vector<2x8x16xf32>
    %78 = tpu.matmul %75, %76, %cst_41 {dimension_numbers = #tpu.dot_dimension_numbers<[2], [2], [1], [1], [0, 0, 0, 1, 1, 1], [0], [0]>} : vector<2x8x8xf32>, vector<2x16x8xf32>, vector<2x8x16xf32> -> vector<2x8x16xf32>
    "tpu.trace_stop"() : () -> ()
    %cst_42 = arith.constant dense<0xFF800000> : vector<2x8xf32>
    %79 = vector.multi_reduction <maximumf>, %78, %cst_42 [2] : vector<2x8x16xf32> to vector<2x8xf32>
    %80 = vector.shape_cast %79 : vector<2x8xf32> to vector<2x8x1xf32>
    %81 = vector.broadcast %80 : vector<2x8x1xf32> to vector<2x8x16xf32>
    %82 = arith.subf %78, %81 : vector<2x8x16xf32>
    %83 = math.exp %82 : vector<2x8x16xf32>
    %cst_43 = arith.constant dense<0.000000e+00> : vector<2x8xf32>
    %84 = vector.multi_reduction <add>, %83, %cst_43 [2] : vector<2x8x16xf32> to vector<2x8xf32>
    %85 = vector.shape_cast %84 : vector<2x8xf32> to vector<2x8x1xf32>
    %86 = tpu.reciprocal %85 : vector<2x8x1xf32> -> vector<2x8x1xf32>
    %87 = vector.broadcast %86 : vector<2x8x1xf32> to vector<2x8x16xf32>
    %88 = arith.mulf %83, %87 : vector<2x8x16xf32>
    %c0_44 = arith.constant 0 : index
    %c3 = arith.constant 3 : index
    %c0_45 = arith.constant 0 : index
    %c0_46 = arith.constant 0 : index
    %89 = vector.load %arg12[%c0_44, %c3, %c0_45, %c0_46] : memref<2x4x8x16xf32, #tpu.memory_space<vmem>>, vector<2x1x8x16xf32>
    %90 = vector.shape_cast %89 : vector<2x1x8x16xf32> to vector<2x8x16xf32>
    %91 = vector.shape_cast %88 : vector<2x8x16xf32> to vector<2x1x8x16xf32>
    tpu.vector_store %arg12[%c0_44, %c3, %c0_45, %c0_46], %91 {strides = array<i32>} : memref<2x4x8x16xf32, #tpu.memory_space<vmem>>, vector<2x1x8x16xf32>,
    "tpu.trace_start"() <{level = 10 : i32, message = "bqk,bkd->bqd"}> : () -> ()
    %cst_47 = arith.constant dense<0.000000e+00> : vector<2x8x8xf32>
    %92 = tpu.matmul %88, %77, %cst_47 {dimension_numbers = #tpu.dot_dimension_numbers<[2], [1], [1], [2], [0, 0, 0, 1, 1, 2], [0], [0]>} : vector<2x8x16xf32>, vector<2x16x8xf32>, vector<2x8x8xf32> -> vector<2x8x8xf32>
    "tpu.trace_stop"() : () -> ()
    %93 = tpu.concatenate %38, %56, %74, %92 in 2 : vector<2x8x8xf32>, vector<2x8x8xf32>, vector<2x8x8xf32>, vector<2x8x8xf32> -> vector<2x8x32xf32>
    %94 = vector.shape_cast %93 : vector<2x8x32xf32> to vector<16x32xf32>
    %c0_48 = arith.constant 0 : index
    %c0_49 = arith.constant 0 : index
    %95 = vector.load %arg10[%c0_48, %c0_49] : memref<32x32xf32, #tpu.memory_space<vmem>>, vector<32x32xf32>
    %cst_50 = arith.constant dense<0.000000e+00> : vector<16x32xf32>
    %96 = tpu.matmul %94, %95, %cst_50 {dimension_numbers = #tpu.dot_dimension_numbers<[1], [0], [0], [1], [0, 0, 1, 1], [], []>} : vector<16x32xf32>, vector<32x32xf32>, vector<16x32xf32> -> vector<16x32xf32>
    %c0_51 = arith.constant 0 : index
    %c0_52 = arith.constant 0 : index
    %97 = vector.load %arg11[%c0_51, %c0_52] : memref<1x32xf32, #tpu.memory_space<vmem>>, vector<1x32xf32>
    %98 = vector.broadcast %97 : vector<1x32xf32> to vector<16x32xf32>
    %99 = arith.addf %96, %98 : vector<16x32xf32>
    %c0_53 = arith.constant 0 : index
    %c0_54 = arith.constant 0 : index
    %100 = vector.load %arg13[%c0_53, %c0_54] : memref<16x32xf32, #tpu.memory_space<vmem>>, vector<16x32xf32>
    tpu.vector_store %arg13[%c0_53, %c0_54], %99 {strides = array<i32>} : memref<16x32xf32, #tpu.memory_space<vmem>>, vector<16x32xf32>,
    return
  }
  func.func @transform_0(%arg0: i32) -> (i32, i32) {
    %c0_i32 = arith.constant 0 : i32
    %c0_i32_0 = arith.constant 0 : i32
    return %arg0, %c0_i32 : i32, i32
  }
  func.func @transform_1(%arg0: i32) -> (i32, i32) {
    %c0_i32 = arith.constant 0 : i32
    %c0_i32_0 = arith.constant 0 : i32
    return %arg0, %c0_i32 : i32, i32
  }
  func.func @transform_2(%arg0: i32) -> (i32, i32) {
    %c0_i32 = arith.constant 0 : i32
    %c0_i32_0 = arith.constant 0 : i32
    return %arg0, %c0_i32 : i32, i32
  }
  func.func @transform_3(%arg0: i32) -> (i32, i32) {
    %c0_i32 = arith.constant 0 : i32
    %c0_i32_0 = arith.constant 0 : i32
    %c0_i32_1 = arith.constant 0 : i32
    return %c0_i32, %c0_i32_0 : i32, i32
  }
  func.func @transform_4(%arg0: i32) -> (i32, i32) {
    %c0_i32 = arith.constant 0 : i32
    %c0_i32_0 = arith.constant 0 : i32
    %c0_i32_1 = arith.constant 0 : i32
    return %c0_i32, %c0_i32_0 : i32, i32
  }
  func.func @transform_5(%arg0: i32) -> (i32, i32) {
    %c0_i32 = arith.constant 0 : i32
    %c0_i32_0 = arith.constant 0 : i32
    %c0_i32_1 = arith.constant 0 : i32
    return %c0_i32, %c0_i32_0 : i32, i32
  }
  func.func @transform_6(%arg0: i32) -> (i32, i32) {
    %c0_i32 = arith.constant 0 : i32
    %c0_i32_0 = arith.constant 0 : i32
    %c0_i32_1 = arith.constant 0 : i32
    return %c0_i32, %c0_i32_0 : i32, i32
  }
  func.func @transform_7(%arg0: i32) -> (i32, i32) {
    %c0_i32 = arith.constant 0 : i32
    %c0_i32_0 = arith.constant 0 : i32
    %c0_i32_1 = arith.constant 0 : i32
    return %c0_i32, %c0_i32_0 : i32, i32
  }
  func.func @transform_8(%arg0: i32) -> (i32, i32) {
    %c0_i32 = arith.constant 0 : i32
    %c0_i32_0 = arith.constant 0 : i32
    %c0_i32_1 = arith.constant 0 : i32
    return %c0_i32, %c0_i32_0 : i32, i32
  }
  func.func @transform_9(%arg0: i32) -> (i32, i32) {
    %c0_i32 = arith.constant 0 : i32
    %c0_i32_0 = arith.constant 0 : i32
    %c0_i32_1 = arith.constant 0 : i32
    return %c0_i32, %c0_i32_0 : i32, i32
  }
  func.func @transform_10(%arg0: i32) -> (i32, i32) {
    %c0_i32 = arith.constant 0 : i32
    %c0_i32_0 = arith.constant 0 : i32
    %c0_i32_1 = arith.constant 0 : i32
    return %c0_i32, %c0_i32_0 : i32, i32
  }
  func.func @transform_11(%arg0: i32) -> (i32, i32, i32, i32) {
    %c0_i32 = arith.constant 0 : i32
    %c0_i32_0 = arith.constant 0 : i32
    %c0_i32_1 = arith.constant 0 : i32
    %c0_i32_2 = arith.constant 0 : i32
    return %arg0, %c0_i32, %c0_i32_0, %c0_i32_1 : i32, i32, i32, i32
  }
  func.func @transform_12(%arg0: i32) -> (i32, i32) {
    %c0_i32 = arith.constant 0 : i32
    %c0_i32_0 = arith.constant 0 : i32
    return %arg0, %c0_i32 : i32, i32
  }
}

</mosaic_0001>

<llo_original>
// kernel: tpu_custom_call.1
$region0: #{tpu_custom_call.1}
  #allocation0 [shape = 'u32[]', space=smem, size = 0x4, offset = 0x4, fixed_abs, tag = 'smem constant byte address 0x4 - core index']
  #allocation1 [shape = 'u32[144,128]{1,0:T(1,128)}', space=vmem, size = 0x12000, scoped, tag = 'internal scratch']
  %s0 = inlined_call_operand.hbm [shape: f32[16,32], index: 0, kind: input, shape index: {}]
  %s1 = inlined_call_operand.hbm [shape: f32[32,32], index: 1, kind: input, shape index: {}]
  %s2 = inlined_call_operand.hbm [shape: f32[32,32], index: 2, kind: input, shape index: {}]
  %s3 = inlined_call_operand.hbm [shape: f32[32,32], index: 3, kind: input, shape index: {}]
  %s4 = inlined_call_operand.vmem [shape: f32[1,32], index: 4, kind: input, shape index: {}]
  %s5 = inlined_call_operand.hbm [shape: f32[32,32], index: 5, kind: input, shape index: {}]
  %s6 = inlined_call_operand.vmem [shape: f32[1,32], index: 6, kind: input, shape index: {}]
  %s7 = inlined_call_operand.hbm [shape: f32[32,32], index: 7, kind: input, shape index: {}]
  %s8 = inlined_call_operand.hbm [shape: f32[1,32], index: 8, kind: input, shape index: {}]
  %s9 = inlined_call_operand.vmem [shape: f32[32,32], index: 9, kind: input, shape index: {}]
  %s10 = inlined_call_operand.vmem [shape: f32[1,32], index: 10, kind: input, shape index: {}]
  %s11 = inlined_call_operand.hbm [shape: f32[2,4,8,16], index: 11, kind: output, shape index: {0}]
  %s12 = inlined_call_operand.hbm [shape: f32[16,32], index: 12, kind: output, shape index: {1}]
  %13 = xla_tuple %s11, %s12
  %s14 = sld [smem:[#allocation0]]
  $region90: #{tpu_custom_call.1} parent=0
    _
  %s16 = ssub.s32 1, %s14
  %s17 = scalar_select 0, %s16, %s14
  $region1: #{tpu_custom_call.1} parent=0
    #allocation2 [shape = 'u8[8192]{0}', space=vmem, size = 0x2000, scoped, tag = 'input window, operand 0, single buffered']
    #allocation3 [shape = 's32[1]{0}', space=sflag, size = 0x4, scoped, tag = 'scoped memory for tpu_custom_call.1']
    #allocation4 [shape = 's32[1]{0}', space=sflag, size = 0x4, scoped, tag = 'scoped memory for tpu_custom_call.1']
    #allocation5 [shape = 'u8[16384]{0}', space=vmem, size = 0x4000, scoped, tag = 'input window, operand 1, single buffered']
    #allocation6 [shape = 's32[1]{0}', space=sflag, size = 0x4, scoped, tag = 'scoped memory for tpu_custom_call.1']
    #allocation7 [shape = 'u8[16384]{0}', space=vmem, size = 0x4000, scoped, tag = 'input window, operand 2, single buffered']
    #allocation8 [shape = 'u8[16384]{0}', space=vmem, size = 0x4000, scoped, tag = 'input window, operand 3, single buffered']
    #allocation9 [shape = 's32[1]{0}', space=sflag, size = 0x4, scoped, tag = 'scoped memory for tpu_custom_call.1']
    #allocation10 [shape = 'u8[16384]{0}', space=vmem, size = 0x4000, scoped, tag = 'input window, operand 5, single buffered']
    #allocation11 [shape = 'u8[16384]{0}', space=vmem, size = 0x4000, scoped, tag = 'input window, operand 7, single buffered']
    #allocation12 [shape = 's32[1]{0}', space=sflag, size = 0x4, scoped, tag = 'scoped memory for tpu_custom_call.1']
    #allocation13 [shape = 'u8[512]{0}', space=vmem, size = 0x400, scoped, tag = 'input window, operand 8, single buffered']
    #allocation14 [shape = 'u8[32768]{0}', space=vmem, size = 0x8000, scoped, tag = 'output window, operand 0, single buffered']
    #allocation15 [shape = 'u8[8192]{0}', space=vmem, size = 0x2000, scoped, tag = 'output window, operand 1, single buffered']
    #allocation16 [shape = 's32[1]{0}', space=sflag, size = 0x4, scoped, tag = 'scoped memory for tpu_custom_call.1']
    %18 = vsyncpa [#allocation3], 0
    %19 = vsyncpa [#allocation6], 0
    %20 = vsyncpa [#allocation9], 0
    %21 = vsyncpa [#allocation12], 0
    %22 = vsyncpa [#allocation4], 0
    %23 = vsyncpa [#allocation16], 0
    // Predicated region
    $region2: #{tpu_custom_call.1} parent=1 // pred_check
      _
    $region3: #{tpu_custom_call.1} parent=1 // pred_check_branch
      %25 = sbr.rel (0) target = $region5
    $region4: #{tpu_custom_call.1} parent=1 // pred_region
      %s27 = ssub.s32 256, 256
      %28 = vsyncadd [#allocation3], %s27
      %s29 = sshll.u32 [#allocation2], 4
      %s30 = int_to_ptr.vmem [resolvable:$true] %s29
      %35 = dma.hbm_to_vmem [thread:$0]  %s0, 256, %s30, [#allocation3], 128, 128, 8
    $region5: #{tpu_custom_call.1} parent=1 // pred_fallthru
      _
    // Predicated region
    $region6: #{tpu_custom_call.1} parent=1 // pred_check
      _
    $region7: #{tpu_custom_call.1} parent=1 // pred_check_branch
      %37 = sbr.rel (0) target = $region9
    $region8: #{tpu_custom_call.1} parent=1 // pred_region
      %s39 = ssub.s32 512, 512
      %40 = vsyncadd [#allocation6], %s39
      %s41 = sshll.u32 [#allocation5], 4
      %s42 = int_to_ptr.vmem [resolvable:$true] %s41
      %47 = dma.hbm_to_vmem [thread:$0]  %s1, 512, %s42, [#allocation6], 128, 128, 8
    $region9: #{tpu_custom_call.1} parent=1 // pred_fallthru
      _
    // Predicated region
    $region10: #{tpu_custom_call.1} parent=1 // pred_check
      _
    $region11: #{tpu_custom_call.1} parent=1 // pred_check_branch
      %49 = sbr.rel (0) target = $region13
    $region12: #{tpu_custom_call.1} parent=1 // pred_region
      %s51 = ssub.s32 512, 512
      %52 = vsyncadd [#allocation6], %s51
      %s53 = sshll.u32 [#allocation7], 4
      %s54 = int_to_ptr.vmem [resolvable:$true] %s53
      %59 = dma.hbm_to_vmem [thread:$0]  %s2, 512, %s54, [#allocation6], 128, 128, 8
    $region13: #{tpu_custom_call.1} parent=1 // pred_fallthru
      _
    // Predicated region
    $region14: #{tpu_custom_call.1} parent=1 // pred_check
      _
    $region15: #{tpu_custom_call.1} parent=1 // pred_check_branch
      %61 = sbr.rel (0) target = $region17
    $region16: #{tpu_custom_call.1} parent=1 // pred_region
      %s63 = ssub.s32 512, 512
      %64 = vsyncadd [#allocation9], %s63
      %s65 = sshll.u32 [#allocation8], 4
      %s66 = int_to_ptr.vmem [resolvable:$true] %s65
      %71 = dma.hbm_to_vmem [thread:$0]  %s3, 512, %s66, [#allocation9], 128, 128, 8
    $region17: #{tpu_custom_call.1} parent=1 // pred_fallthru
      _
    // Predicated region
    $region18: #{tpu_custom_call.1} parent=1 // pred_check
      _
    $region19: #{tpu_custom_call.1} parent=1 // pred_check_branch
      %73 = sbr.rel (0) target = $region21
    $region20: #{tpu_custom_call.1} parent=1 // pred_region
      _
    $region21: #{tpu_custom_call.1} parent=1 // pred_fallthru
      _
    // Predicated region
    $region22: #{tpu_custom_call.1} parent=1 // pred_check
      _
    $region23: #{tpu_custom_call.1} parent=1 // pred_check_branch
      %75 = sbr.rel (0) target = $region25
    $region24: #{tpu_custom_call.1} parent=1 // pred_region
      %s77 = ssub.s32 512, 512
      %78 = vsyncadd [#allocation9], %s77
      %s79 = sshll.u32 [#allocation10], 4
      %s80 = int_to_ptr.vmem [resolvable:$true] %s79
      %85 = dma.hbm_to_vmem [thread:$0]  %s5, 512, %s80, [#allocation9], 128, 128, 8
    $region25: #{tpu_custom_call.1} parent=1 // pred_fallthru
      _
    // Predicated region
    $region26: #{tpu_custom_call.1} parent=1 // pred_check
      _
    $region27: #{tpu_custom_call.1} parent=1 // pred_check_branch
      %87 = sbr.rel (0) target = $region29
    $region28: #{tpu_custom_call.1} parent=1 // pred_region
      _
    $region29: #{tpu_custom_call.1} parent=1 // pred_fallthru
      _
    // Predicated region
    $region30: #{tpu_custom_call.1} parent=1 // pred_check
      _
    $region31: #{tpu_custom_call.1} parent=1 // pred_check_branch
      %89 = sbr.rel (0) target = $region33
    $region32: #{tpu_custom_call.1} parent=1 // pred_region
      %s91 = ssub.s32 512, 512
      %92 = vsyncadd [#allocation12], %s91
      %s93 = sshll.u32 [#allocation11], 4
      %s94 = int_to_ptr.vmem [resolvable:$true] %s93
      %99 = dma.hbm_to_vmem [thread:$0]  %s7, 512, %s94, [#allocation12], 128, 128, 8
    $region33: #{tpu_custom_call.1} parent=1 // pred_fallthru
      _
    // Predicated region
    $region34: #{tpu_custom_call.1} parent=1 // pred_check
      _
    $region35: #{tpu_custom_call.1} parent=1 // pred_check_branch
      %101 = sbr.rel (0) target = $region37
    $region36: #{tpu_custom_call.1} parent=1 // pred_region
      %s103 = ssub.s32 16, 16
      %104 = vsyncadd [#allocation12], %s103
      %s106 = sshll.u32 [#allocation13], 4
      %s107 = int_to_ptr.vmem [resolvable:$true] %s106
      %109 = dma.hbm_to_vmem [thread:$0]  %s8, 16, %s107, [#allocation12]
    $region37: #{tpu_custom_call.1} parent=1 // pred_fallthru
      _
    // Predicated region
    $region38: #{tpu_custom_call.1} parent=1 // pred_check
      _
    $region39: #{tpu_custom_call.1} parent=1 // pred_check_branch
      %111 = sbr.rel (0) target = $region41
    $region40: #{tpu_custom_call.1} parent=1 // pred_region
      _
    $region41: #{tpu_custom_call.1} parent=1 // pred_fallthru
      _
    // Predicated region
    $region42: #{tpu_custom_call.1} parent=1 // pred_check
      _
    $region43: #{tpu_custom_call.1} parent=1 // pred_check_branch
      %113 = sbr.rel (0) target = $region45
    $region44: #{tpu_custom_call.1} parent=1 // pred_region
      _
    $region45: #{tpu_custom_call.1} parent=1 // pred_fallthru
      _
    // Predicated region
    $region46: #{tpu_custom_call.1} parent=1 // pred_check
      _
    $region47: #{tpu_custom_call.1} parent=1 // pred_check_branch
      %115 = sbr.rel (0) target = $region49
    $region48: #{tpu_custom_call.1} parent=1 // pred_region
      %116 = dma.done [#allocation3], 256
    $region49: #{tpu_custom_call.1} parent=1 // pred_fallthru
      _
    // Predicated region
    $region50: #{tpu_custom_call.1} parent=1 // pred_check
      _
    $region51: #{tpu_custom_call.1} parent=1 // pred_check_branch
      %118 = sbr.rel (0) target = $region53
    $region52: #{tpu_custom_call.1} parent=1 // pred_region
      %119 = dma.done [#allocation6], 512
    $region53: #{tpu_custom_call.1} parent=1 // pred_fallthru
      _
    // Predicated region
    $region54: #{tpu_custom_call.1} parent=1 // pred_check
      _
    $region55: #{tpu_custom_call.1} parent=1 // pred_check_branch
      %121 = sbr.rel (0) target = $region57
    $region56: #{tpu_custom_call.1} parent=1 // pred_region
      %122 = dma.done [#allocation6], 512
    $region57: #{tpu_custom_call.1} parent=1 // pred_fallthru
      _
    // Predicated region
    $region58: #{tpu_custom_call.1} parent=1 // pred_check
      _
    $region59: #{tpu_custom_call.1} parent=1 // pred_check_branch
      %124 = sbr.rel (0) target = $region61
    $region60: #{tpu_custom_call.1} parent=1 // pred_region
      %125 = dma.done [#allocation9], 512
    $region61: #{tpu_custom_call.1} parent=1 // pred_fallthru
      _
    // Predicated region
    $region62: #{tpu_custom_call.1} parent=1 // pred_check
      _
    $region63: #{tpu_custom_call.1} parent=1 // pred_check_branch
      %127 = sbr.rel (0) target = $region65
    $region64: #{tpu_custom_call.1} parent=1 // pred_region
      %128 = dma.done [#allocation9], 512
    $region65: #{tpu_custom_call.1} parent=1 // pred_fallthru
      _
    // Predicated region
    $region66: #{tpu_custom_call.1} parent=1 // pred_check
      _
    $region67: #{tpu_custom_call.1} parent=1 // pred_check_branch
      %130 = sbr.rel (0) target = $region69
    $region68: #{tpu_custom_call.1} parent=1 // pred_region
      %131 = dma.done [#allocation12], 512
    $region69: #{tpu_custom_call.1} parent=1 // pred_fallthru
      _
    // Predicated region
    $region70: #{tpu_custom_call.1} parent=1 // pred_check
      _
    $region71: #{tpu_custom_call.1} parent=1 // pred_check_branch
      %133 = sbr.rel (0) target = $region73
    $region72: #{tpu_custom_call.1} parent=1 // pred_region
      %134 = dma.done [#allocation12], 16
    $region73: #{tpu_custom_call.1} parent=1 // pred_fallthru
      _
    %v135 = vld [vmem:[#allocation2] sm:$0xff]
    %v136 = vld [vmem:[#allocation2 + $0x8] sm:$0xff]
    %v137 = vld [vmem:[#allocation8] sm:$0xff]
    %v138 = vld [vmem:[#allocation8 + $0x8] sm:$0xff]
    %v139 = vld [vmem:[#allocation8 + $0x10] sm:$0xff]
    %v140 = vld [vmem:[#allocation8 + $0x18] sm:$0xff]
    %v141 = vld [vmem:[%s4] sm:$0x1]
    %v143 = vlaneseq
    %v144 = vshrl.u32 %v143, 7
    %v145 = vsub.s32 0, %v144
    %v146 = vrot.slane %v141, %v145
    %vm148 = vcmask 261120
    %v150 = vsel %vm148, %v135, 0
    %v153 = vsel %vm148, %v136, 0
    %155 = vmatprep.subr.mxu0 0.0
    %156 = vmatpush1.msra.mxu0 %v137
    %157 = vmatprep.subr.mxu0 0.0
    %158 = vmatpush1.msra.mxu0 %v138
    %159 = vmatprep.subr.mxu0 0.0
    %160 = vmatpush1.msra.mxu0 %v139
    %161 = vmatprep.subr.mxu0 0.0
    %162 = vmatpush1.msra.mxu0 %v140
    %163 = vmatprep.subr.mxu0 0.0
    %164 = vmatpush1.msra.mxu0 0.0
    %165 = vmatprep.subr.mxu0 0.0
    %166 = vmatpush1.msra.mxu0 0.0
    %167 = vmatprep.subr.mxu0 0.0
    %168 = vmatpush1.msra.mxu0 0.0
    %169 = vmatprep.subr.mxu0 0.0
    %170 = vmatpush1.msra.mxu0 0.0
    %171 = vmatprep.subr.mxu0 0.0
    %172 = vmatpush1.msra.mxu0 0.0
    %173 = vmatprep.subr.mxu0 0.0
    %174 = vmatpush1.msra.mxu0 0.0
    %175 = vmatprep.subr.mxu0 0.0
    %176 = vmatpush1.msra.mxu0 0.0
    %177 = vmatprep.subr.mxu0 0.0
    %178 = vmatpush1.msra.mxu0 0.0
    %179 = vmatprep.subr.mxu0 0.0
    %180 = vmatpush1.msra.mxu0 0.0
    %181 = vmatprep.subr.mxu0 0.0
    %182 = vmatpush1.msra.mxu0 0.0
    %183 = vmatprep.subr.mxu0 0.0
    %184 = vmatpush1.msra.mxu0 0.0
    %185 = vmatprep.subr.mxu0 0.0
    %186 = vmatpush1.msra.mxu0 0.0
    %187 = vmatprep.subr.mxu0 0.0
    %188 = vmatpush1.msra.mxu0 0.0
    %189 = vmatprep.subr.mxu0 0.0
    %190 = vmatpush1.msra.mxu0 0.0
    %191 = vmatprep.subr.mxu0 0.0
    %192 = vmatpush1.msra.mxu0 0.0
    %193 = vmatprep.subr.mxu0 0.0
    %194 = vmatpush1.msra.mxu0 0.0
    %195 = vmatprep.subr.mxu0 0.0
    %196 = vmatpush1.msra.mxu0 0.0
    %197 = vmatprep.subr.mxu0 0.0
    %198 = vmatpush1.msra.mxu0 0.0
    %199 = vmatprep.subr.mxu0 0.0
    %200 = vmatpush1.msra.mxu0 0.0
    %201 = vmatprep.subr.mxu0 0.0
    %202 = vmatpush1.msra.mxu0 0.0
    %203 = vmatprep.subr.mxu0 0.0
    %204 = vmatpush1.msra.mxu0 0.0
    %205 = vmatprep.subr.mxu0 0.0
    %206 = vmatpush1.msra.mxu0 0.0
    %207 = vmatprep.subr.mxu0 0.0
    %208 = vmatpush1.msra.mxu0 0.0
    %209 = vmatprep.subr.mxu0 0.0
    %210 = vmatpush1.msra.mxu0 0.0
    %211 = vmatprep.subr.mxu0 0.0
    %212 = vmatpush1.msra.mxu0 0.0
    %213 = vmatprep.subr.mxu0 0.0
    %214 = vmatpush1.msra.mxu0 0.0
    %215 = vmatprep.subr.mxu0 0.0
    %216 = vmatpush1.msra.mxu0 0.0
    %217 = vmatprep.subr.mxu0 0.0
    %218 = vmatpush1.msra.mxu0 0.0
    %219 = vmatprep.mubr.f32.mxu0 0.0
    %220 = vmatmul.mubr.f32.gmra.mrb[0].mxu0 %v150
    %v221 = vpop.f32.mrb[0].mxu0
    %v222 = vadd.f32 %v146, %v221
    %v223 = vpop.f32.mrb[0].mxu0
    %224 = vmatprep.mubr.f32.mxu0 0.0
    %225 = vmatmul.mubr.f32.gmra.mrb[0].mxu0 %v153
    %v226 = vpop.f32.mrb[0].mxu0
    %v227 = vadd.f32 %v146, %v226
    %v228 = vpop.f32.mrb[0].mxu0
    %229 = vdwg.mxu0
    %v230 = vld [vmem:[#allocation5] sm:$0xff]
    %v231 = vld [vmem:[#allocation5 + $0x8] sm:$0xff]
    %v232 = vld [vmem:[#allocation5 + $0x10] sm:$0xff]
    %v233 = vld [vmem:[#allocation5 + $0x18] sm:$0xff]
    %v234 = vld [vmem:[#allocation10] sm:$0xff]
    %v235 = vld [vmem:[#allocation10 + $0x8] sm:$0xff]
    %v236 = vld [vmem:[#allocation10 + $0x10] sm:$0xff]
    %v237 = vld [vmem:[#allocation10 + $0x18] sm:$0xff]
    %v238 = vld [vmem:[%s6] sm:$0x1]
    %v240 = vlaneseq
    %v241 = vshrl.u32 %v240, 7
    %v242 = vsub.s32 0, %v241
    %v243 = vrot.slane %v238, %v242
    %v246 = vsel %vm148, %v230, 0
    %v249 = vsel %vm148, %v231, 0
    %v252 = vsel %vm148, %v232, 0
    %v255 = vsel %vm148, %v233, 0
    %257 = vmatprep.subr.mxu0 0.0
    %258 = vmatpush1.msra.mxu0 %v234
    %259 = vmatprep.subr.mxu0 0.0
    %260 = vmatpush1.msra.mxu0 %v235
    %261 = vmatprep.subr.mxu0 0.0
    %262 = vmatpush1.msra.mxu0 %v236
    %263 = vmatprep.subr.mxu0 0.0
    %264 = vmatpush1.msra.mxu0 %v237
    %265 = vmatprep.subr.mxu0 0.0
    %266 = vmatpush1.msra.mxu0 0.0
    %267 = vmatprep.subr.mxu0 0.0
    %268 = vmatpush1.msra.mxu0 0.0
    %269 = vmatprep.subr.mxu0 0.0
    %270 = vmatpush1.msra.mxu0 0.0
    %271 = vmatprep.subr.mxu0 0.0
    %272 = vmatpush1.msra.mxu0 0.0
    %273 = vmatprep.subr.mxu0 0.0
    %274 = vmatpush1.msra.mxu0 0.0
    %275 = vmatprep.subr.mxu0 0.0
    %276 = vmatpush1.msra.mxu0 0.0
    %277 = vmatprep.subr.mxu0 0.0
    %278 = vmatpush1.msra.mxu0 0.0
    %279 = vmatprep.subr.mxu0 0.0
    %280 = vmatpush1.msra.mxu0 0.0
    %281 = vmatprep.subr.mxu0 0.0
    %282 = vmatpush1.msra.mxu0 0.0
    %283 = vmatprep.subr.mxu0 0.0
    %284 = vmatpush1.msra.mxu0 0.0
    %285 = vmatprep.subr.mxu0 0.0
    %286 = vmatpush1.msra.mxu0 0.0
    %287 = vmatprep.subr.mxu0 0.0
    %288 = vmatpush1.msra.mxu0 0.0
    %289 = vmatprep.subr.mxu0 0.0
    %290 = vmatpush1.msra.mxu0 0.0
    %291 = vmatprep.subr.mxu0 0.0
    %292 = vmatpush1.msra.mxu0 0.0
    %293 = vmatprep.subr.mxu0 0.0
    %294 = vmatpush1.msra.mxu0 0.0
    %295 = vmatprep.subr.mxu0 0.0
    %296 = vmatpush1.msra.mxu0 0.0
    %297 = vmatprep.subr.mxu0 0.0
    %298 = vmatpush1.msra.mxu0 0.0
    %299 = vmatprep.subr.mxu0 0.0
    %300 = vmatpush1.msra.mxu0 0.0
    %301 = vmatprep.subr.mxu0 0.0
    %302 = vmatpush1.msra.mxu0 0.0
    %303 = vmatprep.subr.mxu0 0.0
    %304 = vmatpush1.msra.mxu0 0.0
    %305 = vmatprep.subr.mxu0 0.0
    %306 = vmatpush1.msra.mxu0 0.0
    %307 = vmatprep.subr.mxu0 0.0
    %308 = vmatpush1.msra.mxu0 0.0
    %309 = vmatprep.subr.mxu0 0.0
    %310 = vmatpush1.msra.mxu0 0.0
    %311 = vmatprep.subr.mxu0 0.0
    %312 = vmatpush1.msra.mxu0 0.0
    %313 = vmatprep.subr.mxu0 0.0
    %314 = vmatpush1.msra.mxu0 0.0
    %315 = vmatprep.subr.mxu0 0.0
    %316 = vmatpush1.msra.mxu0 0.0
    %317 = vmatprep.subr.mxu0 0.0
    %318 = vmatpush1.msra.mxu0 0.0
    %319 = vmatprep.subr.mxu0 0.0
    %320 = vmatpush1.msra.mxu0 0.0
    %321 = vmatprep.mubr.f32.mxu0 0.0
    %322 = vmatmul.mubr.f32.gmra.mrb[0].mxu0 %v246
    %v323 = vpop.f32.mrb[0].mxu0
    %v324 = vadd.f32 %v243, %v323
    %v325 = vpop.f32.mrb[0].mxu0
    %326 = vmatprep.mubr.f32.mxu0 0.0
    %327 = vmatmul.mubr.f32.gmra.mrb[0].mxu0 %v249
    %v328 = vpop.f32.mrb[0].mxu0
    %v329 = vadd.f32 %v243, %v328
    %v330 = vpop.f32.mrb[0].mxu0
    %331 = vmatprep.mubr.f32.mxu0 0.0
    %332 = vmatmul.mubr.f32.gmra.mrb[0].mxu0 %v252
    %v333 = vpop.f32.mrb[0].mxu0
    %v334 = vadd.f32 %v243, %v333
    %v335 = vpop.f32.mrb[0].mxu0
    %336 = vmatprep.mubr.f32.mxu0 0.0
    %337 = vmatmul.mubr.f32.gmra.mrb[0].mxu0 %v255
    %v338 = vpop.f32.mrb[0].mxu0
    %v339 = vadd.f32 %v243, %v338
    %v340 = vpop.f32.mrb[0].mxu0
    %341 = vdwg.mxu0
    %v342 = vld [vmem:[#allocation7] sm:$0xff]
    %v343 = vld [vmem:[#allocation7 + $0x8] sm:$0xff]
    %v344 = vld [vmem:[#allocation7 + $0x10] sm:$0xff]
    %v345 = vld [vmem:[#allocation7 + $0x18] sm:$0xff]
    %v346 = vld [vmem:[#allocation11] sm:$0xff]
    %v347 = vld [vmem:[#allocation11 + $0x8] sm:$0xff]
    %v348 = vld [vmem:[#allocation11 + $0x10] sm:$0xff]
    %v349 = vld [vmem:[#allocation11 + $0x18] sm:$0xff]
    %v350 = vld [vmem:[#allocation13] sm:$0x1]
    %v352 = vlaneseq
    %v353 = vshrl.u32 %v352, 7
    %v354 = vsub.s32 0, %v353
    %v355 = vrot.slane %v350, %v354
    %v358 = vsel %vm148, %v342, 0
    %v361 = vsel %vm148, %v343, 0
    %v364 = vsel %vm148, %v344, 0
    %v367 = vsel %vm148, %v345, 0
    %369 = vmatprep.subr.mxu0 0.0
    %370 = vmatpush1.msra.mxu0 %v346
    %371 = vmatprep.subr.mxu0 0.0
    %372 = vmatpush1.msra.mxu0 %v347
    %373 = vmatprep.subr.mxu0 0.0
    %374 = vmatpush1.msra.mxu0 %v348
    %375 = vmatprep.subr.mxu0 0.0
    %376 = vmatpush1.msra.mxu0 %v349
    %377 = vmatprep.subr.mxu0 0.0
    %378 = vmatpush1.msra.mxu0 0.0
    %379 = vmatprep.subr.mxu0 0.0
    %380 = vmatpush1.msra.mxu0 0.0
    %381 = vmatprep.subr.mxu0 0.0
    %382 = vmatpush1.msra.mxu0 0.0
    %383 = vmatprep.subr.mxu0 0.0
    %384 = vmatpush1.msra.mxu0 0.0
    %385 = vmatprep.subr.mxu0 0.0
    %386 = vmatpush1.msra.mxu0 0.0
    %387 = vmatprep.subr.mxu0 0.0
    %388 = vmatpush1.msra.mxu0 0.0
    %389 = vmatprep.subr.mxu0 0.0
    %390 = vmatpush1.msra.mxu0 0.0
    %391 = vmatprep.subr.mxu0 0.0
    %392 = vmatpush1.msra.mxu0 0.0
    %393 = vmatprep.subr.mxu0 0.0
    %394 = vmatpush1.msra.mxu0 0.0
    %395 = vmatprep.subr.mxu0 0.0
    %396 = vmatpush1.msra.mxu0 0.0
    %397 = vmatprep.subr.mxu0 0.0
    %398 = vmatpush1.msra.mxu0 0.0
    %399 = vmatprep.subr.mxu0 0.0
    %400 = vmatpush1.msra.mxu0 0.0
    %401 = vmatprep.subr.mxu0 0.0
    %402 = vmatpush1.msra.mxu0 0.0
    %403 = vmatprep.subr.mxu0 0.0
    %404 = vmatpush1.msra.mxu0 0.0
    %405 = vmatprep.subr.mxu0 0.0
    %406 = vmatpush1.msra.mxu0 0.0
    %407 = vmatprep.subr.mxu0 0.0
    %408 = vmatpush1.msra.mxu0 0.0
    %409 = vmatprep.subr.mxu0 0.0
    %410 = vmatpush1.msra.mxu0 0.0
    %411 = vmatprep.subr.mxu0 0.0
    %412 = vmatpush1.msra.mxu0 0.0
    %413 = vmatprep.subr.mxu0 0.0
    %414 = vmatpush1.msra.mxu0 0.0
    %415 = vmatprep.subr.mxu0 0.0
    %416 = vmatpush1.msra.mxu0 0.0
    %417 = vmatprep.subr.mxu0 0.0
    %418 = vmatpush1.msra.mxu0 0.0
    %419 = vmatprep.subr.mxu0 0.0
    %420 = vmatpush1.msra.mxu0 0.0
    %421 = vmatprep.subr.mxu0 0.0
    %422 = vmatpush1.msra.mxu0 0.0
    %423 = vmatprep.subr.mxu0 0.0
    %424 = vmatpush1.msra.mxu0 0.0
    %425 = vmatprep.subr.mxu0 0.0
    %426 = vmatpush1.msra.mxu0 0.0
    %427 = vmatprep.subr.mxu0 0.0
    %428 = vmatpush1.msra.mxu0 0.0
    %429 = vmatprep.subr.mxu0 0.0
    %430 = vmatpush1.msra.mxu0 0.0
    %431 = vmatprep.subr.mxu0 0.0
    %432 = vmatpush1.msra.mxu0 0.0
    %433 = vmatprep.mubr.f32.mxu0 0.0
    %434 = vmatmul.mubr.f32.gmra.mrb[0].mxu0 %v358
    %v435 = vpop.f32.mrb[0].mxu0
    %v436 = vadd.f32 %v355, %v435
    %v437 = vpop.f32.mrb[0].mxu0
    %438 = vmatprep.mubr.f32.mxu0 0.0
    %439 = vmatmul.mubr.f32.gmra.mrb[0].mxu0 %v361
    %v440 = vpop.f32.mrb[0].mxu0
    %v441 = vadd.f32 %v355, %v440
    %v442 = vpop.f32.mrb[0].mxu0
    %443 = vmatprep.mubr.f32.mxu0 0.0
    %444 = vmatmul.mubr.f32.gmra.mrb[0].mxu0 %v364
    %v445 = vpop.f32.mrb[0].mxu0
    %v446 = vadd.f32 %v355, %v445
    %v447 = vpop.f32.mrb[0].mxu0
    %448 = vmatprep.mubr.f32.mxu0 0.0
    %449 = vmatmul.mubr.f32.gmra.mrb[0].mxu0 %v367
    %v450 = vpop.f32.mrb[0].mxu0
    %v451 = vadd.f32 %v355, %v450
    %v452 = vpop.f32.mrb[0].mxu0
    %453 = vdwg.mxu0
    %vm454 = vcmask 64512
    %v456 = vsel %vm454, %v222, 0
    %v459 = vsel %vm454, %v324, 0
    %v462 = vsel %vm454, %v329, 0
    %464 = vmatprep.subr.mxu0 0.0
    %465 = vmatpush1.xpose.msra.mxu0 %v459
    %466 = vmatprep.subr.mxu0 0.0
    %467 = vmatpush1.xpose.msra.mxu0 %v462
    %468 = vmatprep.subr.mxu0 0.0
    %469 = vmatpush1.xpose.msra.mxu0 0.0
    %470 = vmatprep.subr.mxu0 0.0
    %471 = vmatpush1.xpose.msra.mxu0 0.0
    %472 = vmatprep.subr.mxu0 0.0
    %473 = vmatpush1.xpose.msra.mxu0 0.0
    %474 = vmatprep.subr.mxu0 0.0
    %475 = vmatpush1.xpose.msra.mxu0 0.0
    %476 = vmatprep.subr.mxu0 0.0
    %477 = vmatpush1.xpose.msra.mxu0 0.0
    %478 = vmatprep.subr.mxu0 0.0
    %479 = vmatpush1.xpose.msra.mxu0 0.0
    %480 = vmatprep.subr.mxu0 0.0
    %481 = vmatpush1.xpose.msra.mxu0 0.0
    %482 = vmatprep.subr.mxu0 0.0
    %483 = vmatpush1.xpose.msra.mxu0 0.0
    %484 = vmatprep.subr.mxu0 0.0
    %485 = vmatpush1.xpose.msra.mxu0 0.0
    %486 = vmatprep.subr.mxu0 0.0
    %487 = vmatpush1.xpose.msra.mxu0 0.0
    %488 = vmatprep.subr.mxu0 0.0
    %489 = vmatpush1.xpose.msra.mxu0 0.0
    %490 = vmatprep.subr.mxu0 0.0
    %491 = vmatpush1.xpose.msra.mxu0 0.0
    %492 = vmatprep.subr.mxu0 0.0
    %493 = vmatpush1.xpose.msra.mxu0 0.0
    %494 = vmatprep.subr.mxu0 0.0
    %495 = vmatpush1.xpose.msra.mxu0 0.0
    %496 = vmatprep.subr.mxu0 0.0
    %497 = vmatpush1.xpose.msra.mxu0 0.0
    %498 = vmatprep.subr.mxu0 0.0
    %499 = vmatpush1.xpose.msra.mxu0 0.0
    %500 = vmatprep.subr.mxu0 0.0
    %501 = vmatpush1.xpose.msra.mxu0 0.0
    %502 = vmatprep.subr.mxu0 0.0
    %503 = vmatpush1.xpose.msra.mxu0 0.0
    %504 = vmatprep.subr.mxu0 0.0
    %505 = vmatpush1.xpose.msra.mxu0 0.0
    %506 = vmatprep.subr.mxu0 0.0
    %507 = vmatpush1.xpose.msra.mxu0 0.0
    %508 = vmatprep.subr.mxu0 0.0
    %509 = vmatpush1.xpose.msra.mxu0 0.0
    %510 = vmatprep.subr.mxu0 0.0
    %511 = vmatpush1.xpose.msra.mxu0 0.0
    %512 = vmatprep.subr.mxu0 0.0
    %513 = vmatpush1.xpose.msra.mxu0 0.0
    %514 = vmatprep.subr.mxu0 0.0
    %515 = vmatpush1.xpose.msra.mxu0 0.0
    %516 = vmatprep.subr.mxu0 0.0
    %517 = vmatpush1.xpose.msra.mxu0 0.0
    %518 = vmatprep.subr.mxu0 0.0
    %519 = vmatpush1.xpose.msra.mxu0 0.0
    %520 = vmatprep.subr.mxu0 0.0
    %521 = vmatpush1.xpose.msra.mxu0 0.0
    %522 = vmatprep.subr.mxu0 0.0
    %523 = vmatpush1.xpose.msra.mxu0 0.0
    %524 = vmatprep.subr.mxu0 0.0
    %525 = vmatpush1.xpose.msra.mxu0 0.0
    %526 = vmatprep.subr.mxu0 0.0
    %527 = vmatpush1.xpose.msra.mxu0 0.0
    %528 = vmatprep.mubr.f32.mxu0 0.0
    %529 = vmatmul.mubr.f32.gmra.mrb[0].mxu0 %v456
    %v530 = vpop.f32.mrb[0].mxu0
    %v531 = vadd.f32 0.0, %v530
    %v532 = vpop.f32.mrb[0].mxu0
    %533 = vdwg.mxu0
    %v535 = vsel %vm454, %v227, 0
    %v538 = vsel %vm454, %v334, 0
    %v541 = vsel %vm454, %v339, 0
    %543 = vmatprep.subr.mxu0 0.0
    %544 = vmatpush1.xpose.msra.mxu0 %v538
    %545 = vmatprep.subr.mxu0 0.0
    %546 = vmatpush1.xpose.msra.mxu0 %v541
    %547 = vmatprep.subr.mxu0 0.0
    %548 = vmatpush1.xpose.msra.mxu0 0.0
    %549 = vmatprep.subr.mxu0 0.0
    %550 = vmatpush1.xpose.msra.mxu0 0.0
    %551 = vmatprep.subr.mxu0 0.0
    %552 = vmatpush1.xpose.msra.mxu0 0.0
    %553 = vmatprep.subr.mxu0 0.0
    %554 = vmatpush1.xpose.msra.mxu0 0.0
    %555 = vmatprep.subr.mxu0 0.0
    %556 = vmatpush1.xpose.msra.mxu0 0.0
    %557 = vmatprep.subr.mxu0 0.0
    %558 = vmatpush1.xpose.msra.mxu0 0.0
    %559 = vmatprep.subr.mxu0 0.0
    %560 = vmatpush1.xpose.msra.mxu0 0.0
    %561 = vmatprep.subr.mxu0 0.0
    %562 = vmatpush1.xpose.msra.mxu0 0.0
    %563 = vmatprep.subr.mxu0 0.0
    %564 = vmatpush1.xpose.msra.mxu0 0.0
    %565 = vmatprep.subr.mxu0 0.0
    %566 = vmatpush1.xpose.msra.mxu0 0.0
    %567 = vmatprep.subr.mxu0 0.0
    %568 = vmatpush1.xpose.msra.mxu0 0.0
    %569 = vmatprep.subr.mxu0 0.0
    %570 = vmatpush1.xpose.msra.mxu0 0.0
    %571 = vmatprep.subr.mxu0 0.0
    %572 = vmatpush1.xpose.msra.mxu0 0.0
    %573 = vmatprep.subr.mxu0 0.0
    %574 = vmatpush1.xpose.msra.mxu0 0.0
    %575 = vmatprep.subr.mxu0 0.0
    %576 = vmatpush1.xpose.msra.mxu0 0.0
    %577 = vmatprep.subr.mxu0 0.0
    %578 = vmatpush1.xpose.msra.mxu0 0.0
    %579 = vmatprep.subr.mxu0 0.0
    %580 = vmatpush1.xpose.msra.mxu0 0.0
    %581 = vmatprep.subr.mxu0 0.0
    %582 = vmatpush1.xpose.msra.mxu0 0.0
    %583 = vmatprep.subr.mxu0 0.0
    %584 = vmatpush1.xpose.msra.mxu0 0.0
    %585 = vmatprep.subr.mxu0 0.0
    %586 = vmatpush1.xpose.msra.mxu0 0.0
    %587 = vmatprep.subr.mxu0 0.0
    %588 = vmatpush1.xpose.msra.mxu0 0.0
    %589 = vmatprep.subr.mxu0 0.0
    %590 = vmatpush1.xpose.msra.mxu0 0.0
    %591 = vmatprep.subr.mxu0 0.0
    %592 = vmatpush1.xpose.msra.mxu0 0.0
    %593 = vmatprep.subr.mxu0 0.0
    %594 = vmatpush1.xpose.msra.mxu0 0.0
    %595 = vmatprep.subr.mxu0 0.0
    %596 = vmatpush1.xpose.msra.mxu0 0.0
    %597 = vmatprep.subr.mxu0 0.0
    %598 = vmatpush1.xpose.msra.mxu0 0.0
    %599 = vmatprep.subr.mxu0 0.0
    %600 = vmatpush1.xpose.msra.mxu0 0.0
    %601 = vmatprep.subr.mxu0 0.0
    %602 = vmatpush1.xpose.msra.mxu0 0.0
    %603 = vmatprep.subr.mxu0 0.0
    %604 = vmatpush1.xpose.msra.mxu0 0.0
    %605 = vmatprep.subr.mxu0 0.0
    %606 = vmatpush1.xpose.msra.mxu0 0.0
    %607 = vmatprep.mubr.f32.mxu0 0.0
    %608 = vmatmul.mubr.f32.gmra.mrb[0].mxu0 %v535
    %v609 = vpop.f32.mrb[0].mxu0
    %v610 = vadd.f32 0.0, %v609
    %v611 = vpop.f32.mrb[0].mxu0
    %612 = vdwg.mxu0
    %vm613 = vcmask 130048
    %v614 = vsel %vm613, %v531, -inf
    %615 = vmax.xlane.f32.xlu0 %v614
    %v616 = vpop.xlane.xlu0 %615
    %v617 = vsel %vm613, %v610, -inf
    %618 = vmax.xlane.f32.xlu0 %v617
    %v619 = vpop.xlane.xlu0 %618
    %v620 = vsub.f32 %v531, %v616
    %v621 = vsub.f32 %v610, %v619
    %v622 = vmul.f32 %v620, 1.442695
    %v623 = vpow.pop %v622
    %v624 = vmul.f32 %v621, 1.442695
    %v625 = vpow.pop %v624
    %v626 = vsel %vm613, %v623, 0.0
    %627 = vadd.xlane.f32.xlu0 %v626
    %v628 = vpop.xlane.xlu0 %627
    %v629 = vsel %vm613, %v625, 0.0
    %630 = vadd.xlane.f32.xlu0 %v629
    %v631 = vpop.xlane.xlu0 %630
    %v632 = vrcp.pop %v628
    %v633 = vrcp.pop %v631
    %v634 = vmul.f32 %v623, %v632
    %v635 = vmul.f32 %v625, %v633
    %636 = vst.msk [vmem:[#allocation14] sm:$0xff] %vm613, %v634
    %637 = vst.msk [vmem:[#allocation14 + $0x20] sm:$0xff] %vm613, %v635
    %v639 = vsel %vm613, %v634, 0
    %641 = vmatprep.subr.mxu0 0.0
    %642 = vmatpush1.msra.mxu0 %v436
    %643 = vmatprep.subr.mxu0 0.0
    %644 = vmatpush1.msra.mxu0 %v441
    %645 = vmatprep.subr.mxu0 0.0
    %646 = vmatpush1.msra.mxu0 0.0
    %647 = vmatprep.subr.mxu0 0.0
    %648 = vmatpush1.msra.mxu0 0.0
    %649 = vmatprep.subr.mxu0 0.0
    %650 = vmatpush1.msra.mxu0 0.0
    %651 = vmatprep.subr.mxu0 0.0
    %652 = vmatpush1.msra.mxu0 0.0
    %653 = vmatprep.subr.mxu0 0.0
    %654 = vmatpush1.msra.mxu0 0.0
    %655 = vmatprep.subr.mxu0 0.0
    %656 = vmatpush1.msra.mxu0 0.0
    %657 = vmatprep.subr.mxu0 0.0
    %658 = vmatpush1.msra.mxu0 0.0
    %659 = vmatprep.subr.mxu0 0.0
    %660 = vmatpush1.msra.mxu0 0.0
    %661 = vmatprep.subr.mxu0 0.0
    %662 = vmatpush1.msra.mxu0 0.0
    %663 = vmatprep.subr.mxu0 0.0
    %664 = vmatpush1.msra.mxu0 0.0
    %665 = vmatprep.subr.mxu0 0.0
    %666 = vmatpush1.msra.mxu0 0.0
    %667 = vmatprep.subr.mxu0 0.0
    %668 = vmatpush1.msra.mxu0 0.0
    %669 = vmatprep.subr.mxu0 0.0
    %670 = vmatpush1.msra.mxu0 0.0
    %671 = vmatprep.subr.mxu0 0.0
    %672 = vmatpush1.msra.mxu0 0.0
    %673 = vmatprep.subr.mxu0 0.0
    %674 = vmatpush1.msra.mxu0 0.0
    %675 = vmatprep.subr.mxu0 0.0
    %676 = vmatpush1.msra.mxu0 0.0
    %677 = vmatprep.subr.mxu0 0.0
    %678 = vmatpush1.msra.mxu0 0.0
    %679 = vmatprep.subr.mxu0 0.0
    %680 = vmatpush1.msra.mxu0 0.0
    %681 = vmatprep.subr.mxu0 0.0
    %682 = vmatpush1.msra.mxu0 0.0
    %683 = vmatprep.subr.mxu0 0.0
    %684 = vmatpush1.msra.mxu0 0.0
    %685 = vmatprep.subr.mxu0 0.0
    %686 = vmatpush1.msra.mxu0 0.0
    %687 = vmatprep.subr.mxu0 0.0
    %688 = vmatpush1.msra.mxu0 0.0
    %689 = vmatprep.subr.mxu0 0.0
    %690 = vmatpush1.msra.mxu0 0.0
    %691 = vmatprep.subr.mxu0 0.0
    %692 = vmatpush1.msra.mxu0 0.0
    %693 = vmatprep.subr.mxu0 0.0
    %694 = vmatpush1.msra.mxu0 0.0
    %695 = vmatprep.subr.mxu0 0.0
    %696 = vmatpush1.msra.mxu0 0.0
    %697 = vmatprep.subr.mxu0 0.0
    %698 = vmatpush1.msra.mxu0 0.0
    %699 = vmatprep.subr.mxu0 0.0
    %700 = vmatpush1.msra.mxu0 0.0
    %701 = vmatprep.subr.mxu0 0.0
    %702 = vmatpush1.msra.mxu0 0.0
    %703 = vmatprep.subr.mxu0 0.0
    %704 = vmatpush1.msra.mxu0 0.0
    %705 = vmatprep.mubr.f32.mxu0 0.0
    %706 = vmatmul.mubr.f32.gmra.mrb[0].mxu0 %v639
    %v707 = vpop.f32.mrb[0].mxu0
    %v708 = vadd.f32 0.0, %v707
    %v709 = vpop.f32.mrb[0].mxu0
    %710 = vdwg.mxu0
    %v712 = vsel %vm613, %v635, 0
    %714 = vmatprep.subr.mxu0 0.0
    %715 = vmatpush1.msra.mxu0 %v446
    %716 = vmatprep.subr.mxu0 0.0
    %717 = vmatpush1.msra.mxu0 %v451
    %718 = vmatprep.subr.mxu0 0.0
    %719 = vmatpush1.msra.mxu0 0.0
    %720 = vmatprep.subr.mxu0 0.0
    %721 = vmatpush1.msra.mxu0 0.0
    %722 = vmatprep.subr.mxu0 0.0
    %723 = vmatpush1.msra.mxu0 0.0
    %724 = vmatprep.subr.mxu0 0.0
    %725 = vmatpush1.msra.mxu0 0.0
    %726 = vmatprep.subr.mxu0 0.0
    %727 = vmatpush1.msra.mxu0 0.0
    %728 = vmatprep.subr.mxu0 0.0
    %729 = vmatpush1.msra.mxu0 0.0
    %730 = vmatprep.subr.mxu0 0.0
    %731 = vmatpush1.msra.mxu0 0.0
    %732 = vmatprep.subr.mxu0 0.0
    %733 = vmatpush1.msra.mxu0 0.0
    %734 = vmatprep.subr.mxu0 0.0
    %735 = vmatpush1.msra.mxu0 0.0
    %736 = vmatprep.subr.mxu0 0.0
    %737 = vmatpush1.msra.mxu0 0.0
    %738 = vmatprep.subr.mxu0 0.0
    %739 = vmatpush1.msra.mxu0 0.0
    %740 = vmatprep.subr.mxu0 0.0
    %741 = vmatpush1.msra.mxu0 0.0
    %742 = vmatprep.subr.mxu0 0.0
    %743 = vmatpush1.msra.mxu0 0.0
    %744 = vmatprep.subr.mxu0 0.0
    %745 = vmatpush1.msra.mxu0 0.0
    %746 = vmatprep.subr.mxu0 0.0
    %747 = vmatpush1.msra.mxu0 0.0
    %748 = vmatprep.subr.mxu0 0.0
    %749 = vmatpush1.msra.mxu0 0.0
    %750 = vmatprep.subr.mxu0 0.0
    %751 = vmatpush1.msra.mxu0 0.0
    %752 = vmatprep.subr.mxu0 0.0
    %753 = vmatpush1.msra.mxu0 0.0
    %754 = vmatprep.subr.mxu0 0.0
    %755 = vmatpush1.msra.mxu0 0.0
    %756 = vmatprep.subr.mxu0 0.0
    %757 = vmatpush1.msra.mxu0 0.0
    %758 = vmatprep.subr.mxu0 0.0
    %759 = vmatpush1.msra.mxu0 0.0
    %760 = vmatprep.subr.mxu0 0.0
    %761 = vmatpush1.msra.mxu0 0.0
    %762 = vmatprep.subr.mxu0 0.0
    %763 = vmatpush1.msra.mxu0 0.0
    %764 = vmatprep.subr.mxu0 0.0
    %765 = vmatpush1.msra.mxu0 0.0
    %766 = vmatprep.subr.mxu0 0.0
    %767 = vmatpush1.msra.mxu0 0.0
    %768 = vmatprep.subr.mxu0 0.0
    %769 = vmatpush1.msra.mxu0 0.0
    %770 = vmatprep.subr.mxu0 0.0
    %771 = vmatpush1.msra.mxu0 0.0
    %772 = vmatprep.subr.mxu0 0.0
    %773 = vmatpush1.msra.mxu0 0.0
    %774 = vmatprep.subr.mxu0 0.0
    %775 = vmatpush1.msra.mxu0 0.0
    %776 = vmatprep.subr.mxu0 0.0
    %777 = vmatpush1.msra.mxu0 0.0
    %778 = vmatprep.mubr.f32.mxu0 0.0
    %779 = vmatmul.mubr.f32.gmra.mrb[0].mxu0 %v712
    %v780 = vpop.f32.mrb[0].mxu0
    %v781 = vadd.f32 0.0, %v780
    %v782 = vpop.f32.mrb[0].mxu0
    %783 = vdwg.mxu0
    %784 = vrot.lane.b32.xlu0 %v222, 120
    %v785 = vpop.permute.xlu0 %784
    %786 = vrot.lane.b32.xlu0 %v324, 120
    %v787 = vpop.permute.xlu0 %786
    %788 = vrot.lane.b32.xlu0 %v329, 120
    %v789 = vpop.permute.xlu0 %788
    %v790 = vsel %vm454, %v785, 0
    %v792 = vsel %vm454, %v787, 0
    %v794 = vsel %vm454, %v789, 0
    %796 = vmatprep.subr.mxu0 0.0
    %797 = vmatpush1.xpose.msra.mxu0 %v792
    %798 = vmatprep.subr.mxu0 0.0
    %799 = vmatpush1.xpose.msra.mxu0 %v794
    %800 = vmatprep.subr.mxu0 0.0
    %801 = vmatpush1.xpose.msra.mxu0 0.0
    %802 = vmatprep.subr.mxu0 0.0
    %803 = vmatpush1.xpose.msra.mxu0 0.0
    %804 = vmatprep.subr.mxu0 0.0
    %805 = vmatpush1.xpose.msra.mxu0 0.0
    %806 = vmatprep.subr.mxu0 0.0
    %807 = vmatpush1.xpose.msra.mxu0 0.0
    %808 = vmatprep.subr.mxu0 0.0
    %809 = vmatpush1.xpose.msra.mxu0 0.0
    %810 = vmatprep.subr.mxu0 0.0
    %811 = vmatpush1.xpose.msra.mxu0 0.0
    %812 = vmatprep.subr.mxu0 0.0
    %813 = vmatpush1.xpose.msra.mxu0 0.0
    %814 = vmatprep.subr.mxu0 0.0
    %815 = vmatpush1.xpose.msra.mxu0 0.0
    %816 = vmatprep.subr.mxu0 0.0
    %817 = vmatpush1.xpose.msra.mxu0 0.0
    %818 = vmatprep.subr.mxu0 0.0
    %819 = vmatpush1.xpose.msra.mxu0 0.0
    %820 = vmatprep.subr.mxu0 0.0
    %821 = vmatpush1.xpose.msra.mxu0 0.0
    %822 = vmatprep.subr.mxu0 0.0
    %823 = vmatpush1.xpose.msra.mxu0 0.0
    %824 = vmatprep.subr.mxu0 0.0
    %825 = vmatpush1.xpose.msra.mxu0 0.0
    %826 = vmatprep.subr.mxu0 0.0
    %827 = vmatpush1.xpose.msra.mxu0 0.0
    %828 = vmatprep.subr.mxu0 0.0
    %829 = vmatpush1.xpose.msra.mxu0 0.0
    %830 = vmatprep.subr.mxu0 0.0
    %831 = vmatpush1.xpose.msra.mxu0 0.0
    %832 = vmatprep.subr.mxu0 0.0
    %833 = vmatpush1.xpose.msra.mxu0 0.0
    %834 = vmatprep.subr.mxu0 0.0
    %835 = vmatpush1.xpose.msra.mxu0 0.0
    %836 = vmatprep.subr.mxu0 0.0
    %837 = vmatpush1.xpose.msra.mxu0 0.0
    %838 = vmatprep.subr.mxu0 0.0
    %839 = vmatpush1.xpose.msra.mxu0 0.0
    %840 = vmatprep.subr.mxu0 0.0
    %841 = vmatpush1.xpose.msra.mxu0 0.0
    %842 = vmatprep.subr.mxu0 0.0
    %843 = vmatpush1.xpose.msra.mxu0 0.0
    %844 = vmatprep.subr.mxu0 0.0
    %845 = vmatpush1.xpose.msra.mxu0 0.0
    %846 = vmatprep.subr.mxu0 0.0
    %847 = vmatpush1.xpose.msra.mxu0 0.0
    %848 = vmatprep.subr.mxu0 0.0
    %849 = vmatpush1.xpose.msra.mxu0 0.0
    %850 = vmatprep.subr.mxu0 0.0
    %851 = vmatpush1.xpose.msra.mxu0 0.0
    %852 = vmatprep.subr.mxu0 0.0
    %853 = vmatpush1.xpose.msra.mxu0 0.0
    %854 = vmatprep.subr.mxu0 0.0
    %855 = vmatpush1.xpose.msra.mxu0 0.0
    %856 = vmatprep.subr.mxu0 0.0
    %857 = vmatpush1.xpose.msra.mxu0 0.0
    %858 = vmatprep.subr.mxu0 0.0
    %859 = vmatpush1.xpose.msra.mxu0 0.0
    %860 = vmatprep.mubr.f32.mxu0 0.0
    %861 = vmatmul.mubr.f32.gmra.mrb[0].mxu0 %v790
    %v862 = vpop.f32.mrb[0].mxu0
    %v863 = vadd.f32 0.0, %v862
    %v864 = vpop.f32.mrb[0].mxu0
    %865 = vdwg.mxu0
    %866 = vrot.lane.b32.xlu0 %v227, 120
    %v867 = vpop.permute.xlu0 %866
    %868 = vrot.lane.b32.xlu0 %v334, 120
    %v869 = vpop.permute.xlu0 %868
    %870 = vrot.lane.b32.xlu0 %v339, 120
    %v871 = vpop.permute.xlu0 %870
    %v872 = vsel %vm454, %v867, 0
    %v874 = vsel %vm454, %v869, 0
    %v876 = vsel %vm454, %v871, 0
    %878 = vmatprep.subr.mxu0 0.0
    %879 = vmatpush1.xpose.msra.mxu0 %v874
    %880 = vmatprep.subr.mxu0 0.0
    %881 = vmatpush1.xpose.msra.mxu0 %v876
    %882 = vmatprep.subr.mxu0 0.0
    %883 = vmatpush1.xpose.msra.mxu0 0.0
    %884 = vmatprep.subr.mxu0 0.0
    %885 = vmatpush1.xpose.msra.mxu0 0.0
    %886 = vmatprep.subr.mxu0 0.0
    %887 = vmatpush1.xpose.msra.mxu0 0.0
    %888 = vmatprep.subr.mxu0 0.0
    %889 = vmatpush1.xpose.msra.mxu0 0.0
    %890 = vmatprep.subr.mxu0 0.0
    %891 = vmatpush1.xpose.msra.mxu0 0.0
    %892 = vmatprep.subr.mxu0 0.0
    %893 = vmatpush1.xpose.msra.mxu0 0.0
    %894 = vmatprep.subr.mxu0 0.0
    %895 = vmatpush1.xpose.msra.mxu0 0.0
    %896 = vmatprep.subr.mxu0 0.0
    %897 = vmatpush1.xpose.msra.mxu0 0.0
    %898 = vmatprep.subr.mxu0 0.0
    %899 = vmatpush1.xpose.msra.mxu0 0.0
    %900 = vmatprep.subr.mxu0 0.0
    %901 = vmatpush1.xpose.msra.mxu0 0.0
    %902 = vmatprep.subr.mxu0 0.0
    %903 = vmatpush1.xpose.msra.mxu0 0.0
    %904 = vmatprep.subr.mxu0 0.0
    %905 = vmatpush1.xpose.msra.mxu0 0.0
    %906 = vmatprep.subr.mxu0 0.0
    %907 = vmatpush1.xpose.msra.mxu0 0.0
    %908 = vmatprep.subr.mxu0 0.0
    %909 = vmatpush1.xpose.msra.mxu0 0.0
    %910 = vmatprep.subr.mxu0 0.0
    %911 = vmatpush1.xpose.msra.mxu0 0.0
    %912 = vmatprep.subr.mxu0 0.0
    %913 = vmatpush1.xpose.msra.mxu0 0.0
    %914 = vmatprep.subr.mxu0 0.0
    %915 = vmatpush1.xpose.msra.mxu0 0.0
    %916 = vmatprep.subr.mxu0 0.0
    %917 = vmatpush1.xpose.msra.mxu0 0.0
    %918 = vmatprep.subr.mxu0 0.0
    %919 = vmatpush1.xpose.msra.mxu0 0.0
    %920 = vmatprep.subr.mxu0 0.0
    %921 = vmatpush1.xpose.msra.mxu0 0.0
    %922 = vmatprep.subr.mxu0 0.0
    %923 = vmatpush1.xpose.msra.mxu0 0.0
    %924 = vmatprep.subr.mxu0 0.0
    %925 = vmatpush1.xpose.msra.mxu0 0.0
    %926 = vmatprep.subr.mxu0 0.0
    %927 = vmatpush1.xpose.msra.mxu0 0.0
    %928 = vmatprep.subr.mxu0 0.0
    %929 = vmatpush1.xpose.msra.mxu0 0.0
    %930 = vmatprep.subr.mxu0 0.0
    %931 = vmatpush1.xpose.msra.mxu0 0.0
    %932 = vmatprep.subr.mxu0 0.0
    %933 = vmatpush1.xpose.msra.mxu0 0.0
    %934 = vmatprep.subr.mxu0 0.0
    %935 = vmatpush1.xpose.msra.mxu0 0.0
    %936 = vmatprep.subr.mxu0 0.0
    %937 = vmatpush1.xpose.msra.mxu0 0.0
    %938 = vmatprep.subr.mxu0 0.0
    %939 = vmatpush1.xpose.msra.mxu0 0.0
    %940 = vmatprep.subr.mxu0 0.0
    %941 = vmatpush1.xpose.msra.mxu0 0.0
    %942 = vmatprep.mubr.f32.mxu0 0.0
    %943 = vmatmul.mubr.f32.gmra.mrb[0].mxu0 %v872
    %v944 = vpop.f32.mrb[0].mxu0
    %v945 = vadd.f32 0.0, %v944
    %v946 = vpop.f32.mrb[0].mxu0
    %947 = vdwg.mxu0
    %v948 = vsel %vm613, %v863, -inf
    %949 = vmax.xlane.f32.xlu0 %v948
    %v950 = vpop.xlane.xlu0 %949
    %v951 = vsel %vm613, %v945, -inf
    %952 = vmax.xlane.f32.xlu0 %v951
    %v953 = vpop.xlane.xlu0 %952
    %v954 = vsub.f32 %v863, %v950
    %v955 = vsub.f32 %v945, %v953
    %v956 = vmul.f32 %v954, 1.442695
    %v957 = vpow.pop %v956
    %v958 = vmul.f32 %v955, 1.442695
    %v959 = vpow.pop %v958
    %v960 = vsel %vm613, %v957, 0.0
    %961 = vadd.xlane.f32.xlu0 %v960
    %v962 = vpop.xlane.xlu0 %961
    %v963 = vsel %vm613, %v959, 0.0
    %964 = vadd.xlane.f32.xlu0 %v963
    %v965 = vpop.xlane.xlu0 %964
    %v966 = vrcp.pop %v962
    %v967 = vrcp.pop %v965
    %v968 = vmul.f32 %v957, %v966
    %v969 = vmul.f32 %v959, %v967
    %s970 = scalar_lea.vmem [#allocation14], 8
    %971 = vst.msk [vmem:[%s970] sm:$0xff] %vm613, %v968
    %972 = vst.msk [vmem:[%s970 + $0x20] sm:$0xff] %vm613, %v969
    %975 = vrot.lane.b32.xlu0 %v436, 120
    %v976 = vpop.permute.xlu0 %975
    %977 = vrot.lane.b32.xlu0 %v441, 120
    %v978 = vpop.permute.xlu0 %977
    %v982 = vsel %vm613, %v968, 0
    %984 = vmatprep.subr.mxu0 0.0
    %985 = vmatpush1.msra.mxu0 %v976
    %986 = vmatprep.subr.mxu0 0.0
    %987 = vmatpush1.msra.mxu0 %v978
    %988 = vmatprep.subr.mxu0 0.0
    %989 = vmatpush1.msra.mxu0 0.0
    %990 = vmatprep.subr.mxu0 0.0
    %991 = vmatpush1.msra.mxu0 0.0
    %992 = vmatprep.subr.mxu0 0.0
    %993 = vmatpush1.msra.mxu0 0.0
    %994 = vmatprep.subr.mxu0 0.0
    %995 = vmatpush1.msra.mxu0 0.0
    %996 = vmatprep.subr.mxu0 0.0
    %997 = vmatpush1.msra.mxu0 0.0
    %998 = vmatprep.subr.mxu0 0.0
    %999 = vmatpush1.msra.mxu0 0.0
    %1000 = vmatprep.subr.mxu0 0.0
    %1001 = vmatpush1.msra.mxu0 0.0
    %1002 = vmatprep.subr.mxu0 0.0
    %1003 = vmatpush1.msra.mxu0 0.0
    %1004 = vmatprep.subr.mxu0 0.0
    %1005 = vmatpush1.msra.mxu0 0.0
    %1006 = vmatprep.subr.mxu0 0.0
    %1007 = vmatpush1.msra.mxu0 0.0
    %1008 = vmatprep.subr.mxu0 0.0
    %1009 = vmatpush1.msra.mxu0 0.0
    %1010 = vmatprep.subr.mxu0 0.0
    %1011 = vmatpush1.msra.mxu0 0.0
    %1012 = vmatprep.subr.mxu0 0.0
    %1013 = vmatpush1.msra.mxu0 0.0
    %1014 = vmatprep.subr.mxu0 0.0
    %1015 = vmatpush1.msra.mxu0 0.0
    %1016 = vmatprep.subr.mxu0 0.0
    %1017 = vmatpush1.msra.mxu0 0.0
    %1018 = vmatprep.subr.mxu0 0.0
    %1019 = vmatpush1.msra.mxu0 0.0
    %1020 = vmatprep.subr.mxu0 0.0
    %1021 = vmatpush1.msra.mxu0 0.0
    %1022 = vmatprep.subr.mxu0 0.0
    %1023 = vmatpush1.msra.mxu0 0.0
    %1024 = vmatprep.subr.mxu0 0.0
    %1025 = vmatpush1.msra.mxu0 0.0
    %1026 = vmatprep.subr.mxu0 0.0
    %1027 = vmatpush1.msra.mxu0 0.0
    %1028 = vmatprep.subr.mxu0 0.0
    %1029 = vmatpush1.msra.mxu0 0.0
    %1030 = vmatprep.subr.mxu0 0.0
    %1031 = vmatpush1.msra.mxu0 0.0
    %1032 = vmatprep.subr.mxu0 0.0
    %1033 = vmatpush1.msra.mxu0 0.0
    %1034 = vmatprep.subr.mxu0 0.0
    %1035 = vmatpush1.msra.mxu0 0.0
    %1036 = vmatprep.subr.mxu0 0.0
    %1037 = vmatpush1.msra.mxu0 0.0
    %1038 = vmatprep.subr.mxu0 0.0
    %1039 = vmatpush1.msra.mxu0 0.0
    %1040 = vmatprep.subr.mxu0 0.0
    %1041 = vmatpush1.msra.mxu0 0.0
    %1042 = vmatprep.subr.mxu0 0.0
    %1043 = vmatpush1.msra.mxu0 0.0
    %1044 = vmatprep.subr.mxu0 0.0
    %1045 = vmatpush1.msra.mxu0 0.0
    %1046 = vmatprep.subr.mxu0 0.0
    %1047 = vmatpush1.msra.mxu0 0.0
    %1048 = vmatprep.mubr.f32.mxu0 0.0
    %1049 = vmatmul.mubr.f32.gmra.mrb[0].mxu0 %v982
    %v1050 = vpop.f32.mrb[0].mxu0
    %v1051 = vadd.f32 0.0, %v1050
    %v1052 = vpop.f32.mrb[0].mxu0
    %1053 = vdwg.mxu0
    %1056 = vrot.lane.b32.xlu0 %v446, 120
    %v1057 = vpop.permute.xlu0 %1056
    %1058 = vrot.lane.b32.xlu0 %v451, 120
    %v1059 = vpop.permute.xlu0 %1058
    %v1063 = vsel %vm613, %v969, 0
    %1065 = vmatprep.subr.mxu0 0.0
    %1066 = vmatpush1.msra.mxu0 %v1057
    %1067 = vmatprep.subr.mxu0 0.0
    %1068 = vmatpush1.msra.mxu0 %v1059
    %1069 = vmatprep.subr.mxu0 0.0
    %1070 = vmatpush1.msra.mxu0 0.0
    %1071 = vmatprep.subr.mxu0 0.0
    %1072 = vmatpush1.msra.mxu0 0.0
    %1073 = vmatprep.subr.mxu0 0.0
    %1074 = vmatpush1.msra.mxu0 0.0
    %1075 = vmatprep.subr.mxu0 0.0
    %1076 = vmatpush1.msra.mxu0 0.0
    %1077 = vmatprep.subr.mxu0 0.0
    %1078 = vmatpush1.msra.mxu0 0.0
    %1079 = vmatprep.subr.mxu0 0.0
    %1080 = vmatpush1.msra.mxu0 0.0
    %1081 = vmatprep.subr.mxu0 0.0
    %1082 = vmatpush1.msra.mxu0 0.0
    %1083 = vmatprep.subr.mxu0 0.0
    %1084 = vmatpush1.msra.mxu0 0.0
    %1085 = vmatprep.subr.mxu0 0.0
    %1086 = vmatpush1.msra.mxu0 0.0
    %1087 = vmatprep.subr.mxu0 0.0
    %1088 = vmatpush1.msra.mxu0 0.0
    %1089 = vmatprep.subr.mxu0 0.0
    %1090 = vmatpush1.msra.mxu0 0.0
    %1091 = vmatprep.subr.mxu0 0.0
    %1092 = vmatpush1.msra.mxu0 0.0
    %1093 = vmatprep.subr.mxu0 0.0
    %1094 = vmatpush1.msra.mxu0 0.0
    %1095 = vmatprep.subr.mxu0 0.0
    %1096 = vmatpush1.msra.mxu0 0.0
    %1097 = vmatprep.subr.mxu0 0.0
    %1098 = vmatpush1.msra.mxu0 0.0
    %1099 = vmatprep.subr.mxu0 0.0
    %1100 = vmatpush1.msra.mxu0 0.0
    %1101 = vmatprep.subr.mxu0 0.0
    %1102 = vmatpush1.msra.mxu0 0.0
    %1103 = vmatprep.subr.mxu0 0.0
    %1104 = vmatpush1.msra.mxu0 0.0
    %1105 = vmatprep.subr.mxu0 0.0
    %1106 = vmatpush1.msra.mxu0 0.0
    %1107 = vmatprep.subr.mxu0 0.0
    %1108 = vmatpush1.msra.mxu0 0.0
    %1109 = vmatprep.subr.mxu0 0.0
    %1110 = vmatpush1.msra.mxu0 0.0
    %1111 = vmatprep.subr.mxu0 0.0
    %1112 = vmatpush1.msra.mxu0 0.0
    %1113 = vmatprep.subr.mxu0 0.0
    %1114 = vmatpush1.msra.mxu0 0.0
    %1115 = vmatprep.subr.mxu0 0.0
    %1116 = vmatpush1.msra.mxu0 0.0
    %1117 = vmatprep.subr.mxu0 0.0
    %1118 = vmatpush1.msra.mxu0 0.0
    %1119 = vmatprep.subr.mxu0 0.0
    %1120 = vmatpush1.msra.mxu0 0.0
    %1121 = vmatprep.subr.mxu0 0.0
    %1122 = vmatpush1.msra.mxu0 0.0
    %1123 = vmatprep.subr.mxu0 0.0
    %1124 = vmatpush1.msra.mxu0 0.0
    %1125 = vmatprep.subr.mxu0 0.0
    %1126 = vmatpush1.msra.mxu0 0.0
    %1127 = vmatprep.subr.mxu0 0.0
    %1128 = vmatpush1.msra.mxu0 0.0
    %1129 = vmatprep.mubr.f32.mxu0 0.0
    %1130 = vmatmul.mubr.f32.gmra.mrb[0].mxu0 %v1063
    %v1131 = vpop.f32.mrb[0].mxu0
    %v1132 = vadd.f32 0.0, %v1131
    %v1133 = vpop.f32.mrb[0].mxu0
    %1134 = vdwg.mxu0
    %1135 = vrot.lane.b32.xlu0 %v222, 112
    %v1136 = vpop.permute.xlu0 %1135
    %1137 = vrot.lane.b32.xlu0 %v324, 112
    %v1138 = vpop.permute.xlu0 %1137
    %1139 = vrot.lane.b32.xlu0 %v329, 112
    %v1140 = vpop.permute.xlu0 %1139
    %v1141 = vsel %vm454, %v1136, 0
    %v1143 = vsel %vm454, %v1138, 0
    %v1145 = vsel %vm454, %v1140, 0
    %1147 = vmatprep.subr.mxu0 0.0
    %1148 = vmatpush1.xpose.msra.mxu0 %v1143
    %1149 = vmatprep.subr.mxu0 0.0
    %1150 = vmatpush1.xpose.msra.mxu0 %v1145
    %1151 = vmatprep.subr.mxu0 0.0
    %1152 = vmatpush1.xpose.msra.mxu0 0.0
    %1153 = vmatprep.subr.mxu0 0.0
    %1154 = vmatpush1.xpose.msra.mxu0 0.0
    %1155 = vmatprep.subr.mxu0 0.0
    %1156 = vmatpush1.xpose.msra.mxu0 0.0
    %1157 = vmatprep.subr.mxu0 0.0
    %1158 = vmatpush1.xpose.msra.mxu0 0.0
    %1159 = vmatprep.subr.mxu0 0.0
    %1160 = vmatpush1.xpose.msra.mxu0 0.0
    %1161 = vmatprep.subr.mxu0 0.0
    %1162 = vmatpush1.xpose.msra.mxu0 0.0
    %1163 = vmatprep.subr.mxu0 0.0
    %1164 = vmatpush1.xpose.msra.mxu0 0.0
    %1165 = vmatprep.subr.mxu0 0.0
    %1166 = vmatpush1.xpose.msra.mxu0 0.0
    %1167 = vmatprep.subr.mxu0 0.0
    %1168 = vmatpush1.xpose.msra.mxu0 0.0
    %1169 = vmatprep.subr.mxu0 0.0
    %1170 = vmatpush1.xpose.msra.mxu0 0.0
    %1171 = vmatprep.subr.mxu0 0.0
    %1172 = vmatpush1.xpose.msra.mxu0 0.0
    %1173 = vmatprep.subr.mxu0 0.0
    %1174 = vmatpush1.xpose.msra.mxu0 0.0
    %1175 = vmatprep.subr.mxu0 0.0
    %1176 = vmatpush1.xpose.msra.mxu0 0.0
    %1177 = vmatprep.subr.mxu0 0.0
    %1178 = vmatpush1.xpose.msra.mxu0 0.0
    %1179 = vmatprep.subr.mxu0 0.0
    %1180 = vmatpush1.xpose.msra.mxu0 0.0
    %1181 = vmatprep.subr.mxu0 0.0
    %1182 = vmatpush1.xpose.msra.mxu0 0.0
    %1183 = vmatprep.subr.mxu0 0.0
    %1184 = vmatpush1.xpose.msra.mxu0 0.0
    %1185 = vmatprep.subr.mxu0 0.0
    %1186 = vmatpush1.xpose.msra.mxu0 0.0
    %1187 = vmatprep.subr.mxu0 0.0
    %1188 = vmatpush1.xpose.msra.mxu0 0.0
    %1189 = vmatprep.subr.mxu0 0.0
    %1190 = vmatpush1.xpose.msra.mxu0 0.0
    %1191 = vmatprep.subr.mxu0 0.0
    %1192 = vmatpush1.xpose.msra.mxu0 0.0
    %1193 = vmatprep.subr.mxu0 0.0
    %1194 = vmatpush1.xpose.msra.mxu0 0.0
    %1195 = vmatprep.subr.mxu0 0.0
    %1196 = vmatpush1.xpose.msra.mxu0 0.0
    %1197 = vmatprep.subr.mxu0 0.0
    %1198 = vmatpush1.xpose.msra.mxu0 0.0
    %1199 = vmatprep.subr.mxu0 0.0
    %1200 = vmatpush1.xpose.msra.mxu0 0.0
    %1201 = vmatprep.subr.mxu0 0.0
    %1202 = vmatpush1.xpose.msra.mxu0 0.0
    %1203 = vmatprep.subr.mxu0 0.0
    %1204 = vmatpush1.xpose.msra.mxu0 0.0
    %1205 = vmatprep.subr.mxu0 0.0
    %1206 = vmatpush1.xpose.msra.mxu0 0.0
    %1207 = vmatprep.subr.mxu0 0.0
    %1208 = vmatpush1.xpose.msra.mxu0 0.0
    %1209 = vmatprep.subr.mxu0 0.0
    %1210 = vmatpush1.xpose.msra.mxu0 0.0
    %1211 = vmatprep.mubr.f32.mxu0 0.0
    %1212 = vmatmul.mubr.f32.gmra.mrb[0].mxu0 %v1141
    %v1213 = vpop.f32.mrb[0].mxu0
    %v1214 = vadd.f32 0.0, %v1213
    %v1215 = vpop.f32.mrb[0].mxu0
    %1216 = vdwg.mxu0
    %1217 = vrot.lane.b32.xlu0 %v227, 112
    %v1218 = vpop.permute.xlu0 %1217
    %1219 = vrot.lane.b32.xlu0 %v334, 112
    %v1220 = vpop.permute.xlu0 %1219
    %1221 = vrot.lane.b32.xlu0 %v339, 112
    %v1222 = vpop.permute.xlu0 %1221
    %v1223 = vsel %vm454, %v1218, 0
    %v1225 = vsel %vm454, %v1220, 0
    %v1227 = vsel %vm454, %v1222, 0
    %1229 = vmatprep.subr.mxu0 0.0
    %1230 = vmatpush1.xpose.msra.mxu0 %v1225
    %1231 = vmatprep.subr.mxu0 0.0
    %1232 = vmatpush1.xpose.msra.mxu0 %v1227
    %1233 = vmatprep.subr.mxu0 0.0
    %1234 = vmatpush1.xpose.msra.mxu0 0.0
    %1235 = vmatprep.subr.mxu0 0.0
    %1236 = vmatpush1.xpose.msra.mxu0 0.0
    %1237 = vmatprep.subr.mxu0 0.0
    %1238 = vmatpush1.xpose.msra.mxu0 0.0
    %1239 = vmatprep.subr.mxu0 0.0
    %1240 = vmatpush1.xpose.msra.mxu0 0.0
    %1241 = vmatprep.subr.mxu0 0.0
    %1242 = vmatpush1.xpose.msra.mxu0 0.0
    %1243 = vmatprep.subr.mxu0 0.0
    %1244 = vmatpush1.xpose.msra.mxu0 0.0
    %1245 = vmatprep.subr.mxu0 0.0
    %1246 = vmatpush1.xpose.msra.mxu0 0.0
    %1247 = vmatprep.subr.mxu0 0.0
    %1248 = vmatpush1.xpose.msra.mxu0 0.0
    %1249 = vmatprep.subr.mxu0 0.0
    %1250 = vmatpush1.xpose.msra.mxu0 0.0
    %1251 = vmatprep.subr.mxu0 0.0
    %1252 = vmatpush1.xpose.msra.mxu0 0.0
    %1253 = vmatprep.subr.mxu0 0.0
    %1254 = vmatpush1.xpose.msra.mxu0 0.0
    %1255 = vmatprep.subr.mxu0 0.0
    %1256 = vmatpush1.xpose.msra.mxu0 0.0
    %1257 = vmatprep.subr.mxu0 0.0
    %1258 = vmatpush1.xpose.msra.mxu0 0.0
    %1259 = vmatprep.subr.mxu0 0.0
    %1260 = vmatpush1.xpose.msra.mxu0 0.0
    %1261 = vmatprep.subr.mxu0 0.0
    %1262 = vmatpush1.xpose.msra.mxu0 0.0
    %1263 = vmatprep.subr.mxu0 0.0
    %1264 = vmatpush1.xpose.msra.mxu0 0.0
    %1265 = vmatprep.subr.mxu0 0.0
    %1266 = vmatpush1.xpose.msra.mxu0 0.0
    %1267 = vmatprep.subr.mxu0 0.0
    %1268 = vmatpush1.xpose.msra.mxu0 0.0
    %1269 = vmatprep.subr.mxu0 0.0
    %1270 = vmatpush1.xpose.msra.mxu0 0.0
    %1271 = vmatprep.subr.mxu0 0.0
    %1272 = vmatpush1.xpose.msra.mxu0 0.0
    %1273 = vmatprep.subr.mxu0 0.0
    %1274 = vmatpush1.xpose.msra.mxu0 0.0
    %1275 = vmatprep.subr.mxu0 0.0
    %1276 = vmatpush1.xpose.msra.mxu0 0.0
    %1277 = vmatprep.subr.mxu0 0.0
    %1278 = vmatpush1.xpose.msra.mxu0 0.0
    %1279 = vmatprep.subr.mxu0 0.0
    %1280 = vmatpush1.xpose.msra.mxu0 0.0
    %1281 = vmatprep.subr.mxu0 0.0
    %1282 = vmatpush1.xpose.msra.mxu0 0.0
    %1283 = vmatprep.subr.mxu0 0.0
    %1284 = vmatpush1.xpose.msra.mxu0 0.0
    %1285 = vmatprep.subr.mxu0 0.0
    %1286 = vmatpush1.xpose.msra.mxu0 0.0
    %1287 = vmatprep.subr.mxu0 0.0
    %1288 = vmatpush1.xpose.msra.mxu0 0.0
    %1289 = vmatprep.subr.mxu0 0.0
    %1290 = vmatpush1.xpose.msra.mxu0 0.0
    %1291 = vmatprep.subr.mxu0 0.0
    %1292 = vmatpush1.xpose.msra.mxu0 0.0
    %1293 = vmatprep.mubr.f32.mxu0 0.0
    %1294 = vmatmul.mubr.f32.gmra.mrb[0].mxu0 %v1223
    %v1295 = vpop.f32.mrb[0].mxu0
    %v1296 = vadd.f32 0.0, %v1295
    %v1297 = vpop.f32.mrb[0].mxu0
    %1298 = vdwg.mxu0
    %v1299 = vsel %vm613, %v1214, -inf
    %1300 = vmax.xlane.f32.xlu0 %v1299
    %v1301 = vpop.xlane.xlu0 %1300
    %v1302 = vsel %vm613, %v1296, -inf
    %1303 = vmax.xlane.f32.xlu0 %v1302
    %v1304 = vpop.xlane.xlu0 %1303
    %v1305 = vsub.f32 %v1214, %v1301
    %v1306 = vsub.f32 %v1296, %v1304
    %v1307 = vmul.f32 %v1305, 1.442695
    %v1308 = vpow.pop %v1307
    %v1309 = vmul.f32 %v1306, 1.442695
    %v1310 = vpow.pop %v1309
    %v1311 = vsel %vm613, %v1308, 0.0
    %1312 = vadd.xlane.f32.xlu0 %v1311
    %v1313 = vpop.xlane.xlu0 %1312
    %v1314 = vsel %vm613, %v1310, 0.0
    %1315 = vadd.xlane.f32.xlu0 %v1314
    %v1316 = vpop.xlane.xlu0 %1315
    %v1317 = vrcp.pop %v1313
    %v1318 = vrcp.pop %v1316
    %v1319 = vmul.f32 %v1308, %v1317
    %v1320 = vmul.f32 %v1310, %v1318
    %s1321 = scalar_lea.vmem [#allocation14], 16
    %1322 = vst.msk [vmem:[%s1321] sm:$0xff] %vm613, %v1319
    %1323 = vst.msk [vmem:[%s1321 + $0x20] sm:$0xff] %vm613, %v1320
    %1324 = vrot.lane.b32.xlu0 %v436, 112
    %v1325 = vpop.permute.xlu0 %1324
    %1326 = vrot.lane.b32.xlu0 %v441, 112
    %v1327 = vpop.permute.xlu0 %1326
    %v1331 = vsel %vm613, %v1319, 0
    %1333 = vmatprep.subr.mxu0 0.0
    %1334 = vmatpush1.msra.mxu0 %v1325
    %1335 = vmatprep.subr.mxu0 0.0
    %1336 = vmatpush1.msra.mxu0 %v1327
    %1337 = vmatprep.subr.mxu0 0.0
    %1338 = vmatpush1.msra.mxu0 0.0
    %1339 = vmatprep.subr.mxu0 0.0
    %1340 = vmatpush1.msra.mxu0 0.0
    %1341 = vmatprep.subr.mxu0 0.0
    %1342 = vmatpush1.msra.mxu0 0.0
    %1343 = vmatprep.subr.mxu0 0.0
    %1344 = vmatpush1.msra.mxu0 0.0
    %1345 = vmatprep.subr.mxu0 0.0
    %1346 = vmatpush1.msra.mxu0 0.0
    %1347 = vmatprep.subr.mxu0 0.0
    %1348 = vmatpush1.msra.mxu0 0.0
    %1349 = vmatprep.subr.mxu0 0.0
    %1350 = vmatpush1.msra.mxu0 0.0
    %1351 = vmatprep.subr.mxu0 0.0
    %1352 = vmatpush1.msra.mxu0 0.0
    %1353 = vmatprep.subr.mxu0 0.0
    %1354 = vmatpush1.msra.mxu0 0.0
    %1355 = vmatprep.subr.mxu0 0.0
    %1356 = vmatpush1.msra.mxu0 0.0
    %1357 = vmatprep.subr.mxu0 0.0
    %1358 = vmatpush1.msra.mxu0 0.0
    %1359 = vmatprep.subr.mxu0 0.0
    %1360 = vmatpush1.msra.mxu0 0.0
    %1361 = vmatprep.subr.mxu0 0.0
    %1362 = vmatpush1.msra.mxu0 0.0
    %1363 = vmatprep.subr.mxu0 0.0
    %1364 = vmatpush1.msra.mxu0 0.0
    %1365 = vmatprep.subr.mxu0 0.0
    %1366 = vmatpush1.msra.mxu0 0.0
    %1367 = vmatprep.subr.mxu0 0.0
    %1368 = vmatpush1.msra.mxu0 0.0
    %1369 = vmatprep.subr.mxu0 0.0
    %1370 = vmatpush1.msra.mxu0 0.0
    %1371 = vmatprep.subr.mxu0 0.0
    %1372 = vmatpush1.msra.mxu0 0.0
    %1373 = vmatprep.subr.mxu0 0.0
    %1374 = vmatpush1.msra.mxu0 0.0
    %1375 = vmatprep.subr.mxu0 0.0
    %1376 = vmatpush1.msra.mxu0 0.0
    %1377 = vmatprep.subr.mxu0 0.0
    %1378 = vmatpush1.msra.mxu0 0.0
    %1379 = vmatprep.subr.mxu0 0.0
    %1380 = vmatpush1.msra.mxu0 0.0
    %1381 = vmatprep.subr.mxu0 0.0
    %1382 = vmatpush1.msra.mxu0 0.0
    %1383 = vmatprep.subr.mxu0 0.0
    %1384 = vmatpush1.msra.mxu0 0.0
    %1385 = vmatprep.subr.mxu0 0.0
    %1386 = vmatpush1.msra.mxu0 0.0
    %1387 = vmatprep.subr.mxu0 0.0
    %1388 = vmatpush1.msra.mxu0 0.0
    %1389 = vmatprep.subr.mxu0 0.0
    %1390 = vmatpush1.msra.mxu0 0.0
    %1391 = vmatprep.subr.mxu0 0.0
    %1392 = vmatpush1.msra.mxu0 0.0
    %1393 = vmatprep.subr.mxu0 0.0
    %1394 = vmatpush1.msra.mxu0 0.0
    %1395 = vmatprep.subr.mxu0 0.0
    %1396 = vmatpush1.msra.mxu0 0.0
    %1397 = vmatprep.mubr.f32.mxu0 0.0
    %1398 = vmatmul.mubr.f32.gmra.mrb[0].mxu0 %v1331
    %v1399 = vpop.f32.mrb[0].mxu0
    %v1400 = vadd.f32 0.0, %v1399
    %v1401 = vpop.f32.mrb[0].mxu0
    %1402 = vdwg.mxu0
    %1403 = vrot.lane.b32.xlu0 %v446, 112
    %v1404 = vpop.permute.xlu0 %1403
    %1405 = vrot.lane.b32.xlu0 %v451, 112
    %v1406 = vpop.permute.xlu0 %1405
    %v1410 = vsel %vm613, %v1320, 0
    %1412 = vmatprep.subr.mxu0 0.0
    %1413 = vmatpush1.msra.mxu0 %v1404
    %1414 = vmatprep.subr.mxu0 0.0
    %1415 = vmatpush1.msra.mxu0 %v1406
    %1416 = vmatprep.subr.mxu0 0.0
    %1417 = vmatpush1.msra.mxu0 0.0
    %1418 = vmatprep.subr.mxu0 0.0
    %1419 = vmatpush1.msra.mxu0 0.0
    %1420 = vmatprep.subr.mxu0 0.0
    %1421 = vmatpush1.msra.mxu0 0.0
    %1422 = vmatprep.subr.mxu0 0.0
    %1423 = vmatpush1.msra.mxu0 0.0
    %1424 = vmatprep.subr.mxu0 0.0
    %1425 = vmatpush1.msra.mxu0 0.0
    %1426 = vmatprep.subr.mxu0 0.0
    %1427 = vmatpush1.msra.mxu0 0.0
    %1428 = vmatprep.subr.mxu0 0.0
    %1429 = vmatpush1.msra.mxu0 0.0
    %1430 = vmatprep.subr.mxu0 0.0
    %1431 = vmatpush1.msra.mxu0 0.0
    %1432 = vmatprep.subr.mxu0 0.0
    %1433 = vmatpush1.msra.mxu0 0.0
    %1434 = vmatprep.subr.mxu0 0.0
    %1435 = vmatpush1.msra.mxu0 0.0
    %1436 = vmatprep.subr.mxu0 0.0
    %1437 = vmatpush1.msra.mxu0 0.0
    %1438 = vmatprep.subr.mxu0 0.0
    %1439 = vmatpush1.msra.mxu0 0.0
    %1440 = vmatprep.subr.mxu0 0.0
    %1441 = vmatpush1.msra.mxu0 0.0
    %1442 = vmatprep.subr.mxu0 0.0
    %1443 = vmatpush1.msra.mxu0 0.0
    %1444 = vmatprep.subr.mxu0 0.0
    %1445 = vmatpush1.msra.mxu0 0.0
    %1446 = vmatprep.subr.mxu0 0.0
    %1447 = vmatpush1.msra.mxu0 0.0
    %1448 = vmatprep.subr.mxu0 0.0
    %1449 = vmatpush1.msra.mxu0 0.0
    %1450 = vmatprep.subr.mxu0 0.0
    %1451 = vmatpush1.msra.mxu0 0.0
    %1452 = vmatprep.subr.mxu0 0.0
    %1453 = vmatpush1.msra.mxu0 0.0
    %1454 = vmatprep.subr.mxu0 0.0
    %1455 = vmatpush1.msra.mxu0 0.0
    %1456 = vmatprep.subr.mxu0 0.0
    %1457 = vmatpush1.msra.mxu0 0.0
    %1458 = vmatprep.subr.mxu0 0.0
    %1459 = vmatpush1.msra.mxu0 0.0
    %1460 = vmatprep.subr.mxu0 0.0
    %1461 = vmatpush1.msra.mxu0 0.0
    %1462 = vmatprep.subr.mxu0 0.0
    %1463 = vmatpush1.msra.mxu0 0.0
    %1464 = vmatprep.subr.mxu0 0.0
    %1465 = vmatpush1.msra.mxu0 0.0
    %1466 = vmatprep.subr.mxu0 0.0
    %1467 = vmatpush1.msra.mxu0 0.0
    %1468 = vmatprep.subr.mxu0 0.0
    %1469 = vmatpush1.msra.mxu0 0.0
    %1470 = vmatprep.subr.mxu0 0.0
    %1471 = vmatpush1.msra.mxu0 0.0
    %1472 = vmatprep.subr.mxu0 0.0
    %1473 = vmatpush1.msra.mxu0 0.0
    %1474 = vmatprep.subr.mxu0 0.0
    %1475 = vmatpush1.msra.mxu0 0.0
    %1476 = vmatprep.mubr.f32.mxu0 0.0
    %1477 = vmatmul.mubr.f32.gmra.mrb[0].mxu0 %v1410
    %v1478 = vpop.f32.mrb[0].mxu0
    %v1479 = vadd.f32 0.0, %v1478
    %v1480 = vpop.f32.mrb[0].mxu0
    %1481 = vdwg.mxu0
    %1482 = vrot.lane.b32.xlu0 %v222, 104
    %v1483 = vpop.permute.xlu0 %1482
    %1484 = vrot.lane.b32.xlu0 %v324, 104
    %v1485 = vpop.permute.xlu0 %1484
    %1486 = vrot.lane.b32.xlu0 %v329, 104
    %v1487 = vpop.permute.xlu0 %1486
    %v1488 = vsel %vm454, %v1483, 0
    %v1490 = vsel %vm454, %v1485, 0
    %v1492 = vsel %vm454, %v1487, 0
    %1494 = vmatprep.subr.mxu0 0.0
    %1495 = vmatpush1.xpose.msra.mxu0 %v1490
    %1496 = vmatprep.subr.mxu0 0.0
    %1497 = vmatpush1.xpose.msra.mxu0 %v1492
    %1498 = vmatprep.subr.mxu0 0.0
    %1499 = vmatpush1.xpose.msra.mxu0 0.0
    %1500 = vmatprep.subr.mxu0 0.0
    %1501 = vmatpush1.xpose.msra.mxu0 0.0
    %1502 = vmatprep.subr.mxu0 0.0
    %1503 = vmatpush1.xpose.msra.mxu0 0.0
    %1504 = vmatprep.subr.mxu0 0.0
    %1505 = vmatpush1.xpose.msra.mxu0 0.0
    %1506 = vmatprep.subr.mxu0 0.0
    %1507 = vmatpush1.xpose.msra.mxu0 0.0
    %1508 = vmatprep.subr.mxu0 0.0
    %1509 = vmatpush1.xpose.msra.mxu0 0.0
    %1510 = vmatprep.subr.mxu0 0.0
    %1511 = vmatpush1.xpose.msra.mxu0 0.0
    %1512 = vmatprep.subr.mxu0 0.0
    %1513 = vmatpush1.xpose.msra.mxu0 0.0
    %1514 = vmatprep.subr.mxu0 0.0
    %1515 = vmatpush1.xpose.msra.mxu0 0.0
    %1516 = vmatprep.subr.mxu0 0.0
    %1517 = vmatpush1.xpose.msra.mxu0 0.0
    %1518 = vmatprep.subr.mxu0 0.0
    %1519 = vmatpush1.xpose.msra.mxu0 0.0
    %1520 = vmatprep.subr.mxu0 0.0
    %1521 = vmatpush1.xpose.msra.mxu0 0.0
    %1522 = vmatprep.subr.mxu0 0.0
    %1523 = vmatpush1.xpose.msra.mxu0 0.0
    %1524 = vmatprep.subr.mxu0 0.0
    %1525 = vmatpush1.xpose.msra.mxu0 0.0
    %1526 = vmatprep.subr.mxu0 0.0
    %1527 = vmatpush1.xpose.msra.mxu0 0.0
    %1528 = vmatprep.subr.mxu0 0.0
    %1529 = vmatpush1.xpose.msra.mxu0 0.0
    %1530 = vmatprep.subr.mxu0 0.0
    %1531 = vmatpush1.xpose.msra.mxu0 0.0
    %1532 = vmatprep.subr.mxu0 0.0
    %1533 = vmatpush1.xpose.msra.mxu0 0.0
    %1534 = vmatprep.subr.mxu0 0.0
    %1535 = vmatpush1.xpose.msra.mxu0 0.0
    %1536 = vmatprep.subr.mxu0 0.0
    %1537 = vmatpush1.xpose.msra.mxu0 0.0
    %1538 = vmatprep.subr.mxu0 0.0
    %1539 = vmatpush1.xpose.msra.mxu0 0.0
    %1540 = vmatprep.subr.mxu0 0.0
    %1541 = vmatpush1.xpose.msra.mxu0 0.0
    %1542 = vmatprep.subr.mxu0 0.0
    %1543 = vmatpush1.xpose.msra.mxu0 0.0
    %1544 = vmatprep.subr.mxu0 0.0
    %1545 = vmatpush1.xpose.msra.mxu0 0.0
    %1546 = vmatprep.subr.mxu0 0.0
    %1547 = vmatpush1.xpose.msra.mxu0 0.0
    %1548 = vmatprep.subr.mxu0 0.0
    %1549 = vmatpush1.xpose.msra.mxu0 0.0
    %1550 = vmatprep.subr.mxu0 0.0
    %1551 = vmatpush1.xpose.msra.mxu0 0.0
    %1552 = vmatprep.subr.mxu0 0.0
    %1553 = vmatpush1.xpose.msra.mxu0 0.0
    %1554 = vmatprep.subr.mxu0 0.0
    %1555 = vmatpush1.xpose.msra.mxu0 0.0
    %1556 = vmatprep.subr.mxu0 0.0
    %1557 = vmatpush1.xpose.msra.mxu0 0.0
    %1558 = vmatprep.mubr.f32.mxu0 0.0
    %1559 = vmatmul.mubr.f32.gmra.mrb[0].mxu0 %v1488
    %v1560 = vpop.f32.mrb[0].mxu0
    %v1561 = vadd.f32 0.0, %v1560
    %v1562 = vpop.f32.mrb[0].mxu0
    %1563 = vdwg.mxu0
    %1564 = vrot.lane.b32.xlu0 %v227, 104
    %v1565 = vpop.permute.xlu0 %1564
    %1566 = vrot.lane.b32.xlu0 %v334, 104
    %v1567 = vpop.permute.xlu0 %1566
    %1568 = vrot.lane.b32.xlu0 %v339, 104
    %v1569 = vpop.permute.xlu0 %1568
    %v1570 = vsel %vm454, %v1565, 0
    %v1572 = vsel %vm454, %v1567, 0
    %v1574 = vsel %vm454, %v1569, 0
    %1576 = vmatprep.subr.mxu0 0.0
    %1577 = vmatpush1.xpose.msra.mxu0 %v1572
    %1578 = vmatprep.subr.mxu0 0.0
    %1579 = vmatpush1.xpose.msra.mxu0 %v1574
    %1580 = vmatprep.subr.mxu0 0.0
    %1581 = vmatpush1.xpose.msra.mxu0 0.0
    %1582 = vmatprep.subr.mxu0 0.0
    %1583 = vmatpush1.xpose.msra.mxu0 0.0
    %1584 = vmatprep.subr.mxu0 0.0
    %1585 = vmatpush1.xpose.msra.mxu0 0.0
    %1586 = vmatprep.subr.mxu0 0.0
    %1587 = vmatpush1.xpose.msra.mxu0 0.0
    %1588 = vmatprep.subr.mxu0 0.0
    %1589 = vmatpush1.xpose.msra.mxu0 0.0
    %1590 = vmatprep.subr.mxu0 0.0
    %1591 = vmatpush1.xpose.msra.mxu0 0.0
    %1592 = vmatprep.subr.mxu0 0.0
    %1593 = vmatpush1.xpose.msra.mxu0 0.0
    %1594 = vmatprep.subr.mxu0 0.0
    %1595 = vmatpush1.xpose.msra.mxu0 0.0
    %1596 = vmatprep.subr.mxu0 0.0
    %1597 = vmatpush1.xpose.msra.mxu0 0.0
    %1598 = vmatprep.subr.mxu0 0.0
    %1599 = vmatpush1.xpose.msra.mxu0 0.0
    %1600 = vmatprep.subr.mxu0 0.0
    %1601 = vmatpush1.xpose.msra.mxu0 0.0
    %1602 = vmatprep.subr.mxu0 0.0
    %1603 = vmatpush1.xpose.msra.mxu0 0.0
    %1604 = vmatprep.subr.mxu0 0.0
    %1605 = vmatpush1.xpose.msra.mxu0 0.0
    %1606 = vmatprep.subr.mxu0 0.0
    %1607 = vmatpush1.xpose.msra.mxu0 0.0
    %1608 = vmatprep.subr.mxu0 0.0
    %1609 = vmatpush1.xpose.msra.mxu0 0.0
    %1610 = vmatprep.subr.mxu0 0.0
    %1611 = vmatpush1.xpose.msra.mxu0 0.0
    %1612 = vmatprep.subr.mxu0 0.0
    %1613 = vmatpush1.xpose.msra.mxu0 0.0
    %1614 = vmatprep.subr.mxu0 0.0
    %1615 = vmatpush1.xpose.msra.mxu0 0.0
    %1616 = vmatprep.subr.mxu0 0.0
    %1617 = vmatpush1.xpose.msra.mxu0 0.0
    %1618 = vmatprep.subr.mxu0 0.0
    %1619 = vmatpush1.xpose.msra.mxu0 0.0
    %1620 = vmatprep.subr.mxu0 0.0
    %1621 = vmatpush1.xpose.msra.mxu0 0.0
    %1622 = vmatprep.subr.mxu0 0.0
    %1623 = vmatpush1.xpose.msra.mxu0 0.0
    %1624 = vmatprep.subr.mxu0 0.0
    %1625 = vmatpush1.xpose.msra.mxu0 0.0
    %1626 = vmatprep.subr.mxu0 0.0
    %1627 = vmatpush1.xpose.msra.mxu0 0.0
    %1628 = vmatprep.subr.mxu0 0.0
    %1629 = vmatpush1.xpose.msra.mxu0 0.0
    %1630 = vmatprep.subr.mxu0 0.0
    %1631 = vmatpush1.xpose.msra.mxu0 0.0
    %1632 = vmatprep.subr.mxu0 0.0
    %1633 = vmatpush1.xpose.msra.mxu0 0.0
    %1634 = vmatprep.subr.mxu0 0.0
    %1635 = vmatpush1.xpose.msra.mxu0 0.0
    %1636 = vmatprep.subr.mxu0 0.0
    %1637 = vmatpush1.xpose.msra.mxu0 0.0
    %1638 = vmatprep.subr.mxu0 0.0
    %1639 = vmatpush1.xpose.msra.mxu0 0.0
    %1640 = vmatprep.mubr.f32.mxu0 0.0
    %1641 = vmatmul.mubr.f32.gmra.mrb[0].mxu0 %v1570
    %v1642 = vpop.f32.mrb[0].mxu0
    %v1643 = vadd.f32 0.0, %v1642
    %v1644 = vpop.f32.mrb[0].mxu0
    %1645 = vdwg.mxu0
    %v1646 = vsel %vm613, %v1561, -inf
    %1647 = vmax.xlane.f32.xlu0 %v1646
    %v1648 = vpop.xlane.xlu0 %1647
    %v1649 = vsel %vm613, %v1643, -inf
    %1650 = vmax.xlane.f32.xlu0 %v1649
    %v1651 = vpop.xlane.xlu0 %1650
    %v1652 = vsub.f32 %v1561, %v1648
    %v1653 = vsub.f32 %v1643, %v1651
    %v1654 = vmul.f32 %v1652, 1.442695
    %v1655 = vpow.pop %v1654
    %v1656 = vmul.f32 %v1653, 1.442695
    %v1657 = vpow.pop %v1656
    %v1658 = vsel %vm613, %v1655, 0.0
    %1659 = vadd.xlane.f32.xlu0 %v1658
    %v1660 = vpop.xlane.xlu0 %1659
    %v1661 = vsel %vm613, %v1657, 0.0
    %1662 = vadd.xlane.f32.xlu0 %v1661
    %v1663 = vpop.xlane.xlu0 %1662
    %v1664 = vrcp.pop %v1660
    %v1665 = vrcp.pop %v1663
    %v1666 = vmul.f32 %v1655, %v1664
    %v1667 = vmul.f32 %v1657, %v1665
    %s1668 = scalar_lea.vmem [#allocation14], 24
    %1669 = vst.msk [vmem:[%s1668] sm:$0xff] %vm613, %v1666
    %1670 = vst.msk [vmem:[%s1668 + $0x20] sm:$0xff] %vm613, %v1667
    %1671 = vrot.lane.b32.xlu0 %v436, 104
    %v1672 = vpop.permute.xlu0 %1671
    %1673 = vrot.lane.b32.xlu0 %v441, 104
    %v1674 = vpop.permute.xlu0 %1673
    %v1678 = vsel %vm613, %v1666, 0
    %1680 = vmatprep.subr.mxu0 0.0
    %1681 = vmatpush1.msra.mxu0 %v1672
    %1682 = vmatprep.subr.mxu0 0.0
    %1683 = vmatpush1.msra.mxu0 %v1674
    %1684 = vmatprep.subr.mxu0 0.0
    %1685 = vmatpush1.msra.mxu0 0.0
    %1686 = vmatprep.subr.mxu0 0.0
    %1687 = vmatpush1.msra.mxu0 0.0
    %1688 = vmatprep.subr.mxu0 0.0
    %1689 = vmatpush1.msra.mxu0 0.0
    %1690 = vmatprep.subr.mxu0 0.0
    %1691 = vmatpush1.msra.mxu0 0.0
    %1692 = vmatprep.subr.mxu0 0.0
    %1693 = vmatpush1.msra.mxu0 0.0
    %1694 = vmatprep.subr.mxu0 0.0
    %1695 = vmatpush1.msra.mxu0 0.0
    %1696 = vmatprep.subr.mxu0 0.0
    %1697 = vmatpush1.msra.mxu0 0.0
    %1698 = vmatprep.subr.mxu0 0.0
    %1699 = vmatpush1.msra.mxu0 0.0
    %1700 = vmatprep.subr.mxu0 0.0
    %1701 = vmatpush1.msra.mxu0 0.0
    %1702 = vmatprep.subr.mxu0 0.0
    %1703 = vmatpush1.msra.mxu0 0.0
    %1704 = vmatprep.subr.mxu0 0.0
    %1705 = vmatpush1.msra.mxu0 0.0
    %1706 = vmatprep.subr.mxu0 0.0
    %1707 = vmatpush1.msra.mxu0 0.0
    %1708 = vmatprep.subr.mxu0 0.0
    %1709 = vmatpush1.msra.mxu0 0.0
    %1710 = vmatprep.subr.mxu0 0.0
    %1711 = vmatpush1.msra.mxu0 0.0
    %1712 = vmatprep.subr.mxu0 0.0
    %1713 = vmatpush1.msra.mxu0 0.0
    %1714 = vmatprep.subr.mxu0 0.0
    %1715 = vmatpush1.msra.mxu0 0.0
    %1716 = vmatprep.subr.mxu0 0.0
    %1717 = vmatpush1.msra.mxu0 0.0
    %1718 = vmatprep.subr.mxu0 0.0
    %1719 = vmatpush1.msra.mxu0 0.0
    %1720 = vmatprep.subr.mxu0 0.0
    %1721 = vmatpush1.msra.mxu0 0.0
    %1722 = vmatprep.subr.mxu0 0.0
    %1723 = vmatpush1.msra.mxu0 0.0
    %1724 = vmatprep.subr.mxu0 0.0
    %1725 = vmatpush1.msra.mxu0 0.0
    %1726 = vmatprep.subr.mxu0 0.0
    %1727 = vmatpush1.msra.mxu0 0.0
    %1728 = vmatprep.subr.mxu0 0.0
    %1729 = vmatpush1.msra.mxu0 0.0
    %1730 = vmatprep.subr.mxu0 0.0
    %1731 = vmatpush1.msra.mxu0 0.0
    %1732 = vmatprep.subr.mxu0 0.0
    %1733 = vmatpush1.msra.mxu0 0.0
    %1734 = vmatprep.subr.mxu0 0.0
    %1735 = vmatpush1.msra.mxu0 0.0
    %1736 = vmatprep.subr.mxu0 0.0
    %1737 = vmatpush1.msra.mxu0 0.0
    %1738 = vmatprep.subr.mxu0 0.0
    %1739 = vmatpush1.msra.mxu0 0.0
    %1740 = vmatprep.subr.mxu0 0.0
    %1741 = vmatpush1.msra.mxu0 0.0
    %1742 = vmatprep.subr.mxu0 0.0
    %1743 = vmatpush1.msra.mxu0 0.0
    %1744 = vmatprep.mubr.f32.mxu0 0.0
    %1745 = vmatmul.mubr.f32.gmra.mrb[0].mxu0 %v1678
    %v1746 = vpop.f32.mrb[0].mxu0
    %v1747 = vadd.f32 0.0, %v1746
    %v1748 = vpop.f32.mrb[0].mxu0
    %1749 = vdwg.mxu0
    %1750 = vrot.lane.b32.xlu0 %v446, 104
    %v1751 = vpop.permute.xlu0 %1750
    %1752 = vrot.lane.b32.xlu0 %v451, 104
    %v1753 = vpop.permute.xlu0 %1752
    %v1757 = vsel %vm613, %v1667, 0
    %1759 = vmatprep.subr.mxu0 0.0
    %1760 = vmatpush1.msra.mxu0 %v1751
    %1761 = vmatprep.subr.mxu0 0.0
    %1762 = vmatpush1.msra.mxu0 %v1753
    %1763 = vmatprep.subr.mxu0 0.0
    %1764 = vmatpush1.msra.mxu0 0.0
    %1765 = vmatprep.subr.mxu0 0.0
    %1766 = vmatpush1.msra.mxu0 0.0
    %1767 = vmatprep.subr.mxu0 0.0
    %1768 = vmatpush1.msra.mxu0 0.0
    %1769 = vmatprep.subr.mxu0 0.0
    %1770 = vmatpush1.msra.mxu0 0.0
    %1771 = vmatprep.subr.mxu0 0.0
    %1772 = vmatpush1.msra.mxu0 0.0
    %1773 = vmatprep.subr.mxu0 0.0
    %1774 = vmatpush1.msra.mxu0 0.0
    %1775 = vmatprep.subr.mxu0 0.0
    %1776 = vmatpush1.msra.mxu0 0.0
    %1777 = vmatprep.subr.mxu0 0.0
    %1778 = vmatpush1.msra.mxu0 0.0
    %1779 = vmatprep.subr.mxu0 0.0
    %1780 = vmatpush1.msra.mxu0 0.0
    %1781 = vmatprep.subr.mxu0 0.0
    %1782 = vmatpush1.msra.mxu0 0.0
    %1783 = vmatprep.subr.mxu0 0.0
    %1784 = vmatpush1.msra.mxu0 0.0
    %1785 = vmatprep.subr.mxu0 0.0
    %1786 = vmatpush1.msra.mxu0 0.0
    %1787 = vmatprep.subr.mxu0 0.0
    %1788 = vmatpush1.msra.mxu0 0.0
    %1789 = vmatprep.subr.mxu0 0.0
    %1790 = vmatpush1.msra.mxu0 0.0
    %1791 = vmatprep.subr.mxu0 0.0
    %1792 = vmatpush1.msra.mxu0 0.0
    %1793 = vmatprep.subr.mxu0 0.0
    %1794 = vmatpush1.msra.mxu0 0.0
    %1795 = vmatprep.subr.mxu0 0.0
    %1796 = vmatpush1.msra.mxu0 0.0
    %1797 = vmatprep.subr.mxu0 0.0
    %1798 = vmatpush1.msra.mxu0 0.0
    %1799 = vmatprep.subr.mxu0 0.0
    %1800 = vmatpush1.msra.mxu0 0.0
    %1801 = vmatprep.subr.mxu0 0.0
    %1802 = vmatpush1.msra.mxu0 0.0
    %1803 = vmatprep.subr.mxu0 0.0
    %1804 = vmatpush1.msra.mxu0 0.0
    %1805 = vmatprep.subr.mxu0 0.0
    %1806 = vmatpush1.msra.mxu0 0.0
    %1807 = vmatprep.subr.mxu0 0.0
    %1808 = vmatpush1.msra.mxu0 0.0
    %1809 = vmatprep.subr.mxu0 0.0
    %1810 = vmatpush1.msra.mxu0 0.0
    %1811 = vmatprep.subr.mxu0 0.0
    %1812 = vmatpush1.msra.mxu0 0.0
    %1813 = vmatprep.subr.mxu0 0.0
    %1814 = vmatpush1.msra.mxu0 0.0
    %1815 = vmatprep.subr.mxu0 0.0
    %1816 = vmatpush1.msra.mxu0 0.0
    %1817 = vmatprep.subr.mxu0 0.0
    %1818 = vmatpush1.msra.mxu0 0.0
    %1819 = vmatprep.subr.mxu0 0.0
    %1820 = vmatpush1.msra.mxu0 0.0
    %1821 = vmatprep.subr.mxu0 0.0
    %1822 = vmatpush1.msra.mxu0 0.0
    %1823 = vmatprep.mubr.f32.mxu0 0.0
    %1824 = vmatmul.mubr.f32.gmra.mrb[0].mxu0 %v1757
    %v1825 = vpop.f32.mrb[0].mxu0
    %v1826 = vadd.f32 0.0, %v1825
    %v1827 = vpop.f32.mrb[0].mxu0
    %1828 = vdwg.mxu0
    %1831 = vrot.lane.b32.xlu0 %v1051, 8
    %v1832 = vpop.permute.xlu0 %1831
    %1833 = vrot.lane.b32.xlu0 %v1132, 8
    %v1834 = vpop.permute.xlu0 %1833
    %1839 = vrot.lane.b32.xlu0 %v1400, 16
    %v1840 = vpop.permute.xlu0 %1839
    %1841 = vrot.lane.b32.xlu0 %v1479, 16
    %v1842 = vpop.permute.xlu0 %1841
    %1847 = vrot.lane.b32.xlu0 %v1747, 24
    %v1848 = vpop.permute.xlu0 %1847
    %1849 = vrot.lane.b32.xlu0 %v1826, 24
    %v1850 = vpop.permute.xlu0 %1849
    %v1853 = vsel %vm454, %v708, %v1832
    %v1854 = vsel %vm454, %v781, %v1834
    %v1855 = vsel %vm613, %v1853, %v1840
    %v1856 = vsel %vm613, %v1854, %v1842
    %vm1857 = vcmask 195584
    %v1858 = vsel %vm1857, %v1855, %v1848
    %v1859 = vsel %vm1857, %v1856, %v1850
    %v1860 = vld [vmem:[%s9] sm:$0xff]
    %v1861 = vld [vmem:[%s9 + $0x8] sm:$0xff]
    %v1862 = vld [vmem:[%s9 + $0x10] sm:$0xff]
    %v1863 = vld [vmem:[%s9 + $0x18] sm:$0xff]
    %v1864 = vld [vmem:[%s10] sm:$0x1]
    %v1866 = vlaneseq
    %v1867 = vshrl.u32 %v1866, 7
    %v1868 = vsub.s32 0, %v1867
    %v1869 = vrot.slane %v1864, %v1868
    %v1872 = vsel %vm148, %v1858, 0
    %v1875 = vsel %vm148, %v1859, 0
    %1877 = vmatprep.subr.mxu0 0.0
    %1878 = vmatpush1.msra.mxu0 %v1860
    %1879 = vmatprep.subr.mxu0 0.0
    %1880 = vmatpush1.msra.mxu0 %v1861
    %1881 = vmatprep.subr.mxu0 0.0
    %1882 = vmatpush1.msra.mxu0 %v1862
    %1883 = vmatprep.subr.mxu0 0.0
    %1884 = vmatpush1.msra.mxu0 %v1863
    %1885 = vmatprep.subr.mxu0 0.0
    %1886 = vmatpush1.msra.mxu0 0.0
    %1887 = vmatprep.subr.mxu0 0.0
    %1888 = vmatpush1.msra.mxu0 0.0
    %1889 = vmatprep.subr.mxu0 0.0
    %1890 = vmatpush1.msra.mxu0 0.0
    %1891 = vmatprep.subr.mxu0 0.0
    %1892 = vmatpush1.msra.mxu0 0.0
    %1893 = vmatprep.subr.mxu0 0.0
    %1894 = vmatpush1.msra.mxu0 0.0
    %1895 = vmatprep.subr.mxu0 0.0
    %1896 = vmatpush1.msra.mxu0 0.0
    %1897 = vmatprep.subr.mxu0 0.0
    %1898 = vmatpush1.msra.mxu0 0.0
    %1899 = vmatprep.subr.mxu0 0.0
    %1900 = vmatpush1.msra.mxu0 0.0
    %1901 = vmatprep.subr.mxu0 0.0
    %1902 = vmatpush1.msra.mxu0 0.0
    %1903 = vmatprep.subr.mxu0 0.0
    %1904 = vmatpush1.msra.mxu0 0.0
    %1905 = vmatprep.subr.mxu0 0.0
    %1906 = vmatpush1.msra.mxu0 0.0
    %1907 = vmatprep.subr.mxu0 0.0
    %1908 = vmatpush1.msra.mxu0 0.0
    %1909 = vmatprep.subr.mxu0 0.0
    %1910 = vmatpush1.msra.mxu0 0.0
    %1911 = vmatprep.subr.mxu0 0.0
    %1912 = vmatpush1.msra.mxu0 0.0
    %1913 = vmatprep.subr.mxu0 0.0
    %1914 = vmatpush1.msra.mxu0 0.0
    %1915 = vmatprep.subr.mxu0 0.0
    %1916 = vmatpush1.msra.mxu0 0.0
    %1917 = vmatprep.subr.mxu0 0.0
    %1918 = vmatpush1.msra.mxu0 0.0
    %1919 = vmatprep.subr.mxu0 0.0
    %1920 = vmatpush1.msra.mxu0 0.0
    %1921 = vmatprep.subr.mxu0 0.0
    %1922 = vmatpush1.msra.mxu0 0.0
    %1923 = vmatprep.subr.mxu0 0.0
    %1924 = vmatpush1.msra.mxu0 0.0
    %1925 = vmatprep.subr.mxu0 0.0
    %1926 = vmatpush1.msra.mxu0 0.0
    %1927 = vmatprep.subr.mxu0 0.0
    %1928 = vmatpush1.msra.mxu0 0.0
    %1929 = vmatprep.subr.mxu0 0.0
    %1930 = vmatpush1.msra.mxu0 0.0
    %1931 = vmatprep.subr.mxu0 0.0
    %1932 = vmatpush1.msra.mxu0 0.0
    %1933 = vmatprep.subr.mxu0 0.0
    %1934 = vmatpush1.msra.mxu0 0.0
    %1935 = vmatprep.subr.mxu0 0.0
    %1936 = vmatpush1.msra.mxu0 0.0
    %1937 = vmatprep.subr.mxu0 0.0
    %1938 = vmatpush1.msra.mxu0 0.0
    %1939 = vmatprep.subr.mxu0 0.0
    %1940 = vmatpush1.msra.mxu0 0.0
    %1941 = vmatprep.mubr.f32.mxu0 0.0
    %1942 = vmatmul.mubr.f32.gmra.mrb[0].mxu0 %v1872
    %v1943 = vpop.f32.mrb[0].mxu0
    %v1944 = vadd.f32 %v1869, %v1943
    %v1945 = vpop.f32.mrb[0].mxu0
    %1946 = vmatprep.mubr.f32.mxu0 0.0
    %1947 = vmatmul.mubr.f32.gmra.mrb[0].mxu0 %v1875
    %v1948 = vpop.f32.mrb[0].mxu0
    %v1949 = vadd.f32 %v1869, %v1948
    %v1950 = vpop.f32.mrb[0].mxu0
    %1951 = vdwg.mxu0
    %1952 = vst.msk [vmem:[#allocation15] sm:$0xff] %vm148, %v1944
    %1953 = vst.msk [vmem:[#allocation15 + $0x8] sm:$0xff] %vm148, %v1949
    // Predicated region
    $region74: #{tpu_custom_call.1} parent=1 // pred_check
      _
    $region75: #{tpu_custom_call.1} parent=1 // pred_check_branch
      %1955 = sbr.rel (0) target = $region77
    $region76: #{tpu_custom_call.1} parent=1 // pred_region
      %s1957 = ssub.s32 1024, 1024
      %1958 = vsyncadd [#allocation4], %s1957
      %s1959 = sshll.u32 [#allocation14], 4
      %s1960 = int_to_ptr.vmem [resolvable:$true] %s1959
      %1965 = dma.vmem_to_hbm [thread:$0]  %s1960, 1024, %s11, [#allocation4], 128, 128, 8
    $region77: #{tpu_custom_call.1} parent=1 // pred_fallthru
      _
    // Predicated region
    $region78: #{tpu_custom_call.1} parent=1 // pred_check
      _
    $region79: #{tpu_custom_call.1} parent=1 // pred_check_branch
      %1967 = sbr.rel (0) target = $region81
    $region80: #{tpu_custom_call.1} parent=1 // pred_region
      %s1969 = ssub.s32 256, 256
      %1970 = vsyncadd [#allocation16], %s1969
      %s1971 = sshll.u32 [#allocation15], 4
      %s1972 = int_to_ptr.vmem [resolvable:$true] %s1971
      %1977 = dma.vmem_to_hbm [thread:$0]  %s1972, 256, %s12, [#allocation16], 128, 128, 8
    $region81: #{tpu_custom_call.1} parent=1 // pred_fallthru
      _
    // Predicated region
    $region82: #{tpu_custom_call.1} parent=1 // pred_check
      _
    $region83: #{tpu_custom_call.1} parent=1 // pred_check_branch
      %1979 = sbr.rel (0) target = $region85
    $region84: #{tpu_custom_call.1} parent=1 // pred_region
      %1980 = dma.done [#allocation4], 1024
    $region85: #{tpu_custom_call.1} parent=1 // pred_fallthru
      _
    // Predicated region
    $region86: #{tpu_custom_call.1} parent=1 // pred_check
      _
    $region87: #{tpu_custom_call.1} parent=1 // pred_check_branch
      %1982 = sbr.rel (0) target = $region89
    $region88: #{tpu_custom_call.1} parent=1 // pred_region
      %1983 = dma.done [#allocation16], 256
    $region89: #{tpu_custom_call.1} parent=1 // pred_fallthru
      _
    %1984 = vsyncpa [#allocation3], 1
    %1985 = vsyncpa [#allocation6], 1
    %1986 = vsyncpa [#allocation9], 1
    %1987 = vsyncpa [#allocation12], 1
    %1988 = vsyncpa [#allocation4], 1
    %1989 = vsyncpa [#allocation16], 1

// kernel: tpu_custom_call.1
$region0: #{tpu_custom_call.1}
  #allocation0 [shape = 'u32[]', space=smem, size = 0x4, offset = 0x4, fixed_abs, tag = 'smem constant byte address 0x4 - core index']
  #allocation1 [shape = 'u32[144,128]{1,0:T(1,128)}', space=vmem, size = 0x12000, scoped, tag = 'internal scratch']
  %s0 = inlined_call_operand.hbm [shape: f32[16,32], index: 0, kind: input, shape index: {}]
  %s1 = inlined_call_operand.hbm [shape: f32[32,32], index: 1, kind: input, shape index: {}]
  %s2 = inlined_call_operand.hbm [shape: f32[32,32], index: 2, kind: input, shape index: {}]
  %s3 = inlined_call_operand.hbm [shape: f32[32,32], index: 3, kind: input, shape index: {}]
  %s4 = inlined_call_operand.vmem [shape: f32[1,32], index: 4, kind: input, shape index: {}]
  %s5 = inlined_call_operand.hbm [shape: f32[32,32], index: 5, kind: input, shape index: {}]
  %s6 = inlined_call_operand.vmem [shape: f32[1,32], index: 6, kind: input, shape index: {}]
  %s7 = inlined_call_operand.hbm [shape: f32[32,32], index: 7, kind: input, shape index: {}]
  %s8 = inlined_call_operand.hbm [shape: f32[1,32], index: 8, kind: input, shape index: {}]
  %s9 = inlined_call_operand.vmem [shape: f32[32,32], index: 9, kind: input, shape index: {}]
  %s10 = inlined_call_operand.vmem [shape: f32[1,32], index: 10, kind: input, shape index: {}]
  %s11 = inlined_call_operand.hbm [shape: f32[2,4,8,16], index: 11, kind: output, shape index: {0}]
  %s12 = inlined_call_operand.hbm [shape: f32[16,32], index: 12, kind: output, shape index: {1}]
  %13 = xla_tuple %s11, %s12
  %s14 = sld [smem:[#allocation0]]
  $region90: #{tpu_custom_call.1} parent=0
    _
  %s16 = ssub.s32 1, %s14
  %s17 = scalar_select 0, %s16, %s14
  $region1: #{tpu_custom_call.1} parent=0
    #allocation2 [shape = 'u8[8192]{0}', space=vmem, size = 0x2000, scoped, tag = 'input window, operand 0, single buffered']
    #allocation3 [shape = 's32[1]{0}', space=sflag, size = 0x4, scoped, tag = 'scoped memory for tpu_custom_call.1']
    #allocation4 [shape = 's32[1]{0}', space=sflag, size = 0x4, scoped, tag = 'scoped memory for tpu_custom_call.1']
    #allocation5 [shape = 'u8[16384]{0}', space=vmem, size = 0x4000, scoped, tag = 'input window, operand 1, single buffered']
    #allocation6 [shape = 's32[1]{0}', space=sflag, size = 0x4, scoped, tag = 'scoped memory for tpu_custom_call.1']
    #allocation7 [shape = 'u8[16384]{0}', space=vmem, size = 0x4000, scoped, tag = 'input window, operand 2, single buffered']
    #allocation8 [shape = 'u8[16384]{0}', space=vmem, size = 0x4000, scoped, tag = 'input window, operand 3, single buffered']
    #allocation9 [shape = 's32[1]{0}', space=sflag, size = 0x4, scoped, tag = 'scoped memory for tpu_custom_call.1']
    #allocation10 [shape = 'u8[16384]{0}', space=vmem, size = 0x4000, scoped, tag = 'input window, operand 5, single buffered']
    #allocation11 [shape = 'u8[16384]{0}', space=vmem, size = 0x4000, scoped, tag = 'input window, operand 7, single buffered']
    #allocation12 [shape = 's32[1]{0}', space=sflag, size = 0x4, scoped, tag = 'scoped memory for tpu_custom_call.1']
    #allocation13 [shape = 'u8[512]{0}', space=vmem, size = 0x400, scoped, tag = 'input window, operand 8, single buffered']
    #allocation14 [shape = 'u8[32768]{0}', space=vmem, size = 0x8000, scoped, tag = 'output window, operand 0, single buffered']
    #allocation15 [shape = 'u8[8192]{0}', space=vmem, size = 0x2000, scoped, tag = 'output window, operand 1, single buffered']
    #allocation16 [shape = 's32[1]{0}', space=sflag, size = 0x4, scoped, tag = 'scoped memory for tpu_custom_call.1']
    %18 = vsyncpa [#allocation3], 0
    %19 = vsyncpa [#allocation6], 0
    %20 = vsyncpa [#allocation9], 0
    %21 = vsyncpa [#allocation12], 0
    %22 = vsyncpa [#allocation4], 0
    %23 = vsyncpa [#allocation16], 0
    // Predicated region
    $region2: #{tpu_custom_call.1} parent=1 // pred_check
      _
    $region3: #{tpu_custom_call.1} parent=1 // pred_check_branch
      %25 = sbr.rel (0) target = $region5
    $region4: #{tpu_custom_call.1} parent=1 // pred_region
      %s27 = ssub.s32 256, 256
      %28 = vsyncadd [#allocation3], %s27
      %s29 = sshll.u32 [#allocation2], 4
      %s30 = int_to_ptr.vmem [resolvable:$true] %s29
      %35 = dma.hbm_to_vmem [thread:$0]  %s0, 256, %s30, [#allocation3], 128, 128, 8
    $region5: #{tpu_custom_call.1} parent=1 // pred_fallthru
      _
    // Predicated region
    $region6: #{tpu_custom_call.1} parent=1 // pred_check
      _
    $region7: #{tpu_custom_call.1} parent=1 // pred_check_branch
      %37 = sbr.rel (0) target = $region9
    $region8: #{tpu_custom_call.1} parent=1 // pred_region
      %s39 = ssub.s32 512, 512
      %40 = vsyncadd [#allocation6], %s39
      %s41 = sshll.u32 [#allocation5], 4
      %s42 = int_to_ptr.vmem [resolvable:$true] %s41
      %47 = dma.hbm_to_vmem [thread:$0]  %s1, 512, %s42, [#allocation6], 128, 128, 8
    $region9: #{tpu_custom_call.1} parent=1 // pred_fallthru
      _
    // Predicated region
    $region10: #{tpu_custom_call.1} parent=1 // pred_check
      _
    $region11: #{tpu_custom_call.1} parent=1 // pred_check_branch
      %49 = sbr.rel (0) target = $region13
    $region12: #{tpu_custom_call.1} parent=1 // pred_region
      %s51 = ssub.s32 512, 512
      %52 = vsyncadd [#allocation6], %s51
      %s53 = sshll.u32 [#allocation7], 4
      %s54 = int_to_ptr.vmem [resolvable:$true] %s53
      %59 = dma.hbm_to_vmem [thread:$0]  %s2, 512, %s54, [#allocation6], 128, 128, 8
    $region13: #{tpu_custom_call.1} parent=1 // pred_fallthru
      _
    // Predicated region
    $region14: #{tpu_custom_call.1} parent=1 // pred_check
      _
    $region15: #{tpu_custom_call.1} parent=1 // pred_check_branch
      %61 = sbr.rel (0) target = $region17
    $region16: #{tpu_custom_call.1} parent=1 // pred_region
      %s63 = ssub.s32 512, 512
      %64 = vsyncadd [#allocation9], %s63
      %s65 = sshll.u32 [#allocation8], 4
      %s66 = int_to_ptr.vmem [resolvable:$true] %s65
      %71 = dma.hbm_to_vmem [thread:$0]  %s3, 512, %s66, [#allocation9], 128, 128, 8
    $region17: #{tpu_custom_call.1} parent=1 // pred_fallthru
      _
    // Predicated region
    $region18: #{tpu_custom_call.1} parent=1 // pred_check
      _
    $region19: #{tpu_custom_call.1} parent=1 // pred_check_branch
      %73 = sbr.rel (0) target = $region21
    $region20: #{tpu_custom_call.1} parent=1 // pred_region
      _
    $region21: #{tpu_custom_call.1} parent=1 // pred_fallthru
      _
    // Predicated region
    $region22: #{tpu_custom_call.1} parent=1 // pred_check
      _
    $region23: #{tpu_custom_call.1} parent=1 // pred_check_branch
      %75 = sbr.rel (0) target = $region25
    $region24: #{tpu_custom_call.1} parent=1 // pred_region
      %s77 = ssub.s32 512, 512
      %78 = vsyncadd [#allocation9], %s77
      %s79 = sshll.u32 [#allocation10], 4
      %s80 = int_to_ptr.vmem [resolvable:$true] %s79
      %85 = dma.hbm_to_vmem [thread:$0]  %s5, 512, %s80, [#allocation9], 128, 128, 8
    $region25: #{tpu_custom_call.1} parent=1 // pred_fallthru
      _
    // Predicated region
    $region26: #{tpu_custom_call.1} parent=1 // pred_check
      _
    $region27: #{tpu_custom_call.1} parent=1 // pred_check_branch
      %87 = sbr.rel (0) target = $region29
    $region28: #{tpu_custom_call.1} parent=1 // pred_region
      _
    $region29: #{tpu_custom_call.1} parent=1 // pred_fallthru
      _
    // Predicated region
    $region30: #{tpu_custom_call.1} parent=1 // pred_check
      _
    $region31: #{tpu_custom_call.1} parent=1 // pred_check_branch
      %89 = sbr.rel (0) target = $region33
    $region32: #{tpu_custom_call.1} parent=1 // pred_region
      %s91 = ssub.s32 512, 512
      %92 = vsyncadd [#allocation12], %s91
      %s93 = sshll.u32 [#allocation11], 4
      %s94 = int_to_ptr.vmem [resolvable:$true] %s93
      %99 = dma.hbm_to_vmem [thread:$0]  %s7, 512, %s94, [#allocation12], 128, 128, 8
    $region33: #{tpu_custom_call.1} parent=1 // pred_fallthru
      _
    // Predicated region
    $region34: #{tpu_custom_call.1} parent=1 // pred_check
      _
    $region35: #{tpu_custom_call.1} parent=1 // pred_check_branch
      %101 = sbr.rel (0) target = $region37
    $region36: #{tpu_custom_call.1} parent=1 // pred_region
      %s103 = ssub.s32 16, 16
      %104 = vsyncadd [#allocation12], %s103
      %s106 = sshll.u32 [#allocation13], 4
      %s107 = int_to_ptr.vmem [resolvable:$true] %s106
      %109 = dma.hbm_to_vmem [thread:$0]  %s8, 16, %s107, [#allocation12]
    $region37: #{tpu_custom_call.1} parent=1 // pred_fallthru
      _
    // Predicated region
    $region38: #{tpu_custom_call.1} parent=1 // pred_check
      _
    $region39: #{tpu_custom_call.1} parent=1 // pred_check_branch
      %111 = sbr.rel (0) target = $region41
    $region40: #{tpu_custom_call.1} parent=1 // pred_region
      _
    $region41: #{tpu_custom_call.1} parent=1 // pred_fallthru
      _
    // Predicated region
    $region42: #{tpu_custom_call.1} parent=1 // pred_check
      _
    $region43: #{tpu_custom_call.1} parent=1 // pred_check_branch
      %113 = sbr.rel (0) target = $region45
    $region44: #{tpu_custom_call.1} parent=1 // pred_region
      _
    $region45: #{tpu_custom_call.1} parent=1 // pred_fallthru
      _
    // Predicated region
    $region46: #{tpu_custom_call.1} parent=1 // pred_check
      _
    $region47: #{tpu_custom_call.1} parent=1 // pred_check_branch
      %115 = sbr.rel (0) target = $region49
    $region48: #{tpu_custom_call.1} parent=1 // pred_region
      %116 = dma.done [#allocation3], 256
    $region49: #{tpu_custom_call.1} parent=1 // pred_fallthru
      _
    // Predicated region
    $region50: #{tpu_custom_call.1} parent=1 // pred_check
      _
    $region51: #{tpu_custom_call.1} parent=1 // pred_check_branch
      %118 = sbr.rel (0) target = $region53
    $region52: #{tpu_custom_call.1} parent=1 // pred_region
      %119 = dma.done [#allocation6], 512
    $region53: #{tpu_custom_call.1} parent=1 // pred_fallthru
      _
    // Predicated region
    $region54: #{tpu_custom_call.1} parent=1 // pred_check
      _
    $region55: #{tpu_custom_call.1} parent=1 // pred_check_branch
      %121 = sbr.rel (0) target = $region57
    $region56: #{tpu_custom_call.1} parent=1 // pred_region
      %122 = dma.done [#allocation6], 512
    $region57: #{tpu_custom_call.1} parent=1 // pred_fallthru
      _
    // Predicated region
    $region58: #{tpu_custom_call.1} parent=1 // pred_check
      _
    $region59: #{tpu_custom_call.1} parent=1 // pred_check_branch
      %124 = sbr.rel (0) target = $region61
    $region60: #{tpu_custom_call.1} parent=1 // pred_region
      %125 = dma.done [#allocation9], 512
    $region61: #{tpu_custom_call.1} parent=1 // pred_fallthru
      _
    // Predicated region
    $region62: #{tpu_custom_call.1} parent=1 // pred_check
      _
    $region63: #{tpu_custom_call.1} parent=1 // pred_check_branch
      %127 = sbr.rel (0) target = $region65
    $region64: #{tpu_custom_call.1} parent=1 // pred_region
      %128 = dma.done [#allocation9], 512
    $region65: #{tpu_custom_call.1} parent=1 // pred_fallthru
      _
    // Predicated region
    $region66: #{tpu_custom_call.1} parent=1 // pred_check
      _
    $region67: #{tpu_custom_call.1} parent=1 // pred_check_branch
      %130 = sbr.rel (0) target = $region69
    $region68: #{tpu_custom_call.1} parent=1 // pred_region
      %131 = dma.done [#allocation12], 512
    $region69: #{tpu_custom_call.1} parent=1 // pred_fallthru
      _
    // Predicated region
    $region70: #{tpu_custom_call.1} parent=1 // pred_check
      _
    $region71: #{tpu_custom_call.1} parent=1 // pred_check_branch
      %133 = sbr.rel (0) target = $region73
    $region72: #{tpu_custom_call.1} parent=1 // pred_region
      %134 = dma.done [#allocation12], 16
    $region73: #{tpu_custom_call.1} parent=1 // pred_fallthru
      _
    %v135 = vld [vmem:[#allocation2] sm:$0xff]
    %v136 = vld [vmem:[#allocation2 + $0x8] sm:$0xff]
    %v137 = vld [vmem:[#allocation8] sm:$0xff]
    %v138 = vld [vmem:[#allocation8 + $0x8] sm:$0xff]
    %v139 = vld [vmem:[#allocation8 + $0x10] sm:$0xff]
    %v140 = vld [vmem:[#allocation8 + $0x18] sm:$0xff]
    %v141 = vld [vmem:[%s4] sm:$0x1]
    %v143 = vlaneseq
    %v144 = vshrl.u32 %v143, 7
    %v145 = vsub.s32 0, %v144
    %v146 = vrot.slane %v141, %v145
    %vm148 = vcmask 261120
    %v150 = vsel %vm148, %v135, 0
    %v153 = vsel %vm148, %v136, 0
    %155 = vmatprep.subr.mxu0 0.0
    %156 = vmatpush1.msra.mxu0 %v137
    %157 = vmatprep.subr.mxu0 0.0
    %158 = vmatpush1.msra.mxu0 %v138
    %159 = vmatprep.subr.mxu0 0.0
    %160 = vmatpush1.msra.mxu0 %v139
    %161 = vmatprep.subr.mxu0 0.0
    %162 = vmatpush1.msra.mxu0 %v140
    %163 = vmatprep.subr.mxu0 0.0
    %164 = vmatpush1.msra.mxu0 0.0
    %165 = vmatprep.subr.mxu0 0.0
    %166 = vmatpush1.msra.mxu0 0.0
    %167 = vmatprep.subr.mxu0 0.0
    %168 = vmatpush1.msra.mxu0 0.0
    %169 = vmatprep.subr.mxu0 0.0
    %170 = vmatpush1.msra.mxu0 0.0
    %171 = vmatprep.subr.mxu0 0.0
    %172 = vmatpush1.msra.mxu0 0.0
    %173 = vmatprep.subr.mxu0 0.0
    %174 = vmatpush1.msra.mxu0 0.0
    %175 = vmatprep.subr.mxu0 0.0
    %176 = vmatpush1.msra.mxu0 0.0
    %177 = vmatprep.subr.mxu0 0.0
    %178 = vmatpush1.msra.mxu0 0.0
    %179 = vmatprep.subr.mxu0 0.0
    %180 = vmatpush1.msra.mxu0 0.0
    %181 = vmatprep.subr.mxu0 0.0
    %182 = vmatpush1.msra.mxu0 0.0
    %183 = vmatprep.subr.mxu0 0.0
    %184 = vmatpush1.msra.mxu0 0.0
    %185 = vmatprep.subr.mxu0 0.0
    %186 = vmatpush1.msra.mxu0 0.0
    %187 = vmatprep.subr.mxu0 0.0
    %188 = vmatpush1.msra.mxu0 0.0
    %189 = vmatprep.subr.mxu0 0.0
    %190 = vmatpush1.msra.mxu0 0.0
    %191 = vmatprep.subr.mxu0 0.0
    %192 = vmatpush1.msra.mxu0 0.0
    %193 = vmatprep.subr.mxu0 0.0
    %194 = vmatpush1.msra.mxu0 0.0
    %195 = vmatprep.subr.mxu0 0.0
    %196 = vmatpush1.msra.mxu0 0.0
    %197 = vmatprep.subr.mxu0 0.0
    %198 = vmatpush1.msra.mxu0 0.0
    %199 = vmatprep.subr.mxu0 0.0
    %200 = vmatpush1.msra.mxu0 0.0
    %201 = vmatprep.subr.mxu0 0.0
    %202 = vmatpush1.msra.mxu0 0.0
    %203 = vmatprep.subr.mxu0 0.0
    %204 = vmatpush1.msra.mxu0 0.0
    %205 = vmatprep.subr.mxu0 0.0
    %206 = vmatpush1.msra.mxu0 0.0
    %207 = vmatprep.subr.mxu0 0.0
    %208 = vmatpush1.msra.mxu0 0.0
    %209 = vmatprep.subr.mxu0 0.0
    %210 = vmatpush1.msra.mxu0 0.0
    %211 = vmatprep.subr.mxu0 0.0
    %212 = vmatpush1.msra.mxu0 0.0
    %213 = vmatprep.subr.mxu0 0.0
    %214 = vmatpush1.msra.mxu0 0.0
    %215 = vmatprep.subr.mxu0 0.0
    %216 = vmatpush1.msra.mxu0 0.0
    %217 = vmatprep.subr.mxu0 0.0
    %218 = vmatpush1.msra.mxu0 0.0
    %219 = vmatprep.mubr.f32.mxu0 0.0
    %220 = vmatmul.mubr.f32.gmra.mrb[0].mxu0 %v150
    %v221 = vpop.f32.mrb[0].mxu0
    %v222 = vadd.f32 %v146, %v221
    %v223 = vpop.f32.mrb[0].mxu0
    %224 = vmatprep.mubr.f32.mxu0 0.0
    %225 = vmatmul.mubr.f32.gmra.mrb[0].mxu0 %v153
    %v226 = vpop.f32.mrb[0].mxu0
    %v227 = vadd.f32 %v146, %v226
    %v228 = vpop.f32.mrb[0].mxu0
    %229 = vdwg.mxu0
    %v230 = vld [vmem:[#allocation5] sm:$0xff]
    %v231 = vld [vmem:[#allocation5 + $0x8] sm:$0xff]
    %v232 = vld [vmem:[#allocation5 + $0x10] sm:$0xff]
    %v233 = vld [vmem:[#allocation5 + $0x18] sm:$0xff]
    %v234 = vld [vmem:[#allocation10] sm:$0xff]
    %v235 = vld [vmem:[#allocation10 + $0x8] sm:$0xff]
    %v236 = vld [vmem:[#allocation10 + $0x10] sm:$0xff]
    %v237 = vld [vmem:[#allocation10 + $0x18] sm:$0xff]
    %v238 = vld [vmem:[%s6] sm:$0x1]
    %v240 = vlaneseq
    %v241 = vshrl.u32 %v240, 7
    %v242 = vsub.s32 0, %v241
    %v243 = vrot.slane %v238, %v242
    %v246 = vsel %vm148, %v230, 0
    %v249 = vsel %vm148, %v231, 0
    %v252 = vsel %vm148, %v232, 0
    %v255 = vsel %vm148, %v233, 0
    %257 = vmatprep.subr.mxu0 0.0
    %258 = vmatpush1.msra.mxu0 %v234
    %259 = vmatprep.subr.mxu0 0.0
    %260 = vmatpush1.msra.mxu0 %v235
    %261 = vmatprep.subr.mxu0 0.0
    %262 = vmatpush1.msra.mxu0 %v236
    %263 = vmatprep.subr.mxu0 0.0
    %264 = vmatpush1.msra.mxu0 %v237
    %265 = vmatprep.subr.mxu0 0.0
    %266 = vmatpush1.msra.mxu0 0.0
    %267 = vmatprep.subr.mxu0 0.0
    %268 = vmatpush1.msra.mxu0 0.0
    %269 = vmatprep.subr.mxu0 0.0
    %270 = vmatpush1.msra.mxu0 0.0
    %271 = vmatprep.subr.mxu0 0.0
    %272 = vmatpush1.msra.mxu0 0.0
    %273 = vmatprep.subr.mxu0 0.0
    %274 = vmatpush1.msra.mxu0 0.0
    %275 = vmatprep.subr.mxu0 0.0
    %276 = vmatpush1.msra.mxu0 0.0
    %277 = vmatprep.subr.mxu0 0.0
    %278 = vmatpush1.msra.mxu0 0.0
    %279 = vmatprep.subr.mxu0 0.0
    %280 = vmatpush1.msra.mxu0 0.0
    %281 = vmatprep.subr.mxu0 0.0
    %282 = vmatpush1.msra.mxu0 0.0
    %283 = vmatprep.subr.mxu0 0.0
    %284 = vmatpush1.msra.mxu0 0.0
    %285 = vmatprep.subr.mxu0 0.0
    %286 = vmatpush1.msra.mxu0 0.0
    %287 = vmatprep.subr.mxu0 0.0
    %288 = vmatpush1.msra.mxu0 0.0
    %289 = vmatprep.subr.mxu0 0.0
    %290 = vmatpush1.msra.mxu0 0.0
    %291 = vmatprep.subr.mxu0 0.0
    %292 = vmatpush1.msra.mxu0 0.0
    %293 = vmatprep.subr.mxu0 0.0
    %294 = vmatpush1.msra.mxu0 0.0
    %295 = vmatprep.subr.mxu0 0.0
    %296 = vmatpush1.msra.mxu0 0.0
    %297 = vmatprep.subr.mxu0 0.0
    %298 = vmatpush1.msra.mxu0 0.0
    %299 = vmatprep.subr.mxu0 0.0
    %300 = vmatpush1.msra.mxu0 0.0
    %301 = vmatprep.subr.mxu0 0.0
    %302 = vmatpush1.msra.mxu0 0.0
    %303 = vmatprep.subr.mxu0 0.0
    %304 = vmatpush1.msra.mxu0 0.0
    %305 = vmatprep.subr.mxu0 0.0
    %306 = vmatpush1.msra.mxu0 0.0
    %307 = vmatprep.subr.mxu0 0.0
    %308 = vmatpush1.msra.mxu0 0.0
    %309 = vmatprep.subr.mxu0 0.0
    %310 = vmatpush1.msra.mxu0 0.0
    %311 = vmatprep.subr.mxu0 0.0
    %312 = vmatpush1.msra.mxu0 0.0
    %313 = vmatprep.subr.mxu0 0.0
    %314 = vmatpush1.msra.mxu0 0.0
    %315 = vmatprep.subr.mxu0 0.0
    %316 = vmatpush1.msra.mxu0 0.0
    %317 = vmatprep.subr.mxu0 0.0
    %318 = vmatpush1.msra.mxu0 0.0
    %319 = vmatprep.subr.mxu0 0.0
    %320 = vmatpush1.msra.mxu0 0.0
    %321 = vmatprep.mubr.f32.mxu0 0.0
    %322 = vmatmul.mubr.f32.gmra.mrb[0].mxu0 %v246
    %v323 = vpop.f32.mrb[0].mxu0
    %v324 = vadd.f32 %v243, %v323
    %v325 = vpop.f32.mrb[0].mxu0
    %326 = vmatprep.mubr.f32.mxu0 0.0
    %327 = vmatmul.mubr.f32.gmra.mrb[0].mxu0 %v249
    %v328 = vpop.f32.mrb[0].mxu0
    %v329 = vadd.f32 %v243, %v328
    %v330 = vpop.f32.mrb[0].mxu0
    %331 = vmatprep.mubr.f32.mxu0 0.0
    %332 = vmatmul.mubr.f32.gmra.mrb[0].mxu0 %v252
    %v333 = vpop.f32.mrb[0].mxu0
    %v334 = vadd.f32 %v243, %v333
    %v335 = vpop.f32.mrb[0].mxu0
    %336 = vmatprep.mubr.f32.mxu0 0.0
    %337 = vmatmul.mubr.f32.gmra.mrb[0].mxu0 %v255
    %v338 = vpop.f32.mrb[0].mxu0
    %v339 = vadd.f32 %v243, %v338
    %v340 = vpop.f32.mrb[0].mxu0
    %341 = vdwg.mxu0
    %v342 = vld [vmem:[#allocation7] sm:$0xff]
    %v343 = vld [vmem:[#allocation7 + $0x8] sm:$0xff]
    %v344 = vld [vmem:[#allocation7 + $0x10] sm:$0xff]
    %v345 = vld [vmem:[#allocation7 + $0x18] sm:$0xff]
    %v346 = vld [vmem:[#allocation11] sm:$0xff]
    %v347 = vld [vmem:[#allocation11 + $0x8] sm:$0xff]
    %v348 = vld [vmem:[#allocation11 + $0x10] sm:$0xff]
    %v349 = vld [vmem:[#allocation11 + $0x18] sm:$0xff]
    %v350 = vld [vmem:[#allocation13] sm:$0x1]
    %v352 = vlaneseq
    %v353 = vshrl.u32 %v352, 7
    %v354 = vsub.s32 0, %v353
    %v355 = vrot.slane %v350, %v354
    %v358 = vsel %vm148, %v342, 0
    %v361 = vsel %vm148, %v343, 0
    %v364 = vsel %vm148, %v344, 0
    %v367 = vsel %vm148, %v345, 0
    %369 = vmatprep.subr.mxu0 0.0
    %370 = vmatpush1.msra.mxu0 %v346
    %371 = vmatprep.subr.mxu0 0.0
    %372 = vmatpush1.msra.mxu0 %v347
    %373 = vmatprep.subr.mxu0 0.0
    %374 = vmatpush1.msra.mxu0 %v348
    %375 = vmatprep.subr.mxu0 0.0
    %376 = vmatpush1.msra.mxu0 %v349
    %377 = vmatprep.subr.mxu0 0.0
    %378 = vmatpush1.msra.mxu0 0.0
    %379 = vmatprep.subr.mxu0 0.0
    %380 = vmatpush1.msra.mxu0 0.0
    %381 = vmatprep.subr.mxu0 0.0
    %382 = vmatpush1.msra.mxu0 0.0
    %383 = vmatprep.subr.mxu0 0.0
    %384 = vmatpush1.msra.mxu0 0.0
    %385 = vmatprep.subr.mxu0 0.0
    %386 = vmatpush1.msra.mxu0 0.0
    %387 = vmatprep.subr.mxu0 0.0
    %388 = vmatpush1.msra.mxu0 0.0
    %389 = vmatprep.subr.mxu0 0.0
    %390 = vmatpush1.msra.mxu0 0.0
    %391 = vmatprep.subr.mxu0 0.0
    %392 = vmatpush1.msra.mxu0 0.0
    %393 = vmatprep.subr.mxu0 0.0
    %394 = vmatpush1.msra.mxu0 0.0
    %395 = vmatprep.subr.mxu0 0.0
    %396 = vmatpush1.msra.mxu0 0.0
    %397 = vmatprep.subr.mxu0 0.0
    %398 = vmatpush1.msra.mxu0 0.0
    %399 = vmatprep.subr.mxu0 0.0
    %400 = vmatpush1.msra.mxu0 0.0
    %401 = vmatprep.subr.mxu0 0.0
    %402 = vmatpush1.msra.mxu0 0.0
    %403 = vmatprep.subr.mxu0 0.0
    %404 = vmatpush1.msra.mxu0 0.0
    %405 = vmatprep.subr.mxu0 0.0
    %406 = vmatpush1.msra.mxu0 0.0
    %407 = vmatprep.subr.mxu0 0.0
    %408 = vmatpush1.msra.mxu0 0.0
    %409 = vmatprep.subr.mxu0 0.0
    %410 = vmatpush1.msra.mxu0 0.0
    %411 = vmatprep.subr.mxu0 0.0
    %412 = vmatpush1.msra.mxu0 0.0
    %413 = vmatprep.subr.mxu0 0.0
    %414 = vmatpush1.msra.mxu0 0.0
    %415 = vmatprep.subr.mxu0 0.0
    %416 = vmatpush1.msra.mxu0 0.0
    %417 = vmatprep.subr.mxu0 0.0
    %418 = vmatpush1.msra.mxu0 0.0
    %419 = vmatprep.subr.mxu0 0.0
    %420 = vmatpush1.msra.mxu0 0.0
    %421 = vmatprep.subr.mxu0 0.0
    %422 = vmatpush1.msra.mxu0 0.0
    %423 = vmatprep.subr.mxu0 0.0
    %424 = vmatpush1.msra.mxu0 0.0
    %425 = vmatprep.subr.mxu0 0.0
    %426 = vmatpush1.msra.mxu0 0.0
    %427 = vmatprep.subr.mxu0 0.0
    %428 = vmatpush1.msra.mxu0 0.0
    %429 = vmatprep.subr.mxu0 0.0
    %430 = vmatpush1.msra.mxu0 0.0
    %431 = vmatprep.subr.mxu0 0.0
    %432 = vmatpush1.msra.mxu0 0.0
    %433 = vmatprep.mubr.f32.mxu0 0.0
    %434 = vmatmul.mubr.f32.gmra.mrb[0].mxu0 %v358
    %v435 = vpop.f32.mrb[0].mxu0
    %v436 = vadd.f32 %v355, %v435
    %v437 = vpop.f32.mrb[0].mxu0
    %438 = vmatprep.mubr.f32.mxu0 0.0
    %439 = vmatmul.mubr.f32.gmra.mrb[0].mxu0 %v361
    %v440 = vpop.f32.mrb[0].mxu0
    %v441 = vadd.f32 %v355, %v440
    %v442 = vpop.f32.mrb[0].mxu0
    %443 = vmatprep.mubr.f32.mxu0 0.0
    %444 = vmatmul.mubr.f32.gmra.mrb[0].mxu0 %v364
    %v445 = vpop.f32.mrb[0].mxu0
    %v446 = vadd.f32 %v355, %v445
    %v447 = vpop.f32.mrb[0].mxu0
    %448 = vmatprep.mubr.f32.mxu0 0.0
    %449 = vmatmul.mubr.f32.gmra.mrb[0].mxu0 %v367
    %v450 = vpop.f32.mrb[0].mxu0
    %v451 = vadd.f32 %v355, %v450
    %v452 = vpop.f32.mrb[0].mxu0
    %453 = vdwg.mxu0
    %vm454 = vcmask 64512
    %v456 = vsel %vm454, %v222, 0
    %v459 = vsel %vm454, %v324, 0
    %v462 = vsel %vm454, %v329, 0
    %464 = vmatprep.subr.mxu0 0.0
    %465 = vmatpush1.xpose.msra.mxu0 %v459
    %466 = vmatprep.subr.mxu0 0.0
    %467 = vmatpush1.xpose.msra.mxu0 %v462
    %468 = vmatprep.subr.mxu0 0.0
    %469 = vmatpush1.xpose.msra.mxu0 0.0
    %470 = vmatprep.subr.mxu0 0.0
    %471 = vmatpush1.xpose.msra.mxu0 0.0
    %472 = vmatprep.subr.mxu0 0.0
    %473 = vmatpush1.xpose.msra.mxu0 0.0
    %474 = vmatprep.subr.mxu0 0.0
    %475 = vmatpush1.xpose.msra.mxu0 0.0
    %476 = vmatprep.subr.mxu0 0.0
    %477 = vmatpush1.xpose.msra.mxu0 0.0
    %478 = vmatprep.subr.mxu0 0.0
    %479 = vmatpush1.xpose.msra.mxu0 0.0
    %480 = vmatprep.subr.mxu0 0.0
    %481 = vmatpush1.xpose.msra.mxu0 0.0
    %482 = vmatprep.subr.mxu0 0.0
    %483 = vmatpush1.xpose.msra.mxu0 0.0
    %484 = vmatprep.subr.mxu0 0.0
    %485 = vmatpush1.xpose.msra.mxu0 0.0
    %486 = vmatprep.subr.mxu0 0.0
    %487 = vmatpush1.xpose.msra.mxu0 0.0
    %488 = vmatprep.subr.mxu0 0.0
    %489 = vmatpush1.xpose.msra.mxu0 0.0
    %490 = vmatprep.subr.mxu0 0.0
    %491 = vmatpush1.xpose.msra.mxu0 0.0
    %492 = vmatprep.subr.mxu0 0.0
    %493 = vmatpush1.xpose.msra.mxu0 0.0
    %494 = vmatprep.subr.mxu0 0.0
    %495 = vmatpush1.xpose.msra.mxu0 0.0
    %496 = vmatprep.subr.mxu0 0.0
    %497 = vmatpush1.xpose.msra.mxu0 0.0
    %498 = vmatprep.subr.mxu0 0.0
    %499 = vmatpush1.xpose.msra.mxu0 0.0
    %500 = vmatprep.subr.mxu0 0.0
    %501 = vmatpush1.xpose.msra.mxu0 0.0
    %502 = vmatprep.subr.mxu0 0.0
    %503 = vmatpush1.xpose.msra.mxu0 0.0
    %504 = vmatprep.subr.mxu0 0.0
    %505 = vmatpush1.xpose.msra.mxu0 0.0
    %506 = vmatprep.subr.mxu0 0.0
    %507 = vmatpush1.xpose.msra.mxu0 0.0
    %508 = vmatprep.subr.mxu0 0.0
    %509 = vmatpush1.xpose.msra.mxu0 0.0
    %510 = vmatprep.subr.mxu0 0.0
    %511 = vmatpush1.xpose.msra.mxu0 0.0
    %512 = vmatprep.subr.mxu0 0.0
    %513 = vmatpush1.xpose.msra.mxu0 0.0
    %514 = vmatprep.subr.mxu0 0.0
    %515 = vmatpush1.xpose.msra.mxu0 0.0
    %516 = vmatprep.subr.mxu0 0.0
    %517 = vmatpush1.xpose.msra.mxu0 0.0
    %518 = vmatprep.subr.mxu0 0.0
    %519 = vmatpush1.xpose.msra.mxu0 0.0
    %520 = vmatprep.subr.mxu0 0.0
    %521 = vmatpush1.xpose.msra.mxu0 0.0
    %522 = vmatprep.subr.mxu0 0.0
    %523 = vmatpush1.xpose.msra.mxu0 0.0
    %524 = vmatprep.subr.mxu0 0.0
    %525 = vmatpush1.xpose.msra.mxu0 0.0
    %526 = vmatprep.subr.mxu0 0.0
    %527 = vmatpush1.xpose.msra.mxu0 0.0
    %528 = vmatprep.mubr.f32.mxu0 0.0
    %529 = vmatmul.mubr.f32.gmra.mrb[0].mxu0 %v456
    %v530 = vpop.f32.mrb[0].mxu0
    %v531 = vadd.f32 0.0, %v530
    %v532 = vpop.f32.mrb[0].mxu0
    %533 = vdwg.mxu0
    %v535 = vsel %vm454, %v227, 0
    %v538 = vsel %vm454, %v334, 0
    %v541 = vsel %vm454, %v339, 0
    %543 = vmatprep.subr.mxu0 0.0
    %544 = vmatpush1.xpose.msra.mxu0 %v538
    %545 = vmatprep.subr.mxu0 0.0
    %546 = vmatpush1.xpose.msra.mxu0 %v541
    %547 = vmatprep.subr.mxu0 0.0
    %548 = vmatpush1.xpose.msra.mxu0 0.0
    %549 = vmatprep.subr.mxu0 0.0
    %550 = vmatpush1.xpose.msra.mxu0 0.0
    %551 = vmatprep.subr.mxu0 0.0
    %552 = vmatpush1.xpose.msra.mxu0 0.0
    %553 = vmatprep.subr.mxu0 0.0
    %554 = vmatpush1.xpose.msra.mxu0 0.0
    %555 = vmatprep.subr.mxu0 0.0
    %556 = vmatpush1.xpose.msra.mxu0 0.0
    %557 = vmatprep.subr.mxu0 0.0
    %558 = vmatpush1.xpose.msra.mxu0 0.0
    %559 = vmatprep.subr.mxu0 0.0
    %560 = vmatpush1.xpose.msra.mxu0 0.0
    %561 = vmatprep.subr.mxu0 0.0
    %562 = vmatpush1.xpose.msra.mxu0 0.0
    %563 = vmatprep.subr.mxu0 0.0
    %564 = vmatpush1.xpose.msra.mxu0 0.0
    %565 = vmatprep.subr.mxu0 0.0
    %566 = vmatpush1.xpose.msra.mxu0 0.0
    %567 = vmatprep.subr.mxu0 0.0
    %568 = vmatpush1.xpose.msra.mxu0 0.0
    %569 = vmatprep.subr.mxu0 0.0
    %570 = vmatpush1.xpose.msra.mxu0 0.0
    %571 = vmatprep.subr.mxu0 0.0
    %572 = vmatpush1.xpose.msra.mxu0 0.0
    %573 = vmatprep.subr.mxu0 0.0
    %574 = vmatpush1.xpose.msra.mxu0 0.0
    %575 = vmatprep.subr.mxu0 0.0
    %576 = vmatpush1.xpose.msra.mxu0 0.0
    %577 = vmatprep.subr.mxu0 0.0
    %578 = vmatpush1.xpose.msra.mxu0 0.0
    %579 = vmatprep.subr.mxu0 0.0
    %580 = vmatpush1.xpose.msra.mxu0 0.0
    %581 = vmatprep.subr.mxu0 0.0
    %582 = vmatpush1.xpose.msra.mxu0 0.0
    %583 = vmatprep.subr.mxu0 0.0
    %584 = vmatpush1.xpose.msra.mxu0 0.0
    %585 = vmatprep.subr.mxu0 0.0
    %586 = vmatpush1.xpose.msra.mxu0 0.0
    %587 = vmatprep.subr.mxu0 0.0
    %588 = vmatpush1.xpose.msra.mxu0 0.0
    %589 = vmatprep.subr.mxu0 0.0
    %590 = vmatpush1.xpose.msra.mxu0 0.0
    %591 = vmatprep.subr.mxu0 0.0
    %592 = vmatpush1.xpose.msra.mxu0 0.0
    %593 = vmatprep.subr.mxu0 0.0
    %594 = vmatpush1.xpose.msra.mxu0 0.0
    %595 = vmatprep.subr.mxu0 0.0
    %596 = vmatpush1.xpose.msra.mxu0 0.0
    %597 = vmatprep.subr.mxu0 0.0
    %598 = vmatpush1.xpose.msra.mxu0 0.0
    %599 = vmatprep.subr.mxu0 0.0
    %600 = vmatpush1.xpose.msra.mxu0 0.0
    %601 = vmatprep.subr.mxu0 0.0
    %602 = vmatpush1.xpose.msra.mxu0 0.0
    %603 = vmatprep.subr.mxu0 0.0
    %604 = vmatpush1.xpose.msra.mxu0 0.0
    %605 = vmatprep.subr.mxu0 0.0
    %606 = vmatpush1.xpose.msra.mxu0 0.0
    %607 = vmatprep.mubr.f32.mxu0 0.0
    %608 = vmatmul.mubr.f32.gmra.mrb[0].mxu0 %v535
    %v609 = vpop.f32.mrb[0].mxu0
    %v610 = vadd.f32 0.0, %v609
    %v611 = vpop.f32.mrb[0].mxu0
    %612 = vdwg.mxu0
    %vm613 = vcmask 130048
    %v614 = vsel %vm613, %v531, -inf
    %615 = vmax.xlane.f32.xlu0 %v614
    %v616 = vpop.xlane.xlu0 %615
    %v617 = vsel %vm613, %v610, -inf
    %618 = vmax.xlane.f32.xlu0 %v617
    %v619 = vpop.xlane.xlu0 %618
    %v620 = vsub.f32 %v531, %v616
    %v621 = vsub.f32 %v610, %v619
    %v622 = vmul.f32 %v620, 1.442695
    %v623 = vpow.pop %v622
    %v624 = vmul.f32 %v621, 1.442695
    %v625 = vpow.pop %v624
    %v626 = vsel %vm613, %v623, 0.0
    %627 = vadd.xlane.f32.xlu0 %v626
    %v628 = vpop.xlane.xlu0 %627
    %v629 = vsel %vm613, %v625, 0.0
    %630 = vadd.xlane.f32.xlu0 %v629
    %v631 = vpop.xlane.xlu0 %630
    %v632 = vrcp.pop %v628
    %v633 = vrcp.pop %v631
    %v634 = vmul.f32 %v623, %v632
    %v635 = vmul.f32 %v625, %v633
    %636 = vst.msk [vmem:[#allocation14] sm:$0xff] %vm613, %v634
    %637 = vst.msk [vmem:[#allocation14 + $0x20] sm:$0xff] %vm613, %v635
    %v639 = vsel %vm613, %v634, 0
    %641 = vmatprep.subr.mxu0 0.0
    %642 = vmatpush1.msra.mxu0 %v436
    %643 = vmatprep.subr.mxu0 0.0
    %644 = vmatpush1.msra.mxu0 %v441
    %645 = vmatprep.subr.mxu0 0.0
    %646 = vmatpush1.msra.mxu0 0.0
    %647 = vmatprep.subr.mxu0 0.0
    %648 = vmatpush1.msra.mxu0 0.0
    %649 = vmatprep.subr.mxu0 0.0
    %650 = vmatpush1.msra.mxu0 0.0
    %651 = vmatprep.subr.mxu0 0.0
    %652 = vmatpush1.msra.mxu0 0.0
    %653 = vmatprep.subr.mxu0 0.0
    %654 = vmatpush1.msra.mxu0 0.0
    %655 = vmatprep.subr.mxu0 0.0
    %656 = vmatpush1.msra.mxu0 0.0
    %657 = vmatprep.subr.mxu0 0.0
    %658 = vmatpush1.msra.mxu0 0.0
    %659 = vmatprep.subr.mxu0 0.0
    %660 = vmatpush1.msra.mxu0 0.0
    %661 = vmatprep.subr.mxu0 0.0
    %662 = vmatpush1.msra.mxu0 0.0
    %663 = vmatprep.subr.mxu0 0.0
    %664 = vmatpush1.msra.mxu0 0.0
    %665 = vmatprep.subr.mxu0 0.0
    %666 = vmatpush1.msra.mxu0 0.0
    %667 = vmatprep.subr.mxu0 0.0
    %668 = vmatpush1.msra.mxu0 0.0
    %669 = vmatprep.subr.mxu0 0.0
    %670 = vmatpush1.msra.mxu0 0.0
    %671 = vmatprep.subr.mxu0 0.0
    %672 = vmatpush1.msra.mxu0 0.0
    %673 = vmatprep.subr.mxu0 0.0
    %674 = vmatpush1.msra.mxu0 0.0
    %675 = vmatprep.subr.mxu0 0.0
    %676 = vmatpush1.msra.mxu0 0.0
    %677 = vmatprep.subr.mxu0 0.0
    %678 = vmatpush1.msra.mxu0 0.0
    %679 = vmatprep.subr.mxu0 0.0
    %680 = vmatpush1.msra.mxu0 0.0
    %681 = vmatprep.subr.mxu0 0.0
    %682 = vmatpush1.msra.mxu0 0.0
    %683 = vmatprep.subr.mxu0 0.0
    %684 = vmatpush1.msra.mxu0 0.0
    %685 = vmatprep.subr.mxu0 0.0
    %686 = vmatpush1.msra.mxu0 0.0
    %687 = vmatprep.subr.mxu0 0.0
    %688 = vmatpush1.msra.mxu0 0.0
    %689 = vmatprep.subr.mxu0 0.0
    %690 = vmatpush1.msra.mxu0 0.0
    %691 = vmatprep.subr.mxu0 0.0
    %692 = vmatpush1.msra.mxu0 0.0
    %693 = vmatprep.subr.mxu0 0.0
    %694 = vmatpush1.msra.mxu0 0.0
    %695 = vmatprep.subr.mxu0 0.0
    %696 = vmatpush1.msra.mxu0 0.0
    %697 = vmatprep.subr.mxu0 0.0
    %698 = vmatpush1.msra.mxu0 0.0
    %699 = vmatprep.subr.mxu0 0.0
    %700 = vmatpush1.msra.mxu0 0.0
    %701 = vmatprep.subr.mxu0 0.0
    %702 = vmatpush1.msra.mxu0 0.0
    %703 = vmatprep.subr.mxu0 0.0
    %704 = vmatpush1.msra.mxu0 0.0
    %705 = vmatprep.mubr.f32.mxu0 0.0
    %706 = vmatmul.mubr.f32.gmra.mrb[0].mxu0 %v639
    %v707 = vpop.f32.mrb[0].mxu0
    %v708 = vadd.f32 0.0, %v707
    %v709 = vpop.f32.mrb[0].mxu0
    %710 = vdwg.mxu0
    %v712 = vsel %vm613, %v635, 0
    %714 = vmatprep.subr.mxu0 0.0
    %715 = vmatpush1.msra.mxu0 %v446
    %716 = vmatprep.subr.mxu0 0.0
    %717 = vmatpush1.msra.mxu0 %v451
    %718 = vmatprep.subr.mxu0 0.0
    %719 = vmatpush1.msra.mxu0 0.0
    %720 = vmatprep.subr.mxu0 0.0
    %721 = vmatpush1.msra.mxu0 0.0
    %722 = vmatprep.subr.mxu0 0.0
    %723 = vmatpush1.msra.mxu0 0.0
    %724 = vmatprep.subr.mxu0 0.0
    %725 = vmatpush1.msra.mxu0 0.0
    %726 = vmatprep.subr.mxu0 0.0
    %727 = vmatpush1.msra.mxu0 0.0
    %728 = vmatprep.subr.mxu0 0.0
    %729 = vmatpush1.msra.mxu0 0.0
    %730 = vmatprep.subr.mxu0 0.0
    %731 = vmatpush1.msra.mxu0 0.0
    %732 = vmatprep.subr.mxu0 0.0
    %733 = vmatpush1.msra.mxu0 0.0
    %734 = vmatprep.subr.mxu0 0.0
    %735 = vmatpush1.msra.mxu0 0.0
    %736 = vmatprep.subr.mxu0 0.0
    %737 = vmatpush1.msra.mxu0 0.0
    %738 = vmatprep.subr.mxu0 0.0
    %739 = vmatpush1.msra.mxu0 0.0
    %740 = vmatprep.subr.mxu0 0.0
    %741 = vmatpush1.msra.mxu0 0.0
    %742 = vmatprep.subr.mxu0 0.0
    %743 = vmatpush1.msra.mxu0 0.0
    %744 = vmatprep.subr.mxu0 0.0
    %745 = vmatpush1.msra.mxu0 0.0
    %746 = vmatprep.subr.mxu0 0.0
    %747 = vmatpush1.msra.mxu0 0.0
    %748 = vmatprep.subr.mxu0 0.0
    %749 = vmatpush1.msra.mxu0 0.0
    %750 = vmatprep.subr.mxu0 0.0
    %751 = vmatpush1.msra.mxu0 0.0
    %752 = vmatprep.subr.mxu0 0.0
    %753 = vmatpush1.msra.mxu0 0.0
    %754 = vmatprep.subr.mxu0 0.0
    %755 = vmatpush1.msra.mxu0 0.0
    %756 = vmatprep.subr.mxu0 0.0
    %757 = vmatpush1.msra.mxu0 0.0
    %758 = vmatprep.subr.mxu0 0.0
    %759 = vmatpush1.msra.mxu0 0.0
    %760 = vmatprep.subr.mxu0 0.0
    %761 = vmatpush1.msra.mxu0 0.0
    %762 = vmatprep.subr.mxu0 0.0
    %763 = vmatpush1.msra.mxu0 0.0
    %764 = vmatprep.subr.mxu0 0.0
    %765 = vmatpush1.msra.mxu0 0.0
    %766 = vmatprep.subr.mxu0 0.0
    %767 = vmatpush1.msra.mxu0 0.0
    %768 = vmatprep.subr.mxu0 0.0
    %769 = vmatpush1.msra.mxu0 0.0
    %770 = vmatprep.subr.mxu0 0.0
    %771 = vmatpush1.msra.mxu0 0.0
    %772 = vmatprep.subr.mxu0 0.0
    %773 = vmatpush1.msra.mxu0 0.0
    %774 = vmatprep.subr.mxu0 0.0
    %775 = vmatpush1.msra.mxu0 0.0
    %776 = vmatprep.subr.mxu0 0.0
    %777 = vmatpush1.msra.mxu0 0.0
    %778 = vmatprep.mubr.f32.mxu0 0.0
    %779 = vmatmul.mubr.f32.gmra.mrb[0].mxu0 %v712
    %v780 = vpop.f32.mrb[0].mxu0
    %v781 = vadd.f32 0.0, %v780
    %v782 = vpop.f32.mrb[0].mxu0
    %783 = vdwg.mxu0
    %784 = vrot.lane.b32.xlu0 %v222, 120
    %v785 = vpop.permute.xlu0 %784
    %786 = vrot.lane.b32.xlu0 %v324, 120
    %v787 = vpop.permute.xlu0 %786
    %788 = vrot.lane.b32.xlu0 %v329, 120
    %v789 = vpop.permute.xlu0 %788
    %v790 = vsel %vm454, %v785, 0
    %v792 = vsel %vm454, %v787, 0
    %v794 = vsel %vm454, %v789, 0
    %796 = vmatprep.subr.mxu0 0.0
    %797 = vmatpush1.xpose.msra.mxu0 %v792
    %798 = vmatprep.subr.mxu0 0.0
    %799 = vmatpush1.xpose.msra.mxu0 %v794
    %800 = vmatprep.subr.mxu0 0.0
    %801 = vmatpush1.xpose.msra.mxu0 0.0
    %802 = vmatprep.subr.mxu0 0.0
    %803 = vmatpush1.xpose.msra.mxu0 0.0
    %804 = vmatprep.subr.mxu0 0.0
    %805 = vmatpush1.xpose.msra.mxu0 0.0
    %806 = vmatprep.subr.mxu0 0.0
    %807 = vmatpush1.xpose.msra.mxu0 0.0
    %808 = vmatprep.subr.mxu0 0.0
    %809 = vmatpush1.xpose.msra.mxu0 0.0
    %810 = vmatprep.subr.mxu0 0.0
    %811 = vmatpush1.xpose.msra.mxu0 0.0
    %812 = vmatprep.subr.mxu0 0.0
    %813 = vmatpush1.xpose.msra.mxu0 0.0
    %814 = vmatprep.subr.mxu0 0.0
    %815 = vmatpush1.xpose.msra.mxu0 0.0
    %816 = vmatprep.subr.mxu0 0.0
    %817 = vmatpush1.xpose.msra.mxu0 0.0
    %818 = vmatprep.subr.mxu0 0.0
    %819 = vmatpush1.xpose.msra.mxu0 0.0
    %820 = vmatprep.subr.mxu0 0.0
    %821 = vmatpush1.xpose.msra.mxu0 0.0
    %822 = vmatprep.subr.mxu0 0.0
    %823 = vmatpush1.xpose.msra.mxu0 0.0
    %824 = vmatprep.subr.mxu0 0.0
    %825 = vmatpush1.xpose.msra.mxu0 0.0
    %826 = vmatprep.subr.mxu0 0.0
    %827 = vmatpush1.xpose.msra.mxu0 0.0
    %828 = vmatprep.subr.mxu0 0.0
    %829 = vmatpush1.xpose.msra.mxu0 0.0
    %830 = vmatprep.subr.mxu0 0.0
    %831 = vmatpush1.xpose.msra.mxu0 0.0
    %832 = vmatprep.subr.mxu0 0.0
    %833 = vmatpush1.xpose.msra.mxu0 0.0
    %834 = vmatprep.subr.mxu0 0.0
    %835 = vmatpush1.xpose.msra.mxu0 0.0
    %836 = vmatprep.subr.mxu0 0.0
    %837 = vmatpush1.xpose.msra.mxu0 0.0
    %838 = vmatprep.subr.mxu0 0.0
    %839 = vmatpush1.xpose.msra.mxu0 0.0
    %840 = vmatprep.subr.mxu0 0.0
    %841 = vmatpush1.xpose.msra.mxu0 0.0
    %842 = vmatprep.subr.mxu0 0.0
    %843 = vmatpush1.xpose.msra.mxu0 0.0
    %844 = vmatprep.subr.mxu0 0.0
    %845 = vmatpush1.xpose.msra.mxu0 0.0
    %846 = vmatprep.subr.mxu0 0.0
    %847 = vmatpush1.xpose.msra.mxu0 0.0
    %848 = vmatprep.subr.mxu0 0.0
    %849 = vmatpush1.xpose.msra.mxu0 0.0
    %850 = vmatprep.subr.mxu0 0.0
    %851 = vmatpush1.xpose.msra.mxu0 0.0
    %852 = vmatprep.subr.mxu0 0.0
    %853 = vmatpush1.xpose.msra.mxu0 0.0
    %854 = vmatprep.subr.mxu0 0.0
    %855 = vmatpush1.xpose.msra.mxu0 0.0
    %856 = vmatprep.subr.mxu0 0.0
    %857 = vmatpush1.xpose.msra.mxu0 0.0
    %858 = vmatprep.subr.mxu0 0.0
    %859 = vmatpush1.xpose.msra.mxu0 0.0
    %860 = vmatprep.mubr.f32.mxu0 0.0
    %861 = vmatmul.mubr.f32.gmra.mrb[0].mxu0 %v790
    %v862 = vpop.f32.mrb[0].mxu0
    %v863 = vadd.f32 0.0, %v862
    %v864 = vpop.f32.mrb[0].mxu0
    %865 = vdwg.mxu0
    %866 = vrot.lane.b32.xlu0 %v227, 120
    %v867 = vpop.permute.xlu0 %866
    %868 = vrot.lane.b32.xlu0 %v334, 120
    %v869 = vpop.permute.xlu0 %868
    %870 = vrot.lane.b32.xlu0 %v339, 120
    %v871 = vpop.permute.xlu0 %870
    %v872 = vsel %vm454, %v867, 0
    %v874 = vsel %vm454, %v869, 0
    %v876 = vsel %vm454, %v871, 0
    %878 = vmatprep.subr.mxu0 0.0
    %879 = vmatpush1.xpose.msra.mxu0 %v874
    %880 = vmatprep.subr.mxu0 0.0
    %881 = vmatpush1.xpose.msra.mxu0 %v876
    %882 = vmatprep.subr.mxu0 0.0
    %883 = vmatpush1.xpose.msra.mxu0 0.0
    %884 = vmatprep.subr.mxu0 0.0
    %885 = vmatpush1.xpose.msra.mxu0 0.0
    %886 = vmatprep.subr.mxu0 0.0
    %887 = vmatpush1.xpose.msra.mxu0 0.0
    %888 = vmatprep.subr.mxu0 0.0
    %889 = vmatpush1.xpose.msra.mxu0 0.0
    %890 = vmatprep.subr.mxu0 0.0
    %891 = vmatpush1.xpose.msra.mxu0 0.0
    %892 = vmatprep.subr.mxu0 0.0
    %893 = vmatpush1.xpose.msra.mxu0 0.0
    %894 = vmatprep.subr.mxu0 0.0
    %895 = vmatpush1.xpose.msra.mxu0 0.0
    %896 = vmatprep.subr.mxu0 0.0
    %897 = vmatpush1.xpose.msra.mxu0 0.0
    %898 = vmatprep.subr.mxu0 0.0
    %899 = vmatpush1.xpose.msra.mxu0 0.0
    %900 = vmatprep.subr.mxu0 0.0
    %901 = vmatpush1.xpose.msra.mxu0 0.0
    %902 = vmatprep.subr.mxu0 0.0
    %903 = vmatpush1.xpose.msra.mxu0 0.0
    %904 = vmatprep.subr.mxu0 0.0
    %905 = vmatpush1.xpose.msra.mxu0 0.0
    %906 = vmatprep.subr.mxu0 0.0
    %907 = vmatpush1.xpose.msra.mxu0 0.0
    %908 = vmatprep.subr.mxu0 0.0
    %909 = vmatpush1.xpose.msra.mxu0 0.0
    %910 = vmatprep.subr.mxu0 0.0
    %911 = vmatpush1.xpose.msra.mxu0 0.0
    %912 = vmatprep.subr.mxu0 0.0
    %913 = vmatpush1.xpose.msra.mxu0 0.0
    %914 = vmatprep.subr.mxu0 0.0
    %915 = vmatpush1.xpose.msra.mxu0 0.0
    %916 = vmatprep.subr.mxu0 0.0
    %917 = vmatpush1.xpose.msra.mxu0 0.0
    %918 = vmatprep.subr.mxu0 0.0
    %919 = vmatpush1.xpose.msra.mxu0 0.0
    %920 = vmatprep.subr.mxu0 0.0
    %921 = vmatpush1.xpose.msra.mxu0 0.0
    %922 = vmatprep.subr.mxu0 0.0
    %923 = vmatpush1.xpose.msra.mxu0 0.0
    %924 = vmatprep.subr.mxu0 0.0
    %925 = vmatpush1.xpose.msra.mxu0 0.0
    %926 = vmatprep.subr.mxu0 0.0
    %927 = vmatpush1.xpose.msra.mxu0 0.0
    %928 = vmatprep.subr.mxu0 0.0
    %929 = vmatpush1.xpose.msra.mxu0 0.0
    %930 = vmatprep.subr.mxu0 0.0
    %931 = vmatpush1.xpose.msra.mxu0 0.0
    %932 = vmatprep.subr.mxu0 0.0
    %933 = vmatpush1.xpose.msra.mxu0 0.0
    %934 = vmatprep.subr.mxu0 0.0
    %935 = vmatpush1.xpose.msra.mxu0 0.0
    %936 = vmatprep.subr.mxu0 0.0
    %937 = vmatpush1.xpose.msra.mxu0 0.0
    %938 = vmatprep.subr.mxu0 0.0
    %939 = vmatpush1.xpose.msra.mxu0 0.0
    %940 = vmatprep.subr.mxu0 0.0
    %941 = vmatpush1.xpose.msra.mxu0 0.0
    %942 = vmatprep.mubr.f32.mxu0 0.0
    %943 = vmatmul.mubr.f32.gmra.mrb[0].mxu0 %v872
    %v944 = vpop.f32.mrb[0].mxu0
    %v945 = vadd.f32 0.0, %v944
    %v946 = vpop.f32.mrb[0].mxu0
    %947 = vdwg.mxu0
    %v948 = vsel %vm613, %v863, -inf
    %949 = vmax.xlane.f32.xlu0 %v948
    %v950 = vpop.xlane.xlu0 %949
    %v951 = vsel %vm613, %v945, -inf
    %952 = vmax.xlane.f32.xlu0 %v951
    %v953 = vpop.xlane.xlu0 %952
    %v954 = vsub.f32 %v863, %v950
    %v955 = vsub.f32 %v945, %v953
    %v956 = vmul.f32 %v954, 1.442695
    %v957 = vpow.pop %v956
    %v958 = vmul.f32 %v955, 1.442695
    %v959 = vpow.pop %v958
    %v960 = vsel %vm613, %v957, 0.0
    %961 = vadd.xlane.f32.xlu0 %v960
    %v962 = vpop.xlane.xlu0 %961
    %v963 = vsel %vm613, %v959, 0.0
    %964 = vadd.xlane.f32.xlu0 %v963
    %v965 = vpop.xlane.xlu0 %964
    %v966 = vrcp.pop %v962
    %v967 = vrcp.pop %v965
    %v968 = vmul.f32 %v957, %v966
    %v969 = vmul.f32 %v959, %v967
    %s970 = scalar_lea.vmem [#allocation14], 8
    %971 = vst.msk [vmem:[%s970] sm:$0xff] %vm613, %v968
    %972 = vst.msk [vmem:[%s970 + $0x20] sm:$0xff] %vm613, %v969
    %975 = vrot.lane.b32.xlu0 %v436, 120
    %v976 = vpop.permute.xlu0 %975
    %977 = vrot.lane.b32.xlu0 %v441, 120
    %v978 = vpop.permute.xlu0 %977
    %v982 = vsel %vm613, %v968, 0
    %984 = vmatprep.subr.mxu0 0.0
    %985 = vmatpush1.msra.mxu0 %v976
    %986 = vmatprep.subr.mxu0 0.0
    %987 = vmatpush1.msra.mxu0 %v978
    %988 = vmatprep.subr.mxu0 0.0
    %989 = vmatpush1.msra.mxu0 0.0
    %990 = vmatprep.subr.mxu0 0.0
    %991 = vmatpush1.msra.mxu0 0.0
    %992 = vmatprep.subr.mxu0 0.0
    %993 = vmatpush1.msra.mxu0 0.0
    %994 = vmatprep.subr.mxu0 0.0
    %995 = vmatpush1.msra.mxu0 0.0
    %996 = vmatprep.subr.mxu0 0.0
    %997 = vmatpush1.msra.mxu0 0.0
    %998 = vmatprep.subr.mxu0 0.0
    %999 = vmatpush1.msra.mxu0 0.0
    %1000 = vmatprep.subr.mxu0 0.0
    %1001 = vmatpush1.msra.mxu0 0.0
    %1002 = vmatprep.subr.mxu0 0.0
    %1003 = vmatpush1.msra.mxu0 0.0
    %1004 = vmatprep.subr.mxu0 0.0
    %1005 = vmatpush1.msra.mxu0 0.0
    %1006 = vmatprep.subr.mxu0 0.0
    %1007 = vmatpush1.msra.mxu0 0.0
    %1008 = vmatprep.subr.mxu0 0.0
    %1009 = vmatpush1.msra.mxu0 0.0
    %1010 = vmatprep.subr.mxu0 0.0
    %1011 = vmatpush1.msra.mxu0 0.0
    %1012 = vmatprep.subr.mxu0 0.0
    %1013 = vmatpush1.msra.mxu0 0.0
    %1014 = vmatprep.subr.mxu0 0.0
    %1015 = vmatpush1.msra.mxu0 0.0
    %1016 = vmatprep.subr.mxu0 0.0
    %1017 = vmatpush1.msra.mxu0 0.0
    %1018 = vmatprep.subr.mxu0 0.0
    %1019 = vmatpush1.msra.mxu0 0.0
    %1020 = vmatprep.subr.mxu0 0.0
    %1021 = vmatpush1.msra.mxu0 0.0
    %1022 = vmatprep.subr.mxu0 0.0
    %1023 = vmatpush1.msra.mxu0 0.0
    %1024 = vmatprep.subr.mxu0 0.0
    %1025 = vmatpush1.msra.mxu0 0.0
    %1026 = vmatprep.subr.mxu0 0.0
    %1027 = vmatpush1.msra.mxu0 0.0
    %1028 = vmatprep.subr.mxu0 0.0
    %1029 = vmatpush1.msra.mxu0 0.0
    %1030 = vmatprep.subr.mxu0 0.0
    %1031 = vmatpush1.msra.mxu0 0.0
    %1032 = vmatprep.subr.mxu0 0.0
    %1033 = vmatpush1.msra.mxu0 0.0
    %1034 = vmatprep.subr.mxu0 0.0
    %1035 = vmatpush1.msra.mxu0 0.0
    %1036 = vmatprep.subr.mxu0 0.0
    %1037 = vmatpush1.msra.mxu0 0.0
    %1038 = vmatprep.subr.mxu0 0.0
    %1039 = vmatpush1.msra.mxu0 0.0
    %1040 = vmatprep.subr.mxu0 0.0
    %1041 = vmatpush1.msra.mxu0 0.0
    %1042 = vmatprep.subr.mxu0 0.0
    %1043 = vmatpush1.msra.mxu0 0.0
    %1044 = vmatprep.subr.mxu0 0.0
    %1045 = vmatpush1.msra.mxu0 0.0
    %1046 = vmatprep.subr.mxu0 0.0
    %1047 = vmatpush1.msra.mxu0 0.0
    %1048 = vmatprep.mubr.f32.mxu0 0.0
    %1049 = vmatmul.mubr.f32.gmra.mrb[0].mxu0 %v982
    %v1050 = vpop.f32.mrb[0].mxu0
    %v1051 = vadd.f32 0.0, %v1050
    %v1052 = vpop.f32.mrb[0].mxu0
    %1053 = vdwg.mxu0
    %1056 = vrot.lane.b32.xlu0 %v446, 120
    %v1057 = vpop.permute.xlu0 %1056
    %1058 = vrot.lane.b32.xlu0 %v451, 120
    %v1059 = vpop.permute.xlu0 %1058
    %v1063 = vsel %vm613, %v969, 0
    %1065 = vmatprep.subr.mxu0 0.0
    %1066 = vmatpush1.msra.mxu0 %v1057
    %1067 = vmatprep.subr.mxu0 0.0
    %1068 = vmatpush1.msra.mxu0 %v1059
    %1069 = vmatprep.subr.mxu0 0.0
    %1070 = vmatpush1.msra.mxu0 0.0
    %1071 = vmatprep.subr.mxu0 0.0
    %1072 = vmatpush1.msra.mxu0 0.0
    %1073 = vmatprep.subr.mxu0 0.0
    %1074 = vmatpush1.msra.mxu0 0.0
    %1075 = vmatprep.subr.mxu0 0.0
    %1076 = vmatpush1.msra.mxu0 0.0
    %1077 = vmatprep.subr.mxu0 0.0
    %1078 = vmatpush1.msra.mxu0 0.0
    %1079 = vmatprep.subr.mxu0 0.0
    %1080 = vmatpush1.msra.mxu0 0.0
    %1081 = vmatprep.subr.mxu0 0.0
    %1082 = vmatpush1.msra.mxu0 0.0
    %1083 = vmatprep.subr.mxu0 0.0
    %1084 = vmatpush1.msra.mxu0 0.0
    %1085 = vmatprep.subr.mxu0 0.0
    %1086 = vmatpush1.msra.mxu0 0.0
    %1087 = vmatprep.subr.mxu0 0.0
    %1088 = vmatpush1.msra.mxu0 0.0
    %1089 = vmatprep.subr.mxu0 0.0
    %1090 = vmatpush1.msra.mxu0 0.0
    %1091 = vmatprep.subr.mxu0 0.0
    %1092 = vmatpush1.msra.mxu0 0.0
    %1093 = vmatprep.subr.mxu0 0.0
    %1094 = vmatpush1.msra.mxu0 0.0
    %1095 = vmatprep.subr.mxu0 0.0
    %1096 = vmatpush1.msra.mxu0 0.0
    %1097 = vmatprep.subr.mxu0 0.0
    %1098 = vmatpush1.msra.mxu0 0.0
    %1099 = vmatprep.subr.mxu0 0.0
    %1100 = vmatpush1.msra.mxu0 0.0
    %1101 = vmatprep.subr.mxu0 0.0
    %1102 = vmatpush1.msra.mxu0 0.0
    %1103 = vmatprep.subr.mxu0 0.0
    %1104 = vmatpush1.msra.mxu0 0.0
    %1105 = vmatprep.subr.mxu0 0.0
    %1106 = vmatpush1.msra.mxu0 0.0
    %1107 = vmatprep.subr.mxu0 0.0
    %1108 = vmatpush1.msra.mxu0 0.0
    %1109 = vmatprep.subr.mxu0 0.0
    %1110 = vmatpush1.msra.mxu0 0.0
    %1111 = vmatprep.subr.mxu0 0.0
    %1112 = vmatpush1.msra.mxu0 0.0
    %1113 = vmatprep.subr.mxu0 0.0
    %1114 = vmatpush1.msra.mxu0 0.0
    %1115 = vmatprep.subr.mxu0 0.0
    %1116 = vmatpush1.msra.mxu0 0.0
    %1117 = vmatprep.subr.mxu0 0.0
    %1118 = vmatpush1.msra.mxu0 0.0
    %1119 = vmatprep.subr.mxu0 0.0
    %1120 = vmatpush1.msra.mxu0 0.0
    %1121 = vmatprep.subr.mxu0 0.0
    %1122 = vmatpush1.msra.mxu0 0.0
    %1123 = vmatprep.subr.mxu0 0.0
    %1124 = vmatpush1.msra.mxu0 0.0
    %1125 = vmatprep.subr.mxu0 0.0
    %1126 = vmatpush1.msra.mxu0 0.0
    %1127 = vmatprep.subr.mxu0 0.0
    %1128 = vmatpush1.msra.mxu0 0.0
    %1129 = vmatprep.mubr.f32.mxu0 0.0
    %1130 = vmatmul.mubr.f32.gmra.mrb[0].mxu0 %v1063
    %v1131 = vpop.f32.mrb[0].mxu0
    %v1132 = vadd.f32 0.0, %v1131
    %v1133 = vpop.f32.mrb[0].mxu0
    %1134 = vdwg.mxu0
    %1135 = vrot.lane.b32.xlu0 %v222, 112
    %v1136 = vpop.permute.xlu0 %1135
    %1137 = vrot.lane.b32.xlu0 %v324, 112
    %v1138 = vpop.permute.xlu0 %1137
    %1139 = vrot.lane.b32.xlu0 %v329, 112
    %v1140 = vpop.permute.xlu0 %1139
    %v1141 = vsel %vm454, %v1136, 0
    %v1143 = vsel %vm454, %v1138, 0
    %v1145 = vsel %vm454, %v1140, 0
    %1147 = vmatprep.subr.mxu0 0.0
    %1148 = vmatpush1.xpose.msra.mxu0 %v1143
    %1149 = vmatprep.subr.mxu0 0.0
    %1150 = vmatpush1.xpose.msra.mxu0 %v1145
    %1151 = vmatprep.subr.mxu0 0.0
    %1152 = vmatpush1.xpose.msra.mxu0 0.0
    %1153 = vmatprep.subr.mxu0 0.0
    %1154 = vmatpush1.xpose.msra.mxu0 0.0
    %1155 = vmatprep.subr.mxu0 0.0
    %1156 = vmatpush1.xpose.msra.mxu0 0.0
    %1157 = vmatprep.subr.mxu0 0.0
    %1158 = vmatpush1.xpose.msra.mxu0 0.0
    %1159 = vmatprep.subr.mxu0 0.0
    %1160 = vmatpush1.xpose.msra.mxu0 0.0
    %1161 = vmatprep.subr.mxu0 0.0
    %1162 = vmatpush1.xpose.msra.mxu0 0.0
    %1163 = vmatprep.subr.mxu0 0.0
    %1164 = vmatpush1.xpose.msra.mxu0 0.0
    %1165 = vmatprep.subr.mxu0 0.0
    %1166 = vmatpush1.xpose.msra.mxu0 0.0
    %1167 = vmatprep.subr.mxu0 0.0
    %1168 = vmatpush1.xpose.msra.mxu0 0.0
    %1169 = vmatprep.subr.mxu0 0.0
    %1170 = vmatpush1.xpose.msra.mxu0 0.0
    %1171 = vmatprep.subr.mxu0 0.0
    %1172 = vmatpush1.xpose.msra.mxu0 0.0
    %1173 = vmatprep.subr.mxu0 0.0
    %1174 = vmatpush1.xpose.msra.mxu0 0.0
    %1175 = vmatprep.subr.mxu0 0.0
    %1176 = vmatpush1.xpose.msra.mxu0 0.0
    %1177 = vmatprep.subr.mxu0 0.0
    %1178 = vmatpush1.xpose.msra.mxu0 0.0
    %1179 = vmatprep.subr.mxu0 0.0
    %1180 = vmatpush1.xpose.msra.mxu0 0.0
    %1181 = vmatprep.subr.mxu0 0.0
    %1182 = vmatpush1.xpose.msra.mxu0 0.0
    %1183 = vmatprep.subr.mxu0 0.0
    %1184 = vmatpush1.xpose.msra.mxu0 0.0
    %1185 = vmatprep.subr.mxu0 0.0
    %1186 = vmatpush1.xpose.msra.mxu0 0.0
    %1187 = vmatprep.subr.mxu0 0.0
    %1188 = vmatpush1.xpose.msra.mxu0 0.0
    %1189 = vmatprep.subr.mxu0 0.0
    %1190 = vmatpush1.xpose.msra.mxu0 0.0
    %1191 = vmatprep.subr.mxu0 0.0
    %1192 = vmatpush1.xpose.msra.mxu0 0.0
    %1193 = vmatprep.subr.mxu0 0.0
    %1194 = vmatpush1.xpose.msra.mxu0 0.0
    %1195 = vmatprep.subr.mxu0 0.0
    %1196 = vmatpush1.xpose.msra.mxu0 0.0
    %1197 = vmatprep.subr.mxu0 0.0
    %1198 = vmatpush1.xpose.msra.mxu0 0.0
    %1199 = vmatprep.subr.mxu0 0.0
    %1200 = vmatpush1.xpose.msra.mxu0 0.0
    %1201 = vmatprep.subr.mxu0 0.0
    %1202 = vmatpush1.xpose.msra.mxu0 0.0
    %1203 = vmatprep.subr.mxu0 0.0
    %1204 = vmatpush1.xpose.msra.mxu0 0.0
    %1205 = vmatprep.subr.mxu0 0.0
    %1206 = vmatpush1.xpose.msra.mxu0 0.0
    %1207 = vmatprep.subr.mxu0 0.0
    %1208 = vmatpush1.xpose.msra.mxu0 0.0
    %1209 = vmatprep.subr.mxu0 0.0
    %1210 = vmatpush1.xpose.msra.mxu0 0.0
    %1211 = vmatprep.mubr.f32.mxu0 0.0
    %1212 = vmatmul.mubr.f32.gmra.mrb[0].mxu0 %v1141
    %v1213 = vpop.f32.mrb[0].mxu0
    %v1214 = vadd.f32 0.0, %v1213
    %v1215 = vpop.f32.mrb[0].mxu0
    %1216 = vdwg.mxu0
    %1217 = vrot.lane.b32.xlu0 %v227, 112
    %v1218 = vpop.permute.xlu0 %1217
    %1219 = vrot.lane.b32.xlu0 %v334, 112
    %v1220 = vpop.permute.xlu0 %1219
    %1221 = vrot.lane.b32.xlu0 %v339, 112
    %v1222 = vpop.permute.xlu0 %1221
    %v1223 = vsel %vm454, %v1218, 0
    %v1225 = vsel %vm454, %v1220, 0
    %v1227 = vsel %vm454, %v1222, 0
    %1229 = vmatprep.subr.mxu0 0.0
    %1230 = vmatpush1.xpose.msra.mxu0 %v1225
    %1231 = vmatprep.subr.mxu0 0.0
    %1232 = vmatpush1.xpose.msra.mxu0 %v1227
    %1233 = vmatprep.subr.mxu0 0.0
    %1234 = vmatpush1.xpose.msra.mxu0 0.0
    %1235 = vmatprep.subr.mxu0 0.0
    %1236 = vmatpush1.xpose.msra.mxu0 0.0
    %1237 = vmatprep.subr.mxu0 0.0
    %1238 = vmatpush1.xpose.msra.mxu0 0.0
    %1239 = vmatprep.subr.mxu0 0.0
    %1240 = vmatpush1.xpose.msra.mxu0 0.0
    %1241 = vmatprep.subr.mxu0 0.0
    %1242 = vmatpush1.xpose.msra.mxu0 0.0
    %1243 = vmatprep.subr.mxu0 0.0
    %1244 = vmatpush1.xpose.msra.mxu0 0.0
    %1245 = vmatprep.subr.mxu0 0.0
    %1246 = vmatpush1.xpose.msra.mxu0 0.0
    %1247 = vmatprep.subr.mxu0 0.0
    %1248 = vmatpush1.xpose.msra.mxu0 0.0
    %1249 = vmatprep.subr.mxu0 0.0
    %1250 = vmatpush1.xpose.msra.mxu0 0.0
    %1251 = vmatprep.subr.mxu0 0.0
    %1252 = vmatpush1.xpose.msra.mxu0 0.0
    %1253 = vmatprep.subr.mxu0 0.0
    %1254 = vmatpush1.xpose.msra.mxu0 0.0
    %1255 = vmatprep.subr.mxu0 0.0
    %1256 = vmatpush1.xpose.msra.mxu0 0.0
    %1257 = vmatprep.subr.mxu0 0.0
    %1258 = vmatpush1.xpose.msra.mxu0 0.0
    %1259 = vmatprep.subr.mxu0 0.0
    %1260 = vmatpush1.xpose.msra.mxu0 0.0
    %1261 = vmatprep.subr.mxu0 0.0
    %1262 = vmatpush1.xpose.msra.mxu0 0.0
    %1263 = vmatprep.subr.mxu0 0.0
    %1264 = vmatpush1.xpose.msra.mxu0 0.0
    %1265 = vmatprep.subr.mxu0 0.0
    %1266 = vmatpush1.xpose.msra.mxu0 0.0
    %1267 = vmatprep.subr.mxu0 0.0
    %1268 = vmatpush1.xpose.msra.mxu0 0.0
    %1269 = vmatprep.subr.mxu0 0.0
    %1270 = vmatpush1.xpose.msra.mxu0 0.0
    %1271 = vmatprep.subr.mxu0 0.0
    %1272 = vmatpush1.xpose.msra.mxu0 0.0
    %1273 = vmatprep.subr.mxu0 0.0
    %1274 = vmatpush1.xpose.msra.mxu0 0.0
    %1275 = vmatprep.subr.mxu0 0.0
    %1276 = vmatpush1.xpose.msra.mxu0 0.0
    %1277 = vmatprep.subr.mxu0 0.0
    %1278 = vmatpush1.xpose.msra.mxu0 0.0
    %1279 = vmatprep.subr.mxu0 0.0
    %1280 = vmatpush1.xpose.msra.mxu0 0.0
    %1281 = vmatprep.subr.mxu0 0.0
    %1282 = vmatpush1.xpose.msra.mxu0 0.0
    %1283 = vmatprep.subr.mxu0 0.0
    %1284 = vmatpush1.xpose.msra.mxu0 0.0
    %1285 = vmatprep.subr.mxu0 0.0
    %1286 = vmatpush1.xpose.msra.mxu0 0.0
    %1287 = vmatprep.subr.mxu0 0.0
    %1288 = vmatpush1.xpose.msra.mxu0 0.0
    %1289 = vmatprep.subr.mxu0 0.0
    %1290 = vmatpush1.xpose.msra.mxu0 0.0
    %1291 = vmatprep.subr.mxu0 0.0
    %1292 = vmatpush1.xpose.msra.mxu0 0.0
    %1293 = vmatprep.mubr.f32.mxu0 0.0
    %1294 = vmatmul.mubr.f32.gmra.mrb[0].mxu0 %v1223
    %v1295 = vpop.f32.mrb[0].mxu0
    %v1296 = vadd.f32 0.0, %v1295
    %v1297 = vpop.f32.mrb[0].mxu0
    %1298 = vdwg.mxu0
    %v1299 = vsel %vm613, %v1214, -inf
    %1300 = vmax.xlane.f32.xlu0 %v1299
    %v1301 = vpop.xlane.xlu0 %1300
    %v1302 = vsel %vm613, %v1296, -inf
    %1303 = vmax.xlane.f32.xlu0 %v1302
    %v1304 = vpop.xlane.xlu0 %1303
    %v1305 = vsub.f32 %v1214, %v1301
    %v1306 = vsub.f32 %v1296, %v1304
    %v1307 = vmul.f32 %v1305, 1.442695
    %v1308 = vpow.pop %v1307
    %v1309 = vmul.f32 %v1306, 1.442695
    %v1310 = vpow.pop %v1309
    %v1311 = vsel %vm613, %v1308, 0.0
    %1312 = vadd.xlane.f32.xlu0 %v1311
    %v1313 = vpop.xlane.xlu0 %1312
    %v1314 = vsel %vm613, %v1310, 0.0
    %1315 = vadd.xlane.f32.xlu0 %v1314
    %v1316 = vpop.xlane.xlu0 %1315
    %v1317 = vrcp.pop %v1313
    %v1318 = vrcp.pop %v1316
    %v1319 = vmul.f32 %v1308, %v1317
    %v1320 = vmul.f32 %v1310, %v1318
    %s1321 = scalar_lea.vmem [#allocation14], 16
    %1322 = vst.msk [vmem:[%s1321] sm:$0xff] %vm613, %v1319
    %1323 = vst.msk [vmem:[%s1321 + $0x20] sm:$0xff] %vm613, %v1320
    %1324 = vrot.lane.b32.xlu0 %v436, 112
    %v1325 = vpop.permute.xlu0 %1324
    %1326 = vrot.lane.b32.xlu0 %v441, 112
    %v1327 = vpop.permute.xlu0 %1326
    %v1331 = vsel %vm613, %v1319, 0
    %1333 = vmatprep.subr.mxu0 0.0
    %1334 = vmatpush1.msra.mxu0 %v1325
    %1335 = vmatprep.subr.mxu0 0.0
    %1336 = vmatpush1.msra.mxu0 %v1327
    %1337 = vmatprep.subr.mxu0 0.0
    %1338 = vmatpush1.msra.mxu0 0.0
    %1339 = vmatprep.subr.mxu0 0.0
    %1340 = vmatpush1.msra.mxu0 0.0
    %1341 = vmatprep.subr.mxu0 0.0
    %1342 = vmatpush1.msra.mxu0 0.0
    %1343 = vmatprep.subr.mxu0 0.0
    %1344 = vmatpush1.msra.mxu0 0.0
    %1345 = vmatprep.subr.mxu0 0.0
    %1346 = vmatpush1.msra.mxu0 0.0
    %1347 = vmatprep.subr.mxu0 0.0
    %1348 = vmatpush1.msra.mxu0 0.0
    %1349 = vmatprep.subr.mxu0 0.0
    %1350 = vmatpush1.msra.mxu0 0.0
    %1351 = vmatprep.subr.mxu0 0.0
    %1352 = vmatpush1.msra.mxu0 0.0
    %1353 = vmatprep.subr.mxu0 0.0
    %1354 = vmatpush1.msra.mxu0 0.0
    %1355 = vmatprep.subr.mxu0 0.0
    %1356 = vmatpush1.msra.mxu0 0.0
    %1357 = vmatprep.subr.mxu0 0.0
    %1358 = vmatpush1.msra.mxu0 0.0
    %1359 = vmatprep.subr.mxu0 0.0
    %1360 = vmatpush1.msra.mxu0 0.0
    %1361 = vmatprep.subr.mxu0 0.0
    %1362 = vmatpush1.msra.mxu0 0.0
    %1363 = vmatprep.subr.mxu0 0.0
    %1364 = vmatpush1.msra.mxu0 0.0
    %1365 = vmatprep.subr.mxu0 0.0
    %1366 = vmatpush1.msra.mxu0 0.0
    %1367 = vmatprep.subr.mxu0 0.0
    %1368 = vmatpush1.msra.mxu0 0.0
    %1369 = vmatprep.subr.mxu0 0.0
    %1370 = vmatpush1.msra.mxu0 0.0
    %1371 = vmatprep.subr.mxu0 0.0
    %1372 = vmatpush1.msra.mxu0 0.0
    %1373 = vmatprep.subr.mxu0 0.0
    %1374 = vmatpush1.msra.mxu0 0.0
    %1375 = vmatprep.subr.mxu0 0.0
    %1376 = vmatpush1.msra.mxu0 0.0
    %1377 = vmatprep.subr.mxu0 0.0
    %1378 = vmatpush1.msra.mxu0 0.0
    %1379 = vmatprep.subr.mxu0 0.0
    %1380 = vmatpush1.msra.mxu0 0.0
    %1381 = vmatprep.subr.mxu0 0.0
    %1382 = vmatpush1.msra.mxu0 0.0
    %1383 = vmatprep.subr.mxu0 0.0
    %1384 = vmatpush1.msra.mxu0 0.0
    %1385 = vmatprep.subr.mxu0 0.0
    %1386 = vmatpush1.msra.mxu0 0.0
    %1387 = vmatprep.subr.mxu0 0.0
    %1388 = vmatpush1.msra.mxu0 0.0
    %1389 = vmatprep.subr.mxu0 0.0
    %1390 = vmatpush1.msra.mxu0 0.0
    %1391 = vmatprep.subr.mxu0 0.0
    %1392 = vmatpush1.msra.mxu0 0.0
    %1393 = vmatprep.subr.mxu0 0.0
    %1394 = vmatpush1.msra.mxu0 0.0
    %1395 = vmatprep.subr.mxu0 0.0
    %1396 = vmatpush1.msra.mxu0 0.0
    %1397 = vmatprep.mubr.f32.mxu0 0.0
    %1398 = vmatmul.mubr.f32.gmra.mrb[0].mxu0 %v1331
    %v1399 = vpop.f32.mrb[0].mxu0
    %v1400 = vadd.f32 0.0, %v1399
    %v1401 = vpop.f32.mrb[0].mxu0
    %1402 = vdwg.mxu0
    %1403 = vrot.lane.b32.xlu0 %v446, 112
    %v1404 = vpop.permute.xlu0 %1403
    %1405 = vrot.lane.b32.xlu0 %v451, 112
    %v1406 = vpop.permute.xlu0 %1405
    %v1410 = vsel %vm613, %v1320, 0
    %1412 = vmatprep.subr.mxu0 0.0
    %1413 = vmatpush1.msra.mxu0 %v1404
    %1414 = vmatprep.subr.mxu0 0.0
    %1415 = vmatpush1.msra.mxu0 %v1406
    %1416 = vmatprep.subr.mxu0 0.0
    %1417 = vmatpush1.msra.mxu0 0.0
    %1418 = vmatprep.subr.mxu0 0.0
    %1419 = vmatpush1.msra.mxu0 0.0
    %1420 = vmatprep.subr.mxu0 0.0
    %1421 = vmatpush1.msra.mxu0 0.0
    %1422 = vmatprep.subr.mxu0 0.0
    %1423 = vmatpush1.msra.mxu0 0.0
    %1424 = vmatprep.subr.mxu0 0.0
    %1425 = vmatpush1.msra.mxu0 0.0
    %1426 = vmatprep.subr.mxu0 0.0
    %1427 = vmatpush1.msra.mxu0 0.0
    %1428 = vmatprep.subr.mxu0 0.0
    %1429 = vmatpush1.msra.mxu0 0.0
    %1430 = vmatprep.subr.mxu0 0.0
    %1431 = vmatpush1.msra.mxu0 0.0
    %1432 = vmatprep.subr.mxu0 0.0
    %1433 = vmatpush1.msra.mxu0 0.0
    %1434 = vmatprep.subr.mxu0 0.0
    %1435 = vmatpush1.msra.mxu0 0.0
    %1436 = vmatprep.subr.mxu0 0.0
    %1437 = vmatpush1.msra.mxu0 0.0
    %1438 = vmatprep.subr.mxu0 0.0
    %1439 = vmatpush1.msra.mxu0 0.0
    %1440 = vmatprep.subr.mxu0 0.0
    %1441 = vmatpush1.msra.mxu0 0.0
    %1442 = vmatprep.subr.mxu0 0.0
    %1443 = vmatpush1.msra.mxu0 0.0
    %1444 = vmatprep.subr.mxu0 0.0
    %1445 = vmatpush1.msra.mxu0 0.0
    %1446 = vmatprep.subr.mxu0 0.0
    %1447 = vmatpush1.msra.mxu0 0.0
    %1448 = vmatprep.subr.mxu0 0.0
    %1449 = vmatpush1.msra.mxu0 0.0
    %1450 = vmatprep.subr.mxu0 0.0
    %1451 = vmatpush1.msra.mxu0 0.0
    %1452 = vmatprep.subr.mxu0 0.0
    %1453 = vmatpush1.msra.mxu0 0.0
    %1454 = vmatprep.subr.mxu0 0.0
    %1455 = vmatpush1.msra.mxu0 0.0
    %1456 = vmatprep.subr.mxu0 0.0
    %1457 = vmatpush1.msra.mxu0 0.0
    %1458 = vmatprep.subr.mxu0 0.0
    %1459 = vmatpush1.msra.mxu0 0.0
    %1460 = vmatprep.subr.mxu0 0.0
    %1461 = vmatpush1.msra.mxu0 0.0
    %1462 = vmatprep.subr.mxu0 0.0
    %1463 = vmatpush1.msra.mxu0 0.0
    %1464 = vmatprep.subr.mxu0 0.0
    %1465 = vmatpush1.msra.mxu0 0.0
    %1466 = vmatprep.subr.mxu0 0.0
    %1467 = vmatpush1.msra.mxu0 0.0
    %1468 = vmatprep.subr.mxu0 0.0
    %1469 = vmatpush1.msra.mxu0 0.0
    %1470 = vmatprep.subr.mxu0 0.0
    %1471 = vmatpush1.msra.mxu0 0.0
    %1472 = vmatprep.subr.mxu0 0.0
    %1473 = vmatpush1.msra.mxu0 0.0
    %1474 = vmatprep.subr.mxu0 0.0
    %1475 = vmatpush1.msra.mxu0 0.0
    %1476 = vmatprep.mubr.f32.mxu0 0.0
    %1477 = vmatmul.mubr.f32.gmra.mrb[0].mxu0 %v1410
    %v1478 = vpop.f32.mrb[0].mxu0
    %v1479 = vadd.f32 0.0, %v1478
    %v1480 = vpop.f32.mrb[0].mxu0
    %1481 = vdwg.mxu0
    %1482 = vrot.lane.b32.xlu0 %v222, 104
    %v1483 = vpop.permute.xlu0 %1482
    %1484 = vrot.lane.b32.xlu0 %v324, 104
    %v1485 = vpop.permute.xlu0 %1484
    %1486 = vrot.lane.b32.xlu0 %v329, 104
    %v1487 = vpop.permute.xlu0 %1486
    %v1488 = vsel %vm454, %v1483, 0
    %v1490 = vsel %vm454, %v1485, 0
    %v1492 = vsel %vm454, %v1487, 0
    %1494 = vmatprep.subr.mxu0 0.0
    %1495 = vmatpush1.xpose.msra.mxu0 %v1490
    %1496 = vmatprep.subr.mxu0 0.0
    %1497 = vmatpush1.xpose.msra.mxu0 %v1492
    %1498 = vmatprep.subr.mxu0 0.0
    %1499 = vmatpush1.xpose.msra.mxu0 0.0
    %1500 = vmatprep.subr.mxu0 0.0
    %1501 = vmatpush1.xpose.msra.mxu0 0.0
    %1502 = vmatprep.subr.mxu0 0.0
    %1503 = vmatpush1.xpose.msra.mxu0 0.0
    %1504 = vmatprep.subr.mxu0 0.0
    %1505 = vmatpush1.xpose.msra.mxu0 0.0
    %1506 = vmatprep.subr.mxu0 0.0
    %1507 = vmatpush1.xpose.msra.mxu0 0.0
    %1508 = vmatprep.subr.mxu0 0.0
    %1509 = vmatpush1.xpose.msra.mxu0 0.0
    %1510 = vmatprep.subr.mxu0 0.0
    %1511 = vmatpush1.xpose.msra.mxu0 0.0
    %1512 = vmatprep.subr.mxu0 0.0
    %1513 = vmatpush1.xpose.msra.mxu0 0.0
    %1514 = vmatprep.subr.mxu0 0.0
    %1515 = vmatpush1.xpose.msra.mxu0 0.0
    %1516 = vmatprep.subr.mxu0 0.0
    %1517 = vmatpush1.xpose.msra.mxu0 0.0
    %1518 = vmatprep.subr.mxu0 0.0
    %1519 = vmatpush1.xpose.msra.mxu0 0.0
    %1520 = vmatprep.subr.mxu0 0.0
    %1521 = vmatpush1.xpose.msra.mxu0 0.0
    %1522 = vmatprep.subr.mxu0 0.0
    %1523 = vmatpush1.xpose.msra.mxu0 0.0
    %1524 = vmatprep.subr.mxu0 0.0
    %1525 = vmatpush1.xpose.msra.mxu0 0.0
    %1526 = vmatprep.subr.mxu0 0.0
    %1527 = vmatpush1.xpose.msra.mxu0 0.0
    %1528 = vmatprep.subr.mxu0 0.0
    %1529 = vmatpush1.xpose.msra.mxu0 0.0
    %1530 = vmatprep.subr.mxu0 0.0
    %1531 = vmatpush1.xpose.msra.mxu0 0.0
    %1532 = vmatprep.subr.mxu0 0.0
    %1533 = vmatpush1.xpose.msra.mxu0 0.0
    %1534 = vmatprep.subr.mxu0 0.0
    %1535 = vmatpush1.xpose.msra.mxu0 0.0
    %1536 = vmatprep.subr.mxu0 0.0
    %1537 = vmatpush1.xpose.msra.mxu0 0.0
    %1538 = vmatprep.subr.mxu0 0.0
    %1539 = vmatpush1.xpose.msra.mxu0 0.0
    %1540 = vmatprep.subr.mxu0 0.0
    %1541 = vmatpush1.xpose.msra.mxu0 0.0
    %1542 = vmatprep.subr.mxu0 0.0
    %1543 = vmatpush1.xpose.msra.mxu0 0.0
    %1544 = vmatprep.subr.mxu0 0.0
    %1545 = vmatpush1.xpose.msra.mxu0 0.0
    %1546 = vmatprep.subr.mxu0 0.0
    %1547 = vmatpush1.xpose.msra.mxu0 0.0
    %1548 = vmatprep.subr.mxu0 0.0
    %1549 = vmatpush1.xpose.msra.mxu0 0.0
    %1550 = vmatprep.subr.mxu0 0.0
    %1551 = vmatpush1.xpose.msra.mxu0 0.0
    %1552 = vmatprep.subr.mxu0 0.0
    %1553 = vmatpush1.xpose.msra.mxu0 0.0
    %1554 = vmatprep.subr.mxu0 0.0
    %1555 = vmatpush1.xpose.msra.mxu0 0.0
    %1556 = vmatprep.subr.mxu0 0.0
    %1557 = vmatpush1.xpose.msra.mxu0 0.0
    %1558 = vmatprep.mubr.f32.mxu0 0.0
    %1559 = vmatmul.mubr.f32.gmra.mrb[0].mxu0 %v1488
    %v1560 = vpop.f32.mrb[0].mxu0
    %v1561 = vadd.f32 0.0, %v1560
    %v1562 = vpop.f32.mrb[0].mxu0
    %1563 = vdwg.mxu0
    %1564 = vrot.lane.b32.xlu0 %v227, 104
    %v1565 = vpop.permute.xlu0 %1564
    %1566 = vrot.lane.b32.xlu0 %v334, 104
    %v1567 = vpop.permute.xlu0 %1566
    %1568 = vrot.lane.b32.xlu0 %v339, 104
    %v1569 = vpop.permute.xlu0 %1568
    %v1570 = vsel %vm454, %v1565, 0
    %v1572 = vsel %vm454, %v1567, 0
    %v1574 = vsel %vm454, %v1569, 0
    %1576 = vmatprep.subr.mxu0 0.0
    %1577 = vmatpush1.xpose.msra.mxu0 %v1572
    %1578 = vmatprep.subr.mxu0 0.0
    %1579 = vmatpush1.xpose.msra.mxu0 %v1574
    %1580 = vmatprep.subr.mxu0 0.0
    %1581 = vmatpush1.xpose.msra.mxu0 0.0
    %1582 = vmatprep.subr.mxu0 0.0
    %1583 = vmatpush1.xpose.msra.mxu0 0.0
    %1584 = vmatprep.subr.mxu0 0.0
    %1585 = vmatpush1.xpose.msra.mxu0 0.0
    %1586 = vmatprep.subr.mxu0 0.0
    %1587 = vmatpush1.xpose.msra.mxu0 0.0
    %1588 = vmatprep.subr.mxu0 0.0
    %1589 = vmatpush1.xpose.msra.mxu0 0.0
    %1590 = vmatprep.subr.mxu0 0.0
    %1591 = vmatpush1.xpose.msra.mxu0 0.0
    %1592 = vmatprep.subr.mxu0 0.0
    %1593 = vmatpush1.xpose.msra.mxu0 0.0
    %1594 = vmatprep.subr.mxu0 0.0
    %1595 = vmatpush1.xpose.msra.mxu0 0.0
    %1596 = vmatprep.subr.mxu0 0.0
    %1597 = vmatpush1.xpose.msra.mxu0 0.0
    %1598 = vmatprep.subr.mxu0 0.0
    %1599 = vmatpush1.xpose.msra.mxu0 0.0
    %1600 = vmatprep.subr.mxu0 0.0
    %1601 = vmatpush1.xpose.msra.mxu0 0.0
    %1602 = vmatprep.subr.mxu0 0.0
    %1603 = vmatpush1.xpose.msra.mxu0 0.0
    %1604 = vmatprep.subr.mxu0 0.0
    %1605 = vmatpush1.xpose.msra.mxu0 0.0
    %1606 = vmatprep.subr.mxu0 0.0
    %1607 = vmatpush1.xpose.msra.mxu0 0.0
    %1608 = vmatprep.subr.mxu0 0.0
    %1609 = vmatpush1.xpose.msra.mxu0 0.0
    %1610 = vmatprep.subr.mxu0 0.0
    %1611 = vmatpush1.xpose.msra.mxu0 0.0
    %1612 = vmatprep.subr.mxu0 0.0
    %1613 = vmatpush1.xpose.msra.mxu0 0.0
    %1614 = vmatprep.subr.mxu0 0.0
    %1615 = vmatpush1.xpose.msra.mxu0 0.0
    %1616 = vmatprep.subr.mxu0 0.0
    %1617 = vmatpush1.xpose.msra.mxu0 0.0
    %1618 = vmatprep.subr.mxu0 0.0
    %1619 = vmatpush1.xpose.msra.mxu0 0.0
    %1620 = vmatprep.subr.mxu0 0.0
    %1621 = vmatpush1.xpose.msra.mxu0 0.0
    %1622 = vmatprep.subr.mxu0 0.0
    %1623 = vmatpush1.xpose.msra.mxu0 0.0
    %1624 = vmatprep.subr.mxu0 0.0
    %1625 = vmatpush1.xpose.msra.mxu0 0.0
    %1626 = vmatprep.subr.mxu0 0.0
    %1627 = vmatpush1.xpose.msra.mxu0 0.0
    %1628 = vmatprep.subr.mxu0 0.0
    %1629 = vmatpush1.xpose.msra.mxu0 0.0
    %1630 = vmatprep.subr.mxu0 0.0
    %1631 = vmatpush1.xpose.msra.mxu0 0.0
    %1632 = vmatprep.subr.mxu0 0.0
    %1633 = vmatpush1.xpose.msra.mxu0 0.0
    %1634 = vmatprep.subr.mxu0 0.0
    %1635 = vmatpush1.xpose.msra.mxu0 0.0
    %1636 = vmatprep.subr.mxu0 0.0
    %1637 = vmatpush1.xpose.msra.mxu0 0.0
    %1638 = vmatprep.subr.mxu0 0.0
    %1639 = vmatpush1.xpose.msra.mxu0 0.0
    %1640 = vmatprep.mubr.f32.mxu0 0.0
    %1641 = vmatmul.mubr.f32.gmra.mrb[0].mxu0 %v1570
    %v1642 = vpop.f32.mrb[0].mxu0
    %v1643 = vadd.f32 0.0, %v1642
    %v1644 = vpop.f32.mrb[0].mxu0
    %1645 = vdwg.mxu0
    %v1646 = vsel %vm613, %v1561, -inf
    %1647 = vmax.xlane.f32.xlu0 %v1646
    %v1648 = vpop.xlane.xlu0 %1647
    %v1649 = vsel %vm613, %v1643, -inf
    %1650 = vmax.xlane.f32.xlu0 %v1649
    %v1651 = vpop.xlane.xlu0 %1650
    %v1652 = vsub.f32 %v1561, %v1648
    %v1653 = vsub.f32 %v1643, %v1651
    %v1654 = vmul.f32 %v1652, 1.442695
    %v1655 = vpow.pop %v1654
    %v1656 = vmul.f32 %v1653, 1.442695
    %v1657 = vpow.pop %v1656
    %v1658 = vsel %vm613, %v1655, 0.0
    %1659 = vadd.xlane.f32.xlu0 %v1658
    %v1660 = vpop.xlane.xlu0 %1659
    %v1661 = vsel %vm613, %v1657, 0.0
    %1662 = vadd.xlane.f32.xlu0 %v1661
    %v1663 = vpop.xlane.xlu0 %1662
    %v1664 = vrcp.pop %v1660
    %v1665 = vrcp.pop %v1663
    %v1666 = vmul.f32 %v1655, %v1664
    %v1667 = vmul.f32 %v1657, %v1665
    %s1668 = scalar_lea.vmem [#allocation14], 24
    %1669 = vst.msk [vmem:[%s1668] sm:$0xff] %vm613, %v1666
    %1670 = vst.msk [vmem:[%s1668 + $0x20] sm:$0xff] %vm613, %v1667
    %1671 = vrot.lane.b32.xlu0 %v436, 104
    %v1672 = vpop.permute.xlu0 %1671
    %1673 = vrot.lane.b32.xlu0 %v441, 104
    %v1674 = vpop.permute.xlu0 %1673
    %v1678 = vsel %vm613, %v1666, 0
    %1680 = vmatprep.subr.mxu0 0.0
    %1681 = vmatpush1.msra.mxu0 %v1672
    %1682 = vmatprep.subr.mxu0 0.0
    %1683 = vmatpush1.msra.mxu0 %v1674
    %1684 = vmatprep.subr.mxu0 0.0
    %1685 = vmatpush1.msra.mxu0 0.0
    %1686 = vmatprep.subr.mxu0 0.0
    %1687 = vmatpush1.msra.mxu0 0.0
    %1688 = vmatprep.subr.mxu0 0.0
    %1689 = vmatpush1.msra.mxu0 0.0
    %1690 = vmatprep.subr.mxu0 0.0
    %1691 = vmatpush1.msra.mxu0 0.0
    %1692 = vmatprep.subr.mxu0 0.0
    %1693 = vmatpush1.msra.mxu0 0.0
    %1694 = vmatprep.subr.mxu0 0.0
    %1695 = vmatpush1.msra.mxu0 0.0
    %1696 = vmatprep.subr.mxu0 0.0
    %1697 = vmatpush1.msra.mxu0 0.0
    %1698 = vmatprep.subr.mxu0 0.0
    %1699 = vmatpush1.msra.mxu0 0.0
    %1700 = vmatprep.subr.mxu0 0.0
    %1701 = vmatpush1.msra.mxu0 0.0
    %1702 = vmatprep.subr.mxu0 0.0
    %1703 = vmatpush1.msra.mxu0 0.0
    %1704 = vmatprep.subr.mxu0 0.0
    %1705 = vmatpush1.msra.mxu0 0.0
    %1706 = vmatprep.subr.mxu0 0.0
    %1707 = vmatpush1.msra.mxu0 0.0
    %1708 = vmatprep.subr.mxu0 0.0
    %1709 = vmatpush1.msra.mxu0 0.0
    %1710 = vmatprep.subr.mxu0 0.0
    %1711 = vmatpush1.msra.mxu0 0.0
    %1712 = vmatprep.subr.mxu0 0.0
    %1713 = vmatpush1.msra.mxu0 0.0
    %1714 = vmatprep.subr.mxu0 0.0
    %1715 = vmatpush1.msra.mxu0 0.0
    %1716 = vmatprep.subr.mxu0 0.0
    %1717 = vmatpush1.msra.mxu0 0.0
    %1718 = vmatprep.subr.mxu0 0.0
    %1719 = vmatpush1.msra.mxu0 0.0
    %1720 = vmatprep.subr.mxu0 0.0
    %1721 = vmatpush1.msra.mxu0 0.0
    %1722 = vmatprep.subr.mxu0 0.0
    %1723 = vmatpush1.msra.mxu0 0.0
    %1724 = vmatprep.subr.mxu0 0.0
    %1725 = vmatpush1.msra.mxu0 0.0
    %1726 = vmatprep.subr.mxu0 0.0
    %1727 = vmatpush1.msra.mxu0 0.0
    %1728 = vmatprep.subr.mxu0 0.0
    %1729 = vmatpush1.msra.mxu0 0.0
    %1730 = vmatprep.subr.mxu0 0.0
    %1731 = vmatpush1.msra.mxu0 0.0
    %1732 = vmatprep.subr.mxu0 0.0
    %1733 = vmatpush1.msra.mxu0 0.0
    %1734 = vmatprep.subr.mxu0 0.0
    %1735 = vmatpush1.msra.mxu0 0.0
    %1736 = vmatprep.subr.mxu0 0.0
    %1737 = vmatpush1.msra.mxu0 0.0
    %1738 = vmatprep.subr.mxu0 0.0
    %1739 = vmatpush1.msra.mxu0 0.0
    %1740 = vmatprep.subr.mxu0 0.0
    %1741 = vmatpush1.msra.mxu0 0.0
    %1742 = vmatprep.subr.mxu0 0.0
    %1743 = vmatpush1.msra.mxu0 0.0
    %1744 = vmatprep.mubr.f32.mxu0 0.0
    %1745 = vmatmul.mubr.f32.gmra.mrb[0].mxu0 %v1678
    %v1746 = vpop.f32.mrb[0].mxu0
    %v1747 = vadd.f32 0.0, %v1746
    %v1748 = vpop.f32.mrb[0].mxu0
    %1749 = vdwg.mxu0
    %1750 = vrot.lane.b32.xlu0 %v446, 104
    %v1751 = vpop.permute.xlu0 %1750
    %1752 = vrot.lane.b32.xlu0 %v451, 104
    %v1753 = vpop.permute.xlu0 %1752
    %v1757 = vsel %vm613, %v1667, 0
    %1759 = vmatprep.subr.mxu0 0.0
    %1760 = vmatpush1.msra.mxu0 %v1751
    %1761 = vmatprep.subr.mxu0 0.0
    %1762 = vmatpush1.msra.mxu0 %v1753
    %1763 = vmatprep.subr.mxu0 0.0
    %1764 = vmatpush1.msra.mxu0 0.0
    %1765 = vmatprep.subr.mxu0 0.0
    %1766 = vmatpush1.msra.mxu0 0.0
    %1767 = vmatprep.subr.mxu0 0.0
    %1768 = vmatpush1.msra.mxu0 0.0
    %1769 = vmatprep.subr.mxu0 0.0
    %1770 = vmatpush1.msra.mxu0 0.0
    %1771 = vmatprep.subr.mxu0 0.0
    %1772 = vmatpush1.msra.mxu0 0.0
    %1773 = vmatprep.subr.mxu0 0.0
    %1774 = vmatpush1.msra.mxu0 0.0
    %1775 = vmatprep.subr.mxu0 0.0
    %1776 = vmatpush1.msra.mxu0 0.0
    %1777 = vmatprep.subr.mxu0 0.0
    %1778 = vmatpush1.msra.mxu0 0.0
    %1779 = vmatprep.subr.mxu0 0.0
    %1780 = vmatpush1.msra.mxu0 0.0
    %1781 = vmatprep.subr.mxu0 0.0
    %1782 = vmatpush1.msra.mxu0 0.0
    %1783 = vmatprep.subr.mxu0 0.0
    %1784 = vmatpush1.msra.mxu0 0.0
    %1785 = vmatprep.subr.mxu0 0.0
    %1786 = vmatpush1.msra.mxu0 0.0
    %1787 = vmatprep.subr.mxu0 0.0
    %1788 = vmatpush1.msra.mxu0 0.0
    %1789 = vmatprep.subr.mxu0 0.0
    %1790 = vmatpush1.msra.mxu0 0.0
    %1791 = vmatprep.subr.mxu0 0.0
    %1792 = vmatpush1.msra.mxu0 0.0
    %1793 = vmatprep.subr.mxu0 0.0
    %1794 = vmatpush1.msra.mxu0 0.0
    %1795 = vmatprep.subr.mxu0 0.0
    %1796 = vmatpush1.msra.mxu0 0.0
    %1797 = vmatprep.subr.mxu0 0.0
    %1798 = vmatpush1.msra.mxu0 0.0
    %1799 = vmatprep.subr.mxu0 0.0
    %1800 = vmatpush1.msra.mxu0 0.0
    %1801 = vmatprep.subr.mxu0 0.0
    %1802 = vmatpush1.msra.mxu0 0.0
    %1803 = vmatprep.subr.mxu0 0.0
    %1804 = vmatpush1.msra.mxu0 0.0
    %1805 = vmatprep.subr.mxu0 0.0
    %1806 = vmatpush1.msra.mxu0 0.0
    %1807 = vmatprep.subr.mxu0 0.0
    %1808 = vmatpush1.msra.mxu0 0.0
    %1809 = vmatprep.subr.mxu0 0.0
    %1810 = vmatpush1.msra.mxu0 0.0
    %1811 = vmatprep.subr.mxu0 0.0
    %1812 = vmatpush1.msra.mxu0 0.0
    %1813 = vmatprep.subr.mxu0 0.0
    %1814 = vmatpush1.msra.mxu0 0.0
    %1815 = vmatprep.subr.mxu0 0.0
    %1816 = vmatpush1.msra.mxu0 0.0
    %1817 = vmatprep.subr.mxu0 0.0
    %1818 = vmatpush1.msra.mxu0 0.0
    %1819 = vmatprep.subr.mxu0 0.0
    %1820 = vmatpush1.msra.mxu0 0.0
    %1821 = vmatprep.subr.mxu0 0.0
    %1822 = vmatpush1.msra.mxu0 0.0
    %1823 = vmatprep.mubr.f32.mxu0 0.0
    %1824 = vmatmul.mubr.f32.gmra.mrb[0].mxu0 %v1757
    %v1825 = vpop.f32.mrb[0].mxu0
    %v1826 = vadd.f32 0.0, %v1825
    %v1827 = vpop.f32.mrb[0].mxu0
    %1828 = vdwg.mxu0
    %1831 = vrot.lane.b32.xlu0 %v1051, 8
    %v1832 = vpop.permute.xlu0 %1831
    %1833 = vrot.lane.b32.xlu0 %v1132, 8
    %v1834 = vpop.permute.xlu0 %1833
    %1839 = vrot.lane.b32.xlu0 %v1400, 16
    %v1840 = vpop.permute.xlu0 %1839
    %1841 = vrot.lane.b32.xlu0 %v1479, 16
    %v1842 = vpop.permute.xlu0 %1841
    %1847 = vrot.lane.b32.xlu0 %v1747, 24
    %v1848 = vpop.permute.xlu0 %1847
    %1849 = vrot.lane.b32.xlu0 %v1826, 24
    %v1850 = vpop.permute.xlu0 %1849
    %v1853 = vsel %vm454, %v708, %v1832
    %v1854 = vsel %vm454, %v781, %v1834
    %v1855 = vsel %vm613, %v1853, %v1840
    %v1856 = vsel %vm613, %v1854, %v1842
    %vm1857 = vcmask 195584
    %v1858 = vsel %vm1857, %v1855, %v1848
    %v1859 = vsel %vm1857, %v1856, %v1850
    %v1860 = vld [vmem:[%s9] sm:$0xff]
    %v1861 = vld [vmem:[%s9 + $0x8] sm:$0xff]
    %v1862 = vld [vmem:[%s9 + $0x10] sm:$0xff]
    %v1863 = vld [vmem:[%s9 + $0x18] sm:$0xff]
    %v1864 = vld [vmem:[%s10] sm:$0x1]
    %v1866 = vlaneseq
    %v1867 = vshrl.u32 %v1866, 7
    %v1868 = vsub.s32 0, %v1867
    %v1869 = vrot.slane %v1864, %v1868
    %v1872 = vsel %vm148, %v1858, 0
    %v1875 = vsel %vm148, %v1859, 0
    %1877 = vmatprep.subr.mxu0 0.0
    %1878 = vmatpush1.msra.mxu0 %v1860
    %1879 = vmatprep.subr.mxu0 0.0
    %1880 = vmatpush1.msra.mxu0 %v1861
    %1881 = vmatprep.subr.mxu0 0.0
    %1882 = vmatpush1.msra.mxu0 %v1862
    %1883 = vmatprep.subr.mxu0 0.0
    %1884 = vmatpush1.msra.mxu0 %v1863
    %1885 = vmatprep.subr.mxu0 0.0
    %1886 = vmatpush1.msra.mxu0 0.0
    %1887 = vmatprep.subr.mxu0 0.0
    %1888 = vmatpush1.msra.mxu0 0.0
    %1889 = vmatprep.subr.mxu0 0.0
    %1890 = vmatpush1.msra.mxu0 0.0
    %1891 = vmatprep.subr.mxu0 0.0
    %1892 = vmatpush1.msra.mxu0 0.0
    %1893 = vmatprep.subr.mxu0 0.0
    %1894 = vmatpush1.msra.mxu0 0.0
    %1895 = vmatprep.subr.mxu0 0.0
    %1896 = vmatpush1.msra.mxu0 0.0
    %1897 = vmatprep.subr.mxu0 0.0
    %1898 = vmatpush1.msra.mxu0 0.0
    %1899 = vmatprep.subr.mxu0 0.0
    %1900 = vmatpush1.msra.mxu0 0.0
    %1901 = vmatprep.subr.mxu0 0.0
    %1902 = vmatpush1.msra.mxu0 0.0
    %1903 = vmatprep.subr.mxu0 0.0
    %1904 = vmatpush1.msra.mxu0 0.0
    %1905 = vmatprep.subr.mxu0 0.0
    %1906 = vmatpush1.msra.mxu0 0.0
    %1907 = vmatprep.subr.mxu0 0.0
    %1908 = vmatpush1.msra.mxu0 0.0
    %1909 = vmatprep.subr.mxu0 0.0
    %1910 = vmatpush1.msra.mxu0 0.0
    %1911 = vmatprep.subr.mxu0 0.0
    %1912 = vmatpush1.msra.mxu0 0.0
    %1913 = vmatprep.subr.mxu0 0.0
    %1914 = vmatpush1.msra.mxu0 0.0
    %1915 = vmatprep.subr.mxu0 0.0
    %1916 = vmatpush1.msra.mxu0 0.0
    %1917 = vmatprep.subr.mxu0 0.0
    %1918 = vmatpush1.msra.mxu0 0.0
    %1919 = vmatprep.subr.mxu0 0.0
    %1920 = vmatpush1.msra.mxu0 0.0
    %1921 = vmatprep.subr.mxu0 0.0
    %1922 = vmatpush1.msra.mxu0 0.0
    %1923 = vmatprep.subr.mxu0 0.0
    %1924 = vmatpush1.msra.mxu0 0.0
    %1925 = vmatprep.subr.mxu0 0.0
    %1926 = vmatpush1.msra.mxu0 0.0
    %1927 = vmatprep.subr.mxu0 0.0
    %1928 = vmatpush1.msra.mxu0 0.0
    %1929 = vmatprep.subr.mxu0 0.0
    %1930 = vmatpush1.msra.mxu0 0.0
    %1931 = vmatprep.subr.mxu0 0.0
    %1932 = vmatpush1.msra.mxu0 0.0
    %1933 = vmatprep.subr.mxu0 0.0
    %1934 = vmatpush1.msra.mxu0 0.0
    %1935 = vmatprep.subr.mxu0 0.0
    %1936 = vmatpush1.msra.mxu0 0.0
    %1937 = vmatprep.subr.mxu0 0.0
    %1938 = vmatpush1.msra.mxu0 0.0
    %1939 = vmatprep.subr.mxu0 0.0
    %1940 = vmatpush1.msra.mxu0 0.0
    %1941 = vmatprep.mubr.f32.mxu0 0.0
    %1942 = vmatmul.mubr.f32.gmra.mrb[0].mxu0 %v1872
    %v1943 = vpop.f32.mrb[0].mxu0
    %v1944 = vadd.f32 %v1869, %v1943
    %v1945 = vpop.f32.mrb[0].mxu0
    %1946 = vmatprep.mubr.f32.mxu0 0.0
    %1947 = vmatmul.mubr.f32.gmra.mrb[0].mxu0 %v1875
    %v1948 = vpop.f32.mrb[0].mxu0
    %v1949 = vadd.f32 %v1869, %v1948
    %v1950 = vpop.f32.mrb[0].mxu0
    %1951 = vdwg.mxu0
    %1952 = vst.msk [vmem:[#allocation15] sm:$0xff] %vm148, %v1944
    %1953 = vst.msk [vmem:[#allocation15 + $0x8] sm:$0xff] %vm148, %v1949
    // Predicated region
    $region74: #{tpu_custom_call.1} parent=1 // pred_check
      _
    $region75: #{tpu_custom_call.1} parent=1 // pred_check_branch
      %1955 = sbr.rel (0) target = $region77
    $region76: #{tpu_custom_call.1} parent=1 // pred_region
      %s1957 = ssub.s32 1024, 1024
      %1958 = vsyncadd [#allocation4], %s1957
      %s1959 = sshll.u32 [#allocation14], 4
      %s1960 = int_to_ptr.vmem [resolvable:$true] %s1959
      %1965 = dma.vmem_to_hbm [thread:$0]  %s1960, 1024, %s11, [#allocation4], 128, 128, 8
    $region77: #{tpu_custom_call.1} parent=1 // pred_fallthru
      _
    // Predicated region
    $region78: #{tpu_custom_call.1} parent=1 // pred_check
      _
    $region79: #{tpu_custom_call.1} parent=1 // pred_check_branch
      %1967 = sbr.rel (0) target = $region81
    $region80: #{tpu_custom_call.1} parent=1 // pred_region
      %s1969 = ssub.s32 256, 256
      %1970 = vsyncadd [#allocation16], %s1969
      %s1971 = sshll.u32 [#allocation15], 4
      %s1972 = int_to_ptr.vmem [resolvable:$true] %s1971
      %1977 = dma.vmem_to_hbm [thread:$0]  %s1972, 256, %s12, [#allocation16], 128, 128, 8
    $region81: #{tpu_custom_call.1} parent=1 // pred_fallthru
      _
    // Predicated region
    $region82: #{tpu_custom_call.1} parent=1 // pred_check
      _
    $region83: #{tpu_custom_call.1} parent=1 // pred_check_branch
      %1979 = sbr.rel (0) target = $region85
    $region84: #{tpu_custom_call.1} parent=1 // pred_region
      %1980 = dma.done [#allocation4], 1024
    $region85: #{tpu_custom_call.1} parent=1 // pred_fallthru
      _
    // Predicated region
    $region86: #{tpu_custom_call.1} parent=1 // pred_check
      _
    $region87: #{tpu_custom_call.1} parent=1 // pred_check_branch
      %1982 = sbr.rel (0) target = $region89
    $region88: #{tpu_custom_call.1} parent=1 // pred_region
      %1983 = dma.done [#allocation16], 256
    $region89: #{tpu_custom_call.1} parent=1 // pred_fallthru
      _
    %1984 = vsyncpa [#allocation3], 1
    %1985 = vsyncpa [#allocation6], 1
    %1986 = vsyncpa [#allocation9], 1
    %1987 = vsyncpa [#allocation12], 1
    %1988 = vsyncpa [#allocation4], 1
    %1989 = vsyncpa [#allocation16], 1

</llo_original>
